<compile_context>
chip_gen: v5e
topology: v5e:2x2
jax: 0.10.0
libtpu: 0.0.40
codegen_flags: <defaults>
</compile_context>

<pallas_src>
import functools

import jax
import jax.numpy as jnp
from jax.experimental import pallas as pl
from jax.experimental.pallas import tpu as pltpu

NEG_SLOPE = 0.01  # F.leaky_relu default negative slope


def _round_up(x, m=128):
    return max(m, ((x + m - 1) // m) * m)


def _leaky_relu(x):
    return jnp.where(x >= 0, x, NEG_SLOPE * x)


def _elu(x):
    return jnp.where(x > 0, x, jnp.exp(x) - 1.0)


def _sigmoid(x):
    # 1 / (1 + exp(-x)); the reciprocal goes to the EUP slot.
    return pl.reciprocal(1.0 + jnp.exp(-x), approx=True)


def _gru(x, h, wih, whh, bih, bhh):
    """PyTorch nn.GRUCell, gates packed [r | z | n] along a 3*FP lane axis."""
    fp = h.shape[-1]
    gi = jnp.dot(x, wih, preferred_element_type=jnp.float32) + bih
    gh = jnp.dot(h, whh, preferred_element_type=jnp.float32) + bhh
    r = _sigmoid(gi[:, 0:fp] + gh[:, 0:fp])
    z = _sigmoid(gi[:, fp:2 * fp] + gh[:, fp:2 * fp])
    n = jnp.tanh(gi[:, 2 * fp:3 * fp] + r * gh[:, 2 * fp:3 * fp])
    return (1.0 - z) * n + z * h


# ----------------------------------------------------------------------------
# Fused kernel: one grid step == one molecule, end to end.
# ----------------------------------------------------------------------------
def _fingerprint_kernel(
    # per-molecule data (blocked over the batch grid axis)
    atom_ref, bond_ref, gf_ref, gb_ref, smask_ref, amask_ref, mmask_ref, msmask_ref,
    # shared (replicated) packed weights
    afc_w_ref, afc_b_ref, nfc_wa_ref, nfc_wb_ref, nfc_b_ref,
    al_wa_ref, al_wn_ref, al_b_ref, att_w_ref, att_b_ref,
    gru_wih_ref, gru_whh_ref, gru_bih_ref, gru_bhh_ref,
    mal_wa_ref, mal_wn_ref, mal_b_ref, matt_w_ref, matt_b_ref,
    mgru_wih_ref, mgru_whh_ref, mgru_bih_ref, mgru_bhh_ref,
    out_w_ref, out_b_ref,
    # outputs (blocked over the batch grid axis)
    atom_viz_ref, attn_viz_ref, mol_viz_ref, mol_unb_ref, mol_attn_ref, pred_ref,
):
    radius = al_wa_ref.shape[0]
    n_nbr = gf_ref.shape[1]
    t_steps = mol_attn_ref.shape[1]

    atom_in = atom_ref[0]                     # (L, A)
    bond_in = bond_ref[0]                     # (NB, Bd)

    # ---- atom_fc (pre-activation is the first viz entry) ----
    pre0 = (jnp.dot(atom_in, afc_w_ref[...], preferred_element_type=jnp.float32)
            + afc_b_ref[...])                 # (L, FP)
    atom_viz_ref[0, 0] = pre0
    atom_feature = _leaky_relu(pre0)          # (L, FP)

    # ---- round-0 neighbor features: in-kernel one-hot gather + neighbor_fc ----
    neighs = []
    for n in range(n_nbr):
        a_n = jnp.dot(gf_ref[0, n], atom_in, preferred_element_type=jnp.float32)   # (L, A)
        b_n = jnp.dot(gb_ref[0, n], bond_in, preferred_element_type=jnp.float32)   # (L, Bd)
        pre = (jnp.dot(a_n, nfc_wa_ref[...], preferred_element_type=jnp.float32)
               + jnp.dot(b_n, nfc_wb_ref[...], preferred_element_type=jnp.float32)
               + nfc_b_ref[...])
        neighs.append(_leaky_relu(pre))       # (L, FP)

    h = atom_feature                          # GRU hidden state, stays in VMEM/regs
    self_feat = atom_feature
    activated = atom_feature
    for d in range(radius):
        if d > 0:
            self_feat = activated
            # gather relu'd features of neighbors for this round (one-hot matmul)
            neighs = [jnp.dot(gf_ref[0, n], activated, preferred_element_type=jnp.float32)
                      for n in range(n_nbr)]

        # ---- attention over neighbor slots ----
        wa, wn, ba = al_wa_ref[d], al_wn_ref[d], al_b_ref[d]
        s_self = jnp.sum(self_feat * wa, axis=-1, keepdims=True)          # (L, 1)
        scores = []
        for n in range(n_nbr):
            s_n = jnp.sum(neighs[n] * wn, axis=-1, keepdims=True)         # (L, 1)
            scores.append(_leaky_relu(s_self + s_n + ba) + smask_ref[0, n])
        mx = scores[0]
        for n in range(1, n_nbr):
            mx = jnp.maximum(mx, scores[n])
        exps = [jnp.exp(s - mx) for s in scores]
        denom = exps[0]
        for n in range(1, n_nbr):
            denom = denom + exps[n]
        inv = pl.reciprocal(denom, approx=True)
        attns = [exps[n] * inv * amask_ref[0, n] for n in range(n_nbr)]
        for n in range(n_nbr):
            attn_viz_ref[0, d * n_nbr + n] = attns[n]

        weighted = attns[0] * neighs[0]
        asum = attns[0]
        for n in range(1, n_nbr):
            weighted = weighted + attns[n] * neighs[n]
            asum = asum + attns[n]
        # sum_n attn_n * (neigh_n @ W^T + b) == (sum attn*neigh) @ W^T + (sum attn)*b
        ctx = (jnp.dot(weighted, att_w_ref[d], preferred_element_type=jnp.float32)
               + asum * att_b_ref[d])
        ctx = _elu(ctx)

        # ---- GRU (packed gates, 2 matmuls) ----
        h = _gru(ctx, h, gru_wih_ref[d], gru_whh_ref[d], gru_bih_ref[d], gru_bhh_ref[d])
        activated = jnp.maximum(h, 0.0)
        atom_viz_ref[0, d + 1] = activated

    # ---- molecule readout ----
    mmask = mmask_ref[0]                      # (L, 1) atom mask
    msmask = msmask_ref[0]                    # (L, 1) mol softmax mask
    mol_unb_ref[0, 0] = jnp.sum(h * mmask, axis=0, keepdims=True)          # (1, FP)
    mol_feature = jnp.sum(activated * mmask, axis=0, keepdims=True)        # (1, FP)
    mol_viz_ref[0, 0] = mol_feature
    act_mol = jnp.maximum(mol_feature, 0.0)

    mwa, mwn, mba = mal_wa_ref[...], mal_wn_ref[...], mal_b_ref[...]
    for t in range(t_steps):
        s_self = jnp.sum(act_mol * mwa, axis=-1, keepdims=True)            # (1, 1)
        s_atom = jnp.sum(activated * mwn, axis=-1, keepdims=True)          # (L, 1)
        sc = _leaky_relu(s_self + s_atom + mba) + msmask                   # (L, 1)
        mx = jnp.max(sc, axis=0, keepdims=True)                            # (1, 1)
        e = jnp.exp(sc - mx)
        inv = pl.reciprocal(jnp.sum(e, axis=0, keepdims=True), approx=True)
        mattn = e * inv * mmask                                            # (L, 1)
        mol_attn_ref[0, t] = mattn

        weighted = jnp.sum(mattn * activated, axis=0, keepdims=True)       # (1, FP)
        asum = jnp.sum(mattn, axis=0, keepdims=True)                       # (1, 1)
        mctx = _elu(jnp.dot(weighted, matt_w_ref[...],
                            preferred_element_type=jnp.float32)
                    + asum * matt_b_ref[...])
        mol_feature = _gru(mctx, mol_feature, mgru_wih_ref[...], mgru_whh_ref[...],
                           mgru_bih_ref[...], mgru_bhh_ref[...])
        mol_unb_ref[0, t + 1] = mol_feature
        act_mol = jnp.maximum(mol_feature, 0.0)
        mol_viz_ref[0, t + 1] = act_mol

    # ---- output linear (padded to 128 lanes; wrapper slices) ----
    pred_ref[0] = (jnp.dot(mol_feature, out_w_ref[...],
                           preferred_element_type=jnp.float32)
                   + out_b_ref[...])


# ----------------------------------------------------------------------------
# One-time weight packing (transpose to (in, out), pad feature lanes to 128,
# pack GRU gates [r|z|n] along the lane axis).
# ----------------------------------------------------------------------------
def _pad_mat(m, rows, cols):
    out = jnp.zeros((rows, cols), jnp.float32)
    return out.at[:m.shape[0], :m.shape[1]].set(m.astype(jnp.float32))


def _pad_row(v, cols):
    out = jnp.zeros((1, cols), jnp.float32)
    return out.at[0, :v.shape[0]].set(v.astype(jnp.float32))


def _pack_gru(w_ih, w_hh, b_ih, b_hh, F, FP):
    wih = jnp.zeros((FP, 3 * FP), jnp.float32)
    whh = jnp.zeros((FP, 3 * FP), jnp.float32)
    bih = jnp.zeros((1, 3 * FP), jnp.float32)
    bhh = jnp.zeros((1, 3 * FP), jnp.float32)
    for g in range(3):  # torch gate order: r, z, n
        wih = wih.at[:F, g * FP:g * FP + F].set(w_ih[g * F:(g + 1) * F, :].T)
        whh = whh.at[:F, g * FP:g * FP + F].set(w_hh[g * F:(g + 1) * F, :].T)
        bih = bih.at[0, g * FP:g * FP + F].set(b_ih[g * F:(g + 1) * F])
        bhh = bhh.at[0, g * FP:g * FP + F].set(b_hh[g * F:(g + 1) * F])
    return wih, whh, bih, bhh


def pack_params(params, *, radius, feat_dim, bond_dim, fdim, odim):
    A, Bd, F = feat_dim, bond_dim, fdim
    FP = _round_up(fdim)
    OP = _round_up(odim)
    p = {}
    p['afc_w'] = _pad_mat(params['atom_fc']['w'].T, A, FP)
    p['afc_b'] = _pad_row(params['atom_fc']['b'], FP)
    nw = params['neighbor_fc']['w']                       # (F, A+Bd)
    p['nfc_wa'] = _pad_mat(nw[:, :A].T, A, FP)
    p['nfc_wb'] = _pad_mat(nw[:, A:].T, Bd, FP)
    p['nfc_b'] = _pad_row(params['neighbor_fc']['b'], FP)

    al_wa, al_wn, al_b, att_w, att_b = [], [], [], [], []
    g_wih, g_whh, g_bih, g_bhh = [], [], [], []
    for r in range(radius):
        aw = params['align'][r]['w']                      # (1, 2F)
        al_wa.append(_pad_row(aw[0, :F], FP))
        al_wn.append(_pad_row(aw[0, F:], FP))
        al_b.append(params['align'][r]['b'].reshape(1, 1).astype(jnp.float32))
        att_w.append(_pad_mat(params['attend'][r]['w'].T, FP, FP))
        att_b.append(_pad_row(params['attend'][r]['b'], FP))
        g = params['gru'][r]
        wih, whh, bih, bhh = _pack_gru(g['w_ih'], g['w_hh'], g['b_ih'], g['b_hh'], F, FP)
        g_wih.append(wih); g_whh.append(whh); g_bih.append(bih); g_bhh.append(bhh)
    p['al_wa'] = jnp.stack(al_wa); p['al_wn'] = jnp.stack(al_wn); p['al_b'] = jnp.stack(al_b)
    p['att_w'] = jnp.stack(att_w); p['att_b'] = jnp.stack(att_b)
    p['gru_wih'] = jnp.stack(g_wih); p['gru_whh'] = jnp.stack(g_whh)
    p['gru_bih'] = jnp.stack(g_bih); p['gru_bhh'] = jnp.stack(g_bhh)

    maw = params['mol_align']['w']
    p['mal_wa'] = _pad_row(maw[0, :F], FP)
    p['mal_wn'] = _pad_row(maw[0, F:], FP)
    p['mal_b'] = params['mol_align']['b'].reshape(1, 1).astype(jnp.float32)
    p['matt_w'] = _pad_mat(params['mol_attend']['w'].T, FP, FP)
    p['matt_b'] = _pad_row(params['mol_attend']['b'], FP)
    mg = params['mol_gru']
    (p['mgru_wih'], p['mgru_whh'],
     p['mgru_bih'], p['mgru_bhh']) = _pack_gru(mg['w_ih'], mg['w_hh'],
                                               mg['b_ih'], mg['b_hh'], F, FP)
    p['out_w'] = _pad_mat(params['output']['w'].T, FP, OP)
    p['out_b'] = _pad_row(params['output']['b'], OP)
    return p


# ----------------------------------------------------------------------------
# Forward pass wrapper (one fused pallas_call, grid over molecules).
# ----------------------------------------------------------------------------
def fingerprint_forward(packed, atom_list, bond_list, atom_degree_list,
                        bond_degree_list, atom_mask, *, radius, T, fdim, odim):
    B, L, A = atom_list.shape
    NB, Bd = bond_list.shape[1], bond_list.shape[2]
    N = atom_degree_list.shape[-1]
    FP = packed['afc_w'].shape[1]
    OP = packed['out_w'].shape[1]

    # One-hot gather matrices: replace every HBM gather (incl. per-round ones)
    # with in-kernel matmuls.  gf[b, n, l, j] = 1 iff neighbor slot n of atom l
    # is atom j of the same molecule.
    gf = jnp.transpose(jax.nn.one_hot(atom_degree_list, L, dtype=jnp.float32),
                       (0, 2, 1, 3))                               # (B, N, L, L)
    gb = jnp.transpose(jax.nn.one_hot(bond_degree_list, NB, dtype=jnp.float32),
                       (0, 2, 1, 3))                               # (B, N, L, NB)

    pad_nbr = (atom_degree_list == L - 1)
    smask = jnp.transpose(jnp.where(pad_nbr, -9e8, 0.0).astype(jnp.float32),
                          (0, 2, 1))[..., None]                    # (B, N, L, 1)
    amask = jnp.transpose(jnp.where(pad_nbr, 0.0, 1.0).astype(jnp.float32),
                          (0, 2, 1))[..., None]                    # (B, N, L, 1)
    mmask = atom_mask.astype(jnp.float32)[..., None]               # (B, L, 1)
    msmask = jnp.where(mmask == 0, -9e8, 0.0).astype(jnp.float32)  # (B, L, 1)

    def perb(shape):
        blk = (1,) + tuple(shape[1:])
        return pl.BlockSpec(blk, lambda b: (b,) + (0,) * (len(shape) - 1))

    def full(shape):
        blk = tuple(shape)
        return pl.BlockSpec(blk, lambda b: (0,) * len(shape))

    in_arrays = [
        atom_list.astype(jnp.float32), bond_list.astype(jnp.float32), gf, gb,
        smask, amask, mmask, msmask,
        packed['afc_w'], packed['afc_b'], packed['nfc_wa'], packed['nfc_wb'], packed['nfc_b'],
        packed['al_wa'], packed['al_wn'], packed['al_b'], packed['att_w'], packed['att_b'],
        packed['gru_wih'], packed['gru_whh'], packed['gru_bih'], packed['gru_bhh'],
        packed['mal_wa'], packed['mal_wn'], packed['mal_b'], packed['matt_w'], packed['matt_b'],
        packed['mgru_wih'], packed['mgru_whh'], packed['mgru_bih'], packed['mgru_bhh'],
        packed['out_w'], packed['out_b'],
    ]
    in_specs = [perb(a.shape) for a in in_arrays[:8]]
    in_specs += [full(a.shape) for a in in_arrays[8:]]

    out_shapes = (
        jax.ShapeDtypeStruct((B, radius + 1, L, FP), jnp.float32),   # atom feature viz (padded)
        jax.ShapeDtypeStruct((B, radius * N, L, 1), jnp.float32),    # atom attention viz
        jax.ShapeDtypeStruct((B, T + 1, 1, FP), jnp.float32),        # mol feature viz (relu)
        jax.ShapeDtypeStruct((B, T + 1, 1, FP), jnp.float32),        # mol feature unbounded
        jax.ShapeDtypeStruct((B, T, L, 1), jnp.float32),             # mol attention viz
        jax.ShapeDtypeStruct((B, 1, OP), jnp.float32),               # prediction (padded)
    )
    out_specs = tuple(perb(s.shape) for s in out_shapes)

    atom_viz, attn_viz, mol_viz, mol_unb, mol_attn, pred = pl.pallas_call(
        _fingerprint_kernel,
        grid=(B,),
        out_shape=out_shapes,
        in_specs=in_specs,
        out_specs=out_specs,
        compiler_params=pltpu.CompilerParams(
            dimension_semantics=("parallel",)),   # molecules are independent
    )(*in_arrays)

    # Strip lane padding / reshape to the PyTorch return structure.
    F, O = fdim, odim
    attn5 = attn_viz.reshape(B, radius, N, L, 1)
    atom_feature_viz = [atom_viz[:, d, :, :F] for d in range(radius + 1)]
    atom_attention_weight_viz = [jnp.transpose(attn5[:, d], (0, 2, 1, 3))
                                 for d in range(radius)]
    mol_feature_viz = [mol_viz[:, t, 0, :F] for t in range(T + 1)]
    mol_feature_unbounded_viz = [mol_unb[:, t, 0, :F] for t in range(T + 1)]
    mol_attention_weight_viz = [mol_attn[:, t] for t in range(T)]
    mol_prediction = pred[:, 0, :O]
    return (atom_feature_viz, atom_attention_weight_viz, mol_feature_viz,
            mol_feature_unbounded_viz, mol_attention_weight_viz, mol_prediction)


# ----------------------------------------------------------------------------
# Parameter construction (deterministic, PyTorch-style uniform init)
# ----------------------------------------------------------------------------
def make_linear_params(key, out_dim, in_dim):
    k1, k2 = jax.random.split(key)
    bound = 1.0 / (in_dim ** 0.5)
    return {'w': jax.random.uniform(k1, (out_dim, in_dim), jnp.float32, -bound, bound),
            'b': jax.random.uniform(k2, (out_dim,), jnp.float32, -bound, bound)}


def make_gru_params(key, hidden):
    ks = jax.random.split(key, 4)
    bound = 1.0 / (hidden ** 0.5)
    return {
        'w_ih': jax.random.uniform(ks[0], (3 * hidden, hidden), jnp.float32, -bound, bound),
        'w_hh': jax.random.uniform(ks[1], (3 * hidden, hidden), jnp.float32, -bound, bound),
        'b_ih': jax.random.uniform(ks[2], (3 * hidden,), jnp.float32, -bound, bound),
        'b_hh': jax.random.uniform(ks[3], (3 * hidden,), jnp.float32, -bound, bound),
    }


def init_params(key, radius, input_feature_dim, input_bond_dim,
                fingerprint_dim, output_units_num):
    keys = iter(jax.random.split(key, 6 + 3 * radius))
    return {
        'atom_fc': make_linear_params(next(keys), fingerprint_dim, input_feature_dim),
        'neighbor_fc': make_linear_params(next(keys), fingerprint_dim,
                                          input_feature_dim + input_bond_dim),
        'align': [make_linear_params(next(keys), 1, 2 * fingerprint_dim)
                  for _ in range(radius)],
        'attend': [make_linear_params(next(keys), fingerprint_dim, fingerprint_dim)
                   for _ in range(radius)],
        'gru': [make_gru_params(next(keys), fingerprint_dim) for _ in range(radius)],
        'mol_align': make_linear_params(next(keys), 1, 2 * fingerprint_dim),
        'mol_attend': make_linear_params(next(keys), fingerprint_dim, fingerprint_dim),
        'mol_gru': make_gru_params(next(keys), fingerprint_dim),
        'output': make_linear_params(next(keys), output_units_num, fingerprint_dim),
    }


# ----------------------------------------------------------------------------
if __name__ == "__main__":
    radius, T = 2, 2
    input_feature_dim = 16
    input_bond_dim = 8
    fingerprint_dim = 32
    output_units_num = 4
    # p_dropout = 0.0 -> dropout is the identity in this inference kernel

    B, L, N = 2, 8, 4
    num_bonds = 12

    key = jax.random.PRNGKey(0)
    kp, kd = jax.random.split(key)
    params = init_params(kp, radius, input_feature_dim, input_bond_dim,
                         fingerprint_dim, output_units_num)
    packed = pack_params(params, radius=radius, feat_dim=input_feature_dim,
                         bond_dim=input_bond_dim, fdim=fingerprint_dim,
                         odim=output_units_num)

    kd1, kd2, kd3, kd4 = jax.random.split(kd, 4)
    atom_list = jax.random.normal(kd1, (B, L, input_feature_dim), jnp.float32)
    bond_list = jax.random.normal(kd2, (B, num_bonds, input_bond_dim), jnp.float32)
    atom_degree_list = jax.random.randint(kd3, (B, L, N), 0, L, dtype=jnp.int32)
    bond_degree_list = jax.random.randint(kd4, (B, L, N), 0, num_bonds, dtype=jnp.int32)
    atom_mask = jnp.concatenate([jnp.ones((B, L - 2), jnp.float32),
                                 jnp.zeros((B, 2), jnp.float32)], axis=1)

    fwd = jax.jit(functools.partial(fingerprint_forward, radius=radius, T=T,
                                    fdim=fingerprint_dim, odim=output_units_num))
    outs = fwd(packed, atom_list, bond_list, atom_degree_list,
               bond_degree_list, atom_mask)
    jax.block_until_ready(outs)
    print("KERNEL_OK")
</pallas_src>

<mosaic_0001>
module attributes {stable_mosaic.version = 11 : i64} {
  func.func @_fingerprint_kernel(%arg0: i32, %arg1: memref<1x8x16xf32, #tpu.memory_space<vmem>>, %arg2: memref<1x12x8xf32, #tpu.memory_space<vmem>>, %arg3: memref<1x4x8x8xf32, #tpu.memory_space<vmem>>, %arg4: memref<1x4x8x12xf32, #tpu.memory_space<vmem>>, %arg5: memref<1x4x8x1xf32, #tpu.memory_space<vmem>>, %arg6: memref<1x4x8x1xf32, #tpu.memory_space<vmem>>, %arg7: memref<1x8x1xf32, #tpu.memory_space<vmem>>, %arg8: memref<1x8x1xf32, #tpu.memory_space<vmem>>, %arg9: memref<16x128xf32, #tpu.memory_space<vmem>>, %arg10: memref<1x128xf32, #tpu.memory_space<vmem>>, %arg11: memref<16x128xf32, #tpu.memory_space<vmem>>, %arg12: memref<8x128xf32, #tpu.memory_space<vmem>>, %arg13: memref<1x128xf32, #tpu.memory_space<vmem>>, %arg14: memref<2x1x128xf32, #tpu.memory_space<vmem>>, %arg15: memref<2x1x128xf32, #tpu.memory_space<vmem>>, %arg16: memref<2x1x1xf32, #tpu.memory_space<vmem>>, %arg17: memref<2x128x128xf32, #tpu.memory_space<vmem>>, %arg18: memref<2x1x128xf32, #tpu.memory_space<vmem>>, %arg19: memref<2x128x384xf32, #tpu.memory_space<vmem>>, %arg20: memref<2x128x384xf32, #tpu.memory_space<vmem>>, %arg21: memref<2x1x384xf32, #tpu.memory_space<vmem>>, %arg22: memref<2x1x384xf32, #tpu.memory_space<vmem>>, %arg23: memref<1x128xf32, #tpu.memory_space<vmem>>, %arg24: memref<1x128xf32, #tpu.memory_space<vmem>>, %arg25: memref<1x1xf32, #tpu.memory_space<vmem>>, %arg26: memref<128x128xf32, #tpu.memory_space<vmem>>, %arg27: memref<1x128xf32, #tpu.memory_space<vmem>>, %arg28: memref<128x384xf32, #tpu.memory_space<vmem>>, %arg29: memref<128x384xf32, #tpu.memory_space<vmem>>, %arg30: memref<1x384xf32, #tpu.memory_space<vmem>>, %arg31: memref<1x384xf32, #tpu.memory_space<vmem>>, %arg32: memref<128x128xf32, #tpu.memory_space<vmem>>, %arg33: memref<1x128xf32, #tpu.memory_space<vmem>>, %arg34: memref<1x3x8x128xf32, #tpu.memory_space<vmem>>, %arg35: memref<1x8x8x1xf32, #tpu.memory_space<vmem>>, %arg36: memref<1x3x1x128xf32, #tpu.memory_space<vmem>>, %arg37: memref<1x3x1x128xf32, #tpu.memory_space<vmem>>, %arg38: memref<1x2x8x1xf32, #tpu.memory_space<vmem>>, %arg39: memref<1x1x128xf32, #tpu.memory_space<vmem>>) attributes {dimension_semantics = [#tpu.dimension_semantics<parallel>], iteration_bounds = array<i64: 2>, scalar_prefetch = 0 : i64, scratch_operands = 0 : i64, tpu.core_type = #tpu.core_type<tc>, window_params = [{transform_indices = @transform_0, window_bounds = array<i64: 1, 8, 16>}, {transform_indices = @transform_1, window_bounds = array<i64: 1, 12, 8>}, {transform_indices = @transform_2, window_bounds = array<i64: 1, 4, 8, 8>}, {transform_indices = @transform_3, window_bounds = array<i64: 1, 4, 8, 12>}, {transform_indices = @transform_4, window_bounds = array<i64: 1, 4, 8, 1>}, {transform_indices = @transform_5, window_bounds = array<i64: 1, 4, 8, 1>}, {transform_indices = @transform_6, window_bounds = array<i64: 1, 8, 1>}, {transform_indices = @transform_7, window_bounds = array<i64: 1, 8, 1>}, {pipeline_mode = #tpu.pipeline_mode<synchronous>, transform_indices = @transform_8, window_bounds = array<i64: 16, 128>}, {pipeline_mode = #tpu.pipeline_mode<synchronous>, transform_indices = @transform_9, window_bounds = array<i64: 1, 128>}, {pipeline_mode = #tpu.pipeline_mode<synchronous>, transform_indices = @transform_10, window_bounds = array<i64: 16, 128>}, {pipeline_mode = #tpu.pipeline_mode<synchronous>, transform_indices = @transform_11, window_bounds = array<i64: 8, 128>}, {pipeline_mode = #tpu.pipeline_mode<synchronous>, transform_indices = @transform_12, window_bounds = array<i64: 1, 128>}, {pipeline_mode = #tpu.pipeline_mode<synchronous>, transform_indices = @transform_13, window_bounds = array<i64: 2, 1, 128>}, {pipeline_mode = #tpu.pipeline_mode<synchronous>, transform_indices = @transform_14, window_bounds = array<i64: 2, 1, 128>}, {pipeline_mode = #tpu.pipeline_mode<synchronous>, transform_indices = @transform_15, window_bounds = array<i64: 2, 1, 1>}, {pipeline_mode = #tpu.pipeline_mode<synchronous>, transform_indices = @transform_16, window_bounds = array<i64: 2, 128, 128>}, {pipeline_mode = #tpu.pipeline_mode<synchronous>, transform_indices = @transform_17, window_bounds = array<i64: 2, 1, 128>}, {pipeline_mode = #tpu.pipeline_mode<synchronous>, transform_indices = @transform_18, window_bounds = array<i64: 2, 128, 384>}, {pipeline_mode = #tpu.pipeline_mode<synchronous>, transform_indices = @transform_19, window_bounds = array<i64: 2, 128, 384>}, {pipeline_mode = #tpu.pipeline_mode<synchronous>, transform_indices = @transform_20, window_bounds = array<i64: 2, 1, 384>}, {pipeline_mode = #tpu.pipeline_mode<synchronous>, transform_indices = @transform_21, window_bounds = array<i64: 2, 1, 384>}, {pipeline_mode = #tpu.pipeline_mode<synchronous>, transform_indices = @transform_22, window_bounds = array<i64: 1, 128>}, {pipeline_mode = #tpu.pipeline_mode<synchronous>, transform_indices = @transform_23, window_bounds = array<i64: 1, 128>}, {pipeline_mode = #tpu.pipeline_mode<synchronous>, transform_indices = @transform_24, window_bounds = array<i64: 1, 1>}, {pipeline_mode = #tpu.pipeline_mode<synchronous>, transform_indices = @transform_25, window_bounds = array<i64: 128, 128>}, {pipeline_mode = #tpu.pipeline_mode<synchronous>, transform_indices = @transform_26, window_bounds = array<i64: 1, 128>}, {pipeline_mode = #tpu.pipeline_mode<synchronous>, transform_indices = @transform_27, window_bounds = array<i64: 128, 384>}, {pipeline_mode = #tpu.pipeline_mode<synchronous>, transform_indices = @transform_28, window_bounds = array<i64: 128, 384>}, {pipeline_mode = #tpu.pipeline_mode<synchronous>, transform_indices = @transform_29, window_bounds = array<i64: 1, 384>}, {pipeline_mode = #tpu.pipeline_mode<synchronous>, transform_indices = @transform_30, window_bounds = array<i64: 1, 384>}, {pipeline_mode = #tpu.pipeline_mode<synchronous>, transform_indices = @transform_31, window_bounds = array<i64: 128, 128>}, {pipeline_mode = #tpu.pipeline_mode<synchronous>, transform_indices = @transform_32, window_bounds = array<i64: 1, 128>}, {transform_indices = @transform_33, window_bounds = array<i64: 1, 3, 8, 128>}, {transform_indices = @transform_34, window_bounds = array<i64: 1, 8, 8, 1>}, {transform_indices = @transform_35, window_bounds = array<i64: 1, 3, 1, 128>}, {transform_indices = @transform_36, window_bounds = array<i64: 1, 3, 1, 128>}, {transform_indices = @transform_37, window_bounds = array<i64: 1, 2, 8, 1>}, {transform_indices = @transform_38, window_bounds = array<i64: 1, 1, 128>}]} {
    %c0 = arith.constant 0 : index
    %c0_0 = arith.constant 0 : index
    %c0_1 = arith.constant 0 : index
    %0 = vector.load %arg1[%c0, %c0_0, %c0_1] : memref<1x8x16xf32, #tpu.memory_space<vmem>>, vector<1x8x16xf32>
    %1 = vector.shape_cast %0 : vector<1x8x16xf32> to vector<8x16xf32>
    %c0_2 = arith.constant 0 : index
    %c0_3 = arith.constant 0 : index
    %c0_4 = arith.constant 0 : index
    %2 = vector.load %arg2[%c0_2, %c0_3, %c0_4] : memref<1x12x8xf32, #tpu.memory_space<vmem>>, vector<1x12x8xf32>
    %3 = vector.shape_cast %2 : vector<1x12x8xf32> to vector<12x8xf32>
    %c0_5 = arith.constant 0 : index
    %c0_6 = arith.constant 0 : index
    %4 = vector.load %arg9[%c0_5, %c0_6] : memref<16x128xf32, #tpu.memory_space<vmem>>, vector<16x128xf32>
    %cst = arith.constant dense<0.000000e+00> : vector<8x128xf32>
    %5 = tpu.matmul %1, %4, %cst {dimension_numbers = #tpu.dot_dimension_numbers<[1], [0], [0], [1], [0, 0, 1, 1], [], []>} : vector<8x16xf32>, vector<16x128xf32>, vector<8x128xf32> -> vector<8x128xf32>
    %c0_7 = arith.constant 0 : index
    %c0_8 = arith.constant 0 : index
    %6 = vector.load %arg10[%c0_7, %c0_8] : memref<1x128xf32, #tpu.memory_space<vmem>>, vector<1x128xf32>
    %7 = vector.broadcast %6 : vector<1x128xf32> to vector<8x128xf32>
    %8 = arith.addf %5, %7 : vector<8x128xf32>
    %c0_9 = arith.constant 0 : index
    %c0_10 = arith.constant 0 : index
    %c0_11 = arith.constant 0 : index
    %c0_12 = arith.constant 0 : index
    %9 = vector.load %arg34[%c0_9, %c0_10, %c0_11, %c0_12] : memref<1x3x8x128xf32, #tpu.memory_space<vmem>>, vector<1x1x8x128xf32>
    %10 = vector.shape_cast %9 : vector<1x1x8x128xf32> to vector<8x128xf32>
    %11 = vector.shape_cast %8 : vector<8x128xf32> to vector<1x1x8x128xf32>
    tpu.vector_store %arg34[%c0_9, %c0_10, %c0_11, %c0_12], %11 {strides = array<i32>} : memref<1x3x8x128xf32, #tpu.memory_space<vmem>>, vector<1x1x8x128xf32>,
    %cst_13 = arith.constant 0.000000e+00 : f32
    %12 = vector.broadcast %cst_13 : f32 to vector<8x128xf32>
    %13 = arith.cmpf oge, %8, %12 : vector<8x128xf32>
    %cst_14 = arith.constant 0.00999999977 : f32
    %14 = vector.broadcast %cst_14 : f32 to vector<8x128xf32>
    %15 = arith.mulf %14, %8 : vector<8x128xf32>
    %16 = arith.select %13, %8, %15 : vector<8x128xi1>, vector<8x128xf32>
    %c0_15 = arith.constant 0 : index
    %c0_16 = arith.constant 0 : index
    %c0_17 = arith.constant 0 : index
    %c0_18 = arith.constant 0 : index
    %17 = vector.load %arg3[%c0_15, %c0_16, %c0_17, %c0_18] : memref<1x4x8x8xf32, #tpu.memory_space<vmem>>, vector<1x1x8x8xf32>
    %18 = vector.shape_cast %17 : vector<1x1x8x8xf32> to vector<8x8xf32>
    %cst_19 = arith.constant dense<0.000000e+00> : vector<8x16xf32>
    %19 = tpu.matmul %18, %1, %cst_19 {dimension_numbers = #tpu.dot_dimension_numbers<[1], [0], [0], [1], [0, 0, 1, 1], [], []>} : vector<8x8xf32>, vector<8x16xf32>, vector<8x16xf32> -> vector<8x16xf32>
    %c0_20 = arith.constant 0 : index
    %c0_21 = arith.constant 0 : index
    %c0_22 = arith.constant 0 : index
    %c0_23 = arith.constant 0 : index
    %20 = vector.load %arg4[%c0_20, %c0_21, %c0_22, %c0_23] : memref<1x4x8x12xf32, #tpu.memory_space<vmem>>, vector<1x1x8x12xf32>
    %21 = vector.shape_cast %20 : vector<1x1x8x12xf32> to vector<8x12xf32>
    %cst_24 = arith.constant dense<0.000000e+00> : vector<8x8xf32>
    %22 = tpu.matmul %21, %3, %cst_24 {dimension_numbers = #tpu.dot_dimension_numbers<[1], [0], [0], [1], [0, 0, 1, 1], [], []>} : vector<8x12xf32>, vector<12x8xf32>, vector<8x8xf32> -> vector<8x8xf32>
    %c0_25 = arith.constant 0 : index
    %c0_26 = arith.constant 0 : index
    %23 = vector.load %arg11[%c0_25, %c0_26] : memref<16x128xf32, #tpu.memory_space<vmem>>, vector<16x128xf32>
    %cst_27 = arith.constant dense<0.000000e+00> : vector<8x128xf32>
    %24 = tpu.matmul %19, %23, %cst_27 {dimension_numbers = #tpu.dot_dimension_numbers<[1], [0], [0], [1], [0, 0, 1, 1], [], []>} : vector<8x16xf32>, vector<16x128xf32>, vector<8x128xf32> -> vector<8x128xf32>
    %c0_28 = arith.constant 0 : index
    %c0_29 = arith.constant 0 : index
    %25 = vector.load %arg12[%c0_28, %c0_29] : memref<8x128xf32, #tpu.memory_space<vmem>>, vector<8x128xf32>
    %cst_30 = arith.constant dense<0.000000e+00> : vector<8x128xf32>
    %26 = tpu.matmul %22, %25, %cst_30 {dimension_numbers = #tpu.dot_dimension_numbers<[1], [0], [0], [1], [0, 0, 1, 1], [], []>} : vector<8x8xf32>, vector<8x128xf32>, vector<8x128xf32> -> vector<8x128xf32>
    %27 = arith.addf %24, %26 : vector<8x128xf32>
    %c0_31 = arith.constant 0 : index
    %c0_32 = arith.constant 0 : index
    %28 = vector.load %arg13[%c0_31, %c0_32] : memref<1x128xf32, #tpu.memory_space<vmem>>, vector<1x128xf32>
    %29 = vector.broadcast %28 : vector<1x128xf32> to vector<8x128xf32>
    %30 = arith.addf %27, %29 : vector<8x128xf32>
    %cst_33 = arith.constant 0.000000e+00 : f32
    %31 = vector.broadcast %cst_33 : f32 to vector<8x128xf32>
    %32 = arith.cmpf oge, %30, %31 : vector<8x128xf32>
    %cst_34 = arith.constant 0.00999999977 : f32
    %33 = vector.broadcast %cst_34 : f32 to vector<8x128xf32>
    %34 = arith.mulf %33, %30 : vector<8x128xf32>
    %35 = arith.select %32, %30, %34 : vector<8x128xi1>, vector<8x128xf32>
    %c0_35 = arith.constant 0 : index
    %c1 = arith.constant 1 : index
    %c0_36 = arith.constant 0 : index
    %c0_37 = arith.constant 0 : index
    %36 = vector.load %arg3[%c0_35, %c1, %c0_36, %c0_37] : memref<1x4x8x8xf32, #tpu.memory_space<vmem>>, vector<1x1x8x8xf32>
    %37 = vector.shape_cast %36 : vector<1x1x8x8xf32> to vector<8x8xf32>
    %cst_38 = arith.constant dense<0.000000e+00> : vector<8x16xf32>
    %38 = tpu.matmul %37, %1, %cst_38 {dimension_numbers = #tpu.dot_dimension_numbers<[1], [0], [0], [1], [0, 0, 1, 1], [], []>} : vector<8x8xf32>, vector<8x16xf32>, vector<8x16xf32> -> vector<8x16xf32>
    %c0_39 = arith.constant 0 : index
    %c1_40 = arith.constant 1 : index
    %c0_41 = arith.constant 0 : index
    %c0_42 = arith.constant 0 : index
    %39 = vector.load %arg4[%c0_39, %c1_40, %c0_41, %c0_42] : memref<1x4x8x12xf32, #tpu.memory_space<vmem>>, vector<1x1x8x12xf32>
    %40 = vector.shape_cast %39 : vector<1x1x8x12xf32> to vector<8x12xf32>
    %cst_43 = arith.constant dense<0.000000e+00> : vector<8x8xf32>
    %41 = tpu.matmul %40, %3, %cst_43 {dimension_numbers = #tpu.dot_dimension_numbers<[1], [0], [0], [1], [0, 0, 1, 1], [], []>} : vector<8x12xf32>, vector<12x8xf32>, vector<8x8xf32> -> vector<8x8xf32>
    %c0_44 = arith.constant 0 : index
    %c0_45 = arith.constant 0 : index
    %42 = vector.load %arg11[%c0_44, %c0_45] : memref<16x128xf32, #tpu.memory_space<vmem>>, vector<16x128xf32>
    %cst_46 = arith.constant dense<0.000000e+00> : vector<8x128xf32>
    %43 = tpu.matmul %38, %42, %cst_46 {dimension_numbers = #tpu.dot_dimension_numbers<[1], [0], [0], [1], [0, 0, 1, 1], [], []>} : vector<8x16xf32>, vector<16x128xf32>, vector<8x128xf32> -> vector<8x128xf32>
    %c0_47 = arith.constant 0 : index
    %c0_48 = arith.constant 0 : index
    %44 = vector.load %arg12[%c0_47, %c0_48] : memref<8x128xf32, #tpu.memory_space<vmem>>, vector<8x128xf32>
    %cst_49 = arith.constant dense<0.000000e+00> : vector<8x128xf32>
    %45 = tpu.matmul %41, %44, %cst_49 {dimension_numbers = #tpu.dot_dimension_numbers<[1], [0], [0], [1], [0, 0, 1, 1], [], []>} : vector<8x8xf32>, vector<8x128xf32>, vector<8x128xf32> -> vector<8x128xf32>
    %46 = arith.addf %43, %45 : vector<8x128xf32>
    %c0_50 = arith.constant 0 : index
    %c0_51 = arith.constant 0 : index
    %47 = vector.load %arg13[%c0_50, %c0_51] : memref<1x128xf32, #tpu.memory_space<vmem>>, vector<1x128xf32>
    %48 = vector.broadcast %47 : vector<1x128xf32> to vector<8x128xf32>
    %49 = arith.addf %46, %48 : vector<8x128xf32>
    %cst_52 = arith.constant 0.000000e+00 : f32
    %50 = vector.broadcast %cst_52 : f32 to vector<8x128xf32>
    %51 = arith.cmpf oge, %49, %50 : vector<8x128xf32>
    %cst_53 = arith.constant 0.00999999977 : f32
    %52 = vector.broadcast %cst_53 : f32 to vector<8x128xf32>
    %53 = arith.mulf %52, %49 : vector<8x128xf32>
    %54 = arith.select %51, %49, %53 : vector<8x128xi1>, vector<8x128xf32>
    %c0_54 = arith.constant 0 : index
    %c2 = arith.constant 2 : index
    %c0_55 = arith.constant 0 : index
    %c0_56 = arith.constant 0 : index
    %55 = vector.load %arg3[%c0_54, %c2, %c0_55, %c0_56] : memref<1x4x8x8xf32, #tpu.memory_space<vmem>>, vector<1x1x8x8xf32>
    %56 = vector.shape_cast %55 : vector<1x1x8x8xf32> to vector<8x8xf32>
    %cst_57 = arith.constant dense<0.000000e+00> : vector<8x16xf32>
    %57 = tpu.matmul %56, %1, %cst_57 {dimension_numbers = #tpu.dot_dimension_numbers<[1], [0], [0], [1], [0, 0, 1, 1], [], []>} : vector<8x8xf32>, vector<8x16xf32>, vector<8x16xf32> -> vector<8x16xf32>
    %c0_58 = arith.constant 0 : index
    %c2_59 = arith.constant 2 : index
    %c0_60 = arith.constant 0 : index
    %c0_61 = arith.constant 0 : index
    %58 = vector.load %arg4[%c0_58, %c2_59, %c0_60, %c0_61] : memref<1x4x8x12xf32, #tpu.memory_space<vmem>>, vector<1x1x8x12xf32>
    %59 = vector.shape_cast %58 : vector<1x1x8x12xf32> to vector<8x12xf32>
    %cst_62 = arith.constant dense<0.000000e+00> : vector<8x8xf32>
    %60 = tpu.matmul %59, %3, %cst_62 {dimension_numbers = #tpu.dot_dimension_numbers<[1], [0], [0], [1], [0, 0, 1, 1], [], []>} : vector<8x12xf32>, vector<12x8xf32>, vector<8x8xf32> -> vector<8x8xf32>
    %c0_63 = arith.constant 0 : index
    %c0_64 = arith.constant 0 : index
    %61 = vector.load %arg11[%c0_63, %c0_64] : memref<16x128xf32, #tpu.memory_space<vmem>>, vector<16x128xf32>
    %cst_65 = arith.constant dense<0.000000e+00> : vector<8x128xf32>
    %62 = tpu.matmul %57, %61, %cst_65 {dimension_numbers = #tpu.dot_dimension_numbers<[1], [0], [0], [1], [0, 0, 1, 1], [], []>} : vector<8x16xf32>, vector<16x128xf32>, vector<8x128xf32> -> vector<8x128xf32>
    %c0_66 = arith.constant 0 : index
    %c0_67 = arith.constant 0 : index
    %63 = vector.load %arg12[%c0_66, %c0_67] : memref<8x128xf32, #tpu.memory_space<vmem>>, vector<8x128xf32>
    %cst_68 = arith.constant dense<0.000000e+00> : vector<8x128xf32>
    %64 = tpu.matmul %60, %63, %cst_68 {dimension_numbers = #tpu.dot_dimension_numbers<[1], [0], [0], [1], [0, 0, 1, 1], [], []>} : vector<8x8xf32>, vector<8x128xf32>, vector<8x128xf32> -> vector<8x128xf32>
    %65 = arith.addf %62, %64 : vector<8x128xf32>
    %c0_69 = arith.constant 0 : index
    %c0_70 = arith.constant 0 : index
    %66 = vector.load %arg13[%c0_69, %c0_70] : memref<1x128xf32, #tpu.memory_space<vmem>>, vector<1x128xf32>
    %67 = vector.broadcast %66 : vector<1x128xf32> to vector<8x128xf32>
    %68 = arith.addf %65, %67 : vector<8x128xf32>
    %cst_71 = arith.constant 0.000000e+00 : f32
    %69 = vector.broadcast %cst_71 : f32 to vector<8x128xf32>
    %70 = arith.cmpf oge, %68, %69 : vector<8x128xf32>
    %cst_72 = arith.constant 0.00999999977 : f32
    %71 = vector.broadcast %cst_72 : f32 to vector<8x128xf32>
    %72 = arith.mulf %71, %68 : vector<8x128xf32>
    %73 = arith.select %70, %68, %72 : vector<8x128xi1>, vector<8x128xf32>
    %c0_73 = arith.constant 0 : index
    %c3 = arith.constant 3 : index
    %c0_74 = arith.constant 0 : index
    %c0_75 = arith.constant 0 : index
    %74 = vector.load %arg3[%c0_73, %c3, %c0_74, %c0_75] : memref<1x4x8x8xf32, #tpu.memory_space<vmem>>, vector<1x1x8x8xf32>
    %75 = vector.shape_cast %74 : vector<1x1x8x8xf32> to vector<8x8xf32>
    %cst_76 = arith.constant dense<0.000000e+00> : vector<8x16xf32>
    %76 = tpu.matmul %75, %1, %cst_76 {dimension_numbers = #tpu.dot_dimension_numbers<[1], [0], [0], [1], [0, 0, 1, 1], [], []>} : vector<8x8xf32>, vector<8x16xf32>, vector<8x16xf32> -> vector<8x16xf32>
    %c0_77 = arith.constant 0 : index
    %c3_78 = arith.constant 3 : index
    %c0_79 = arith.constant 0 : index
    %c0_80 = arith.constant 0 : index
    %77 = vector.load %arg4[%c0_77, %c3_78, %c0_79, %c0_80] : memref<1x4x8x12xf32, #tpu.memory_space<vmem>>, vector<1x1x8x12xf32>
    %78 = vector.shape_cast %77 : vector<1x1x8x12xf32> to vector<8x12xf32>
    %cst_81 = arith.constant dense<0.000000e+00> : vector<8x8xf32>
    %79 = tpu.matmul %78, %3, %cst_81 {dimension_numbers = #tpu.dot_dimension_numbers<[1], [0], [0], [1], [0, 0, 1, 1], [], []>} : vector<8x12xf32>, vector<12x8xf32>, vector<8x8xf32> -> vector<8x8xf32>
    %c0_82 = arith.constant 0 : index
    %c0_83 = arith.constant 0 : index
    %80 = vector.load %arg11[%c0_82, %c0_83] : memref<16x128xf32, #tpu.memory_space<vmem>>, vector<16x128xf32>
    %cst_84 = arith.constant dense<0.000000e+00> : vector<8x128xf32>
    %81 = tpu.matmul %76, %80, %cst_84 {dimension_numbers = #tpu.dot_dimension_numbers<[1], [0], [0], [1], [0, 0, 1, 1], [], []>} : vector<8x16xf32>, vector<16x128xf32>, vector<8x128xf32> -> vector<8x128xf32>
    %c0_85 = arith.constant 0 : index
    %c0_86 = arith.constant 0 : index
    %82 = vector.load %arg12[%c0_85, %c0_86] : memref<8x128xf32, #tpu.memory_space<vmem>>, vector<8x128xf32>
    %cst_87 = arith.constant dense<0.000000e+00> : vector<8x128xf32>
    %83 = tpu.matmul %79, %82, %cst_87 {dimension_numbers = #tpu.dot_dimension_numbers<[1], [0], [0], [1], [0, 0, 1, 1], [], []>} : vector<8x8xf32>, vector<8x128xf32>, vector<8x128xf32> -> vector<8x128xf32>
    %84 = arith.addf %81, %83 : vector<8x128xf32>
    %c0_88 = arith.constant 0 : index
    %c0_89 = arith.constant 0 : index
    %85 = vector.load %arg13[%c0_88, %c0_89] : memref<1x128xf32, #tpu.memory_space<vmem>>, vector<1x128xf32>
    %86 = vector.broadcast %85 : vector<1x128xf32> to vector<8x128xf32>
    %87 = arith.addf %84, %86 : vector<8x128xf32>
    %cst_90 = arith.constant 0.000000e+00 : f32
    %88 = vector.broadcast %cst_90 : f32 to vector<8x128xf32>
    %89 = arith.cmpf oge, %87, %88 : vector<8x128xf32>
    %cst_91 = arith.constant 0.00999999977 : f32
    %90 = vector.broadcast %cst_91 : f32 to vector<8x128xf32>
    %91 = arith.mulf %90, %87 : vector<8x128xf32>
    %92 = arith.select %89, %87, %91 : vector<8x128xi1>, vector<8x128xf32>
    %c0_92 = arith.constant 0 : index
    %c0_93 = arith.constant 0 : index
    %c0_94 = arith.constant 0 : index
    %93 = vector.load %arg14[%c0_92, %c0_93, %c0_94] : memref<2x1x128xf32, #tpu.memory_space<vmem>>, vector<1x1x128xf32>
    %94 = vector.shape_cast %93 : vector<1x1x128xf32> to vector<1x128xf32>
    %c0_95 = arith.constant 0 : index
    %c0_96 = arith.constant 0 : index
    %c0_97 = arith.constant 0 : index
    %95 = vector.load %arg15[%c0_95, %c0_96, %c0_97] : memref<2x1x128xf32, #tpu.memory_space<vmem>>, vector<1x1x128xf32>
    %96 = vector.shape_cast %95 : vector<1x1x128xf32> to vector<1x128xf32>
    %c0_98 = arith.constant 0 : index
    %c0_99 = arith.constant 0 : index
    %c0_100 = arith.constant 0 : index
    %97 = vector.load %arg16[%c0_98, %c0_99, %c0_100] : memref<2x1x1xf32, #tpu.memory_space<vmem>>, vector<1x1x1xf32>
    %98 = vector.shape_cast %97 : vector<1x1x1xf32> to vector<1x1xf32>
    %99 = vector.broadcast %94 : vector<1x128xf32> to vector<8x128xf32>
    %100 = arith.mulf %16, %99 : vector<8x128xf32>
    %cst_101 = arith.constant dense<0.000000e+00> : vector<8xf32>
    %101 = vector.multi_reduction <add>, %100, %cst_101 [1] : vector<8x128xf32> to vector<8xf32>
    %102 = vector.shape_cast %101 : vector<8xf32> to vector<8x1xf32>
    %103 = vector.broadcast %96 : vector<1x128xf32> to vector<8x128xf32>
    %104 = arith.mulf %35, %103 : vector<8x128xf32>
    %cst_102 = arith.constant dense<0.000000e+00> : vector<8xf32>
    %105 = vector.multi_reduction <add>, %104, %cst_102 [1] : vector<8x128xf32> to vector<8xf32>
    %106 = vector.shape_cast %105 : vector<8xf32> to vector<8x1xf32>
    %107 = arith.addf %102, %106 : vector<8x1xf32>
    %108 = vector.broadcast %98 : vector<1x1xf32> to vector<8x1xf32>
    %109 = arith.addf %107, %108 : vector<8x1xf32>
    %cst_103 = arith.constant 0.000000e+00 : f32
    %110 = vector.broadcast %cst_103 : f32 to vector<8x1xf32>
    %111 = arith.cmpf oge, %109, %110 : vector<8x1xf32>
    %cst_104 = arith.constant 0.00999999977 : f32
    %112 = vector.broadcast %cst_104 : f32 to vector<8x1xf32>
    %113 = arith.mulf %112, %109 : vector<8x1xf32>
    %114 = arith.select %111, %109, %113 : vector<8x1xi1>, vector<8x1xf32>
    %c0_105 = arith.constant 0 : index
    %c0_106 = arith.constant 0 : index
    %c0_107 = arith.constant 0 : index
    %c0_108 = arith.constant 0 : index
    %115 = vector.load %arg5[%c0_105, %c0_106, %c0_107, %c0_108] : memref<1x4x8x1xf32, #tpu.memory_space<vmem>>, vector<1x1x8x1xf32>
    %116 = vector.shape_cast %115 : vector<1x1x8x1xf32> to vector<8x1xf32>
    %117 = arith.addf %114, %116 : vector<8x1xf32>
    %118 = vector.broadcast %96 : vector<1x128xf32> to vector<8x128xf32>
    %119 = arith.mulf %54, %118 : vector<8x128xf32>
    %cst_109 = arith.constant dense<0.000000e+00> : vector<8xf32>
    %120 = vector.multi_reduction <add>, %119, %cst_109 [1] : vector<8x128xf32> to vector<8xf32>
    %121 = vector.shape_cast %120 : vector<8xf32> to vector<8x1xf32>
    %122 = arith.addf %102, %121 : vector<8x1xf32>
    %123 = vector.broadcast %98 : vector<1x1xf32> to vector<8x1xf32>
    %124 = arith.addf %122, %123 : vector<8x1xf32>
    %cst_110 = arith.constant 0.000000e+00 : f32
    %125 = vector.broadcast %cst_110 : f32 to vector<8x1xf32>
    %126 = arith.cmpf oge, %124, %125 : vector<8x1xf32>
    %cst_111 = arith.constant 0.00999999977 : f32
    %127 = vector.broadcast %cst_111 : f32 to vector<8x1xf32>
    %128 = arith.mulf %127, %124 : vector<8x1xf32>
    %129 = arith.select %126, %124, %128 : vector<8x1xi1>, vector<8x1xf32>
    %c0_112 = arith.constant 0 : index
    %c1_113 = arith.constant 1 : index
    %c0_114 = arith.constant 0 : index
    %c0_115 = arith.constant 0 : index
    %130 = vector.load %arg5[%c0_112, %c1_113, %c0_114, %c0_115] : memref<1x4x8x1xf32, #tpu.memory_space<vmem>>, vector<1x1x8x1xf32>
    %131 = vector.shape_cast %130 : vector<1x1x8x1xf32> to vector<8x1xf32>
    %132 = arith.addf %129, %131 : vector<8x1xf32>
    %133 = vector.broadcast %96 : vector<1x128xf32> to vector<8x128xf32>
    %134 = arith.mulf %73, %133 : vector<8x128xf32>
    %cst_116 = arith.constant dense<0.000000e+00> : vector<8xf32>
    %135 = vector.multi_reduction <add>, %134, %cst_116 [1] : vector<8x128xf32> to vector<8xf32>
    %136 = vector.shape_cast %135 : vector<8xf32> to vector<8x1xf32>
    %137 = arith.addf %102, %136 : vector<8x1xf32>
    %138 = vector.broadcast %98 : vector<1x1xf32> to vector<8x1xf32>
    %139 = arith.addf %137, %138 : vector<8x1xf32>
    %cst_117 = arith.constant 0.000000e+00 : f32
    %140 = vector.broadcast %cst_117 : f32 to vector<8x1xf32>
    %141 = arith.cmpf oge, %139, %140 : vector<8x1xf32>
    %cst_118 = arith.constant 0.00999999977 : f32
    %142 = vector.broadcast %cst_118 : f32 to vector<8x1xf32>
    %143 = arith.mulf %142, %139 : vector<8x1xf32>
    %144 = arith.select %141, %139, %143 : vector<8x1xi1>, vector<8x1xf32>
    %c0_119 = arith.constant 0 : index
    %c2_120 = arith.constant 2 : index
    %c0_121 = arith.constant 0 : index
    %c0_122 = arith.constant 0 : index
    %145 = vector.load %arg5[%c0_119, %c2_120, %c0_121, %c0_122] : memref<1x4x8x1xf32, #tpu.memory_space<vmem>>, vector<1x1x8x1xf32>
    %146 = vector.shape_cast %145 : vector<1x1x8x1xf32> to vector<8x1xf32>
    %147 = arith.addf %144, %146 : vector<8x1xf32>
    %148 = vector.broadcast %96 : vector<1x128xf32> to vector<8x128xf32>
    %149 = arith.mulf %92, %148 : vector<8x128xf32>
    %cst_123 = arith.constant dense<0.000000e+00> : vector<8xf32>
    %150 = vector.multi_reduction <add>, %149, %cst_123 [1] : vector<8x128xf32> to vector<8xf32>
    %151 = vector.shape_cast %150 : vector<8xf32> to vector<8x1xf32>
    %152 = arith.addf %102, %151 : vector<8x1xf32>
    %153 = vector.broadcast %98 : vector<1x1xf32> to vector<8x1xf32>
    %154 = arith.addf %152, %153 : vector<8x1xf32>
    %cst_124 = arith.constant 0.000000e+00 : f32
    %155 = vector.broadcast %cst_124 : f32 to vector<8x1xf32>
    %156 = arith.cmpf oge, %154, %155 : vector<8x1xf32>
    %cst_125 = arith.constant 0.00999999977 : f32
    %157 = vector.broadcast %cst_125 : f32 to vector<8x1xf32>
    %158 = arith.mulf %157, %154 : vector<8x1xf32>
    %159 = arith.select %156, %154, %158 : vector<8x1xi1>, vector<8x1xf32>
    %c0_126 = arith.constant 0 : index
    %c3_127 = arith.constant 3 : index
    %c0_128 = arith.constant 0 : index
    %c0_129 = arith.constant 0 : index
    %160 = vector.load %arg5[%c0_126, %c3_127, %c0_128, %c0_129] : memref<1x4x8x1xf32, #tpu.memory_space<vmem>>, vector<1x1x8x1xf32>
    %161 = vector.shape_cast %160 : vector<1x1x8x1xf32> to vector<8x1xf32>
    %162 = arith.addf %159, %161 : vector<8x1xf32>
    %163 = arith.maximumf %117, %132 : vector<8x1xf32>
    %164 = arith.maximumf %163, %147 : vector<8x1xf32>
    %165 = arith.maximumf %164, %162 : vector<8x1xf32>
    %166 = arith.subf %117, %165 : vector<8x1xf32>
    %167 = math.exp %166 : vector<8x1xf32>
    %168 = arith.subf %132, %165 : vector<8x1xf32>
    %169 = math.exp %168 : vector<8x1xf32>
    %170 = arith.subf %147, %165 : vector<8x1xf32>
    %171 = math.exp %170 : vector<8x1xf32>
    %172 = arith.subf %162, %165 : vector<8x1xf32>
    %173 = math.exp %172 : vector<8x1xf32>
    %174 = arith.addf %167, %169 : vector<8x1xf32>
    %175 = arith.addf %174, %171 : vector<8x1xf32>
    %176 = arith.addf %175, %173 : vector<8x1xf32>
    %177 = tpu.reciprocal %176 {approx = true} : vector<8x1xf32> -> vector<8x1xf32>
    %178 = arith.mulf %167, %177 : vector<8x1xf32>
    %c0_130 = arith.constant 0 : index
    %c0_131 = arith.constant 0 : index
    %c0_132 = arith.constant 0 : index
    %c0_133 = arith.constant 0 : index
    %179 = vector.load %arg6[%c0_130, %c0_131, %c0_132, %c0_133] : memref<1x4x8x1xf32, #tpu.memory_space<vmem>>, vector<1x1x8x1xf32>
    %180 = vector.shape_cast %179 : vector<1x1x8x1xf32> to vector<8x1xf32>
    %181 = arith.mulf %178, %180 : vector<8x1xf32>
    %182 = arith.mulf %169, %177 : vector<8x1xf32>
    %c0_134 = arith.constant 0 : index
    %c1_135 = arith.constant 1 : index
    %c0_136 = arith.constant 0 : index
    %c0_137 = arith.constant 0 : index
    %183 = vector.load %arg6[%c0_134, %c1_135, %c0_136, %c0_137] : memref<1x4x8x1xf32, #tpu.memory_space<vmem>>, vector<1x1x8x1xf32>
    %184 = vector.shape_cast %183 : vector<1x1x8x1xf32> to vector<8x1xf32>
    %185 = arith.mulf %182, %184 : vector<8x1xf32>
    %186 = arith.mulf %171, %177 : vector<8x1xf32>
    %c0_138 = arith.constant 0 : index
    %c2_139 = arith.constant 2 : index
    %c0_140 = arith.constant 0 : index
    %c0_141 = arith.constant 0 : index
    %187 = vector.load %arg6[%c0_138, %c2_139, %c0_140, %c0_141] : memref<1x4x8x1xf32, #tpu.memory_space<vmem>>, vector<1x1x8x1xf32>
    %188 = vector.shape_cast %187 : vector<1x1x8x1xf32> to vector<8x1xf32>
    %189 = arith.mulf %186, %188 : vector<8x1xf32>
    %190 = arith.mulf %173, %177 : vector<8x1xf32>
    %c0_142 = arith.constant 0 : index
    %c3_143 = arith.constant 3 : index
    %c0_144 = arith.constant 0 : index
    %c0_145 = arith.constant 0 : index
    %191 = vector.load %arg6[%c0_142, %c3_143, %c0_144, %c0_145] : memref<1x4x8x1xf32, #tpu.memory_space<vmem>>, vector<1x1x8x1xf32>
    %192 = vector.shape_cast %191 : vector<1x1x8x1xf32> to vector<8x1xf32>
    %193 = arith.mulf %190, %192 : vector<8x1xf32>
    %c0_146 = arith.constant 0 : index
    %c0_147 = arith.constant 0 : index
    %c0_148 = arith.constant 0 : index
    %c0_149 = arith.constant 0 : index
    %194 = vector.load %arg35[%c0_146, %c0_147, %c0_148, %c0_149] : memref<1x8x8x1xf32, #tpu.memory_space<vmem>>, vector<1x1x8x1xf32>
    %195 = vector.shape_cast %194 : vector<1x1x8x1xf32> to vector<8x1xf32>
    %196 = vector.shape_cast %181 : vector<8x1xf32> to vector<1x1x8x1xf32>
    tpu.vector_store %arg35[%c0_146, %c0_147, %c0_148, %c0_149], %196 {strides = array<i32>} : memref<1x8x8x1xf32, #tpu.memory_space<vmem>>, vector<1x1x8x1xf32>,
    %c0_150 = arith.constant 0 : index
    %c1_151 = arith.constant 1 : index
    %c0_152 = arith.constant 0 : index
    %c0_153 = arith.constant 0 : index
    %197 = vector.load %arg35[%c0_150, %c1_151, %c0_152, %c0_153] : memref<1x8x8x1xf32, #tpu.memory_space<vmem>>, vector<1x1x8x1xf32>
    %198 = vector.shape_cast %197 : vector<1x1x8x1xf32> to vector<8x1xf32>
    %199 = vector.shape_cast %185 : vector<8x1xf32> to vector<1x1x8x1xf32>
    tpu.vector_store %arg35[%c0_150, %c1_151, %c0_152, %c0_153], %199 {strides = array<i32>} : memref<1x8x8x1xf32, #tpu.memory_space<vmem>>, vector<1x1x8x1xf32>,
    %c0_154 = arith.constant 0 : index
    %c2_155 = arith.constant 2 : index
    %c0_156 = arith.constant 0 : index
    %c0_157 = arith.constant 0 : index
    %200 = vector.load %arg35[%c0_154, %c2_155, %c0_156, %c0_157] : memref<1x8x8x1xf32, #tpu.memory_space<vmem>>, vector<1x1x8x1xf32>
    %201 = vector.shape_cast %200 : vector<1x1x8x1xf32> to vector<8x1xf32>
    %202 = vector.shape_cast %189 : vector<8x1xf32> to vector<1x1x8x1xf32>
    tpu.vector_store %arg35[%c0_154, %c2_155, %c0_156, %c0_157], %202 {strides = array<i32>} : memref<1x8x8x1xf32, #tpu.memory_space<vmem>>, vector<1x1x8x1xf32>,
    %c0_158 = arith.constant 0 : index
    %c3_159 = arith.constant 3 : index
    %c0_160 = arith.constant 0 : index
    %c0_161 = arith.constant 0 : index
    %203 = vector.load %arg35[%c0_158, %c3_159, %c0_160, %c0_161] : memref<1x8x8x1xf32, #tpu.memory_space<vmem>>, vector<1x1x8x1xf32>
    %204 = vector.shape_cast %203 : vector<1x1x8x1xf32> to vector<8x1xf32>
    %205 = vector.shape_cast %193 : vector<8x1xf32> to vector<1x1x8x1xf32>
    tpu.vector_store %arg35[%c0_158, %c3_159, %c0_160, %c0_161], %205 {strides = array<i32>} : memref<1x8x8x1xf32, #tpu.memory_space<vmem>>, vector<1x1x8x1xf32>,
    %206 = vector.broadcast %181 : vector<8x1xf32> to vector<8x128xf32>
    %207 = arith.mulf %206, %35 : vector<8x128xf32>
    %208 = vector.broadcast %185 : vector<8x1xf32> to vector<8x128xf32>
    %209 = arith.mulf %208, %54 : vector<8x128xf32>
    %210 = arith.addf %207, %209 : vector<8x128xf32>
    %211 = arith.addf %181, %185 : vector<8x1xf32>
    %212 = vector.broadcast %189 : vector<8x1xf32> to vector<8x128xf32>
    %213 = arith.mulf %212, %73 : vector<8x128xf32>
    %214 = arith.addf %210, %213 : vector<8x128xf32>
    %215 = arith.addf %211, %189 : vector<8x1xf32>
    %216 = vector.broadcast %193 : vector<8x1xf32> to vector<8x128xf32>
    %217 = arith.mulf %216, %92 : vector<8x128xf32>
    %218 = arith.addf %214, %217 : vector<8x128xf32>
    %219 = arith.addf %215, %193 : vector<8x1xf32>
    %c0_162 = arith.constant 0 : index
    %c0_163 = arith.constant 0 : index
    %c0_164 = arith.constant 0 : index
    %220 = vector.load %arg17[%c0_162, %c0_163, %c0_164] : memref<2x128x128xf32, #tpu.memory_space<vmem>>, vector<1x128x128xf32>
    %221 = vector.shape_cast %220 : vector<1x128x128xf32> to vector<128x128xf32>
    %cst_165 = arith.constant dense<0.000000e+00> : vector<8x128xf32>
    %222 = tpu.matmul %218, %221, %cst_165 {dimension_numbers = #tpu.dot_dimension_numbers<[1], [0], [0], [1], [0, 0, 1, 1], [], []>} : vector<8x128xf32>, vector<128x128xf32>, vector<8x128xf32> -> vector<8x128xf32>
    %c0_166 = arith.constant 0 : index
    %c0_167 = arith.constant 0 : index
    %c0_168 = arith.constant 0 : index
    %223 = vector.load %arg18[%c0_166, %c0_167, %c0_168] : memref<2x1x128xf32, #tpu.memory_space<vmem>>, vector<1x1x128xf32>
    %224 = vector.shape_cast %223 : vector<1x1x128xf32> to vector<1x128xf32>
    %225 = vector.broadcast %219 : vector<8x1xf32> to vector<8x128xf32>
    %226 = vector.broadcast %224 : vector<1x128xf32> to vector<8x128xf32>
    %227 = arith.mulf %225, %226 : vector<8x128xf32>
    %228 = arith.addf %222, %227 : vector<8x128xf32>
    %cst_169 = arith.constant 0.000000e+00 : f32
    %229 = vector.broadcast %cst_169 : f32 to vector<8x128xf32>
    %230 = arith.cmpf ogt, %228, %229 : vector<8x128xf32>
    %231 = math.exp %228 : vector<8x128xf32>
    %cst_170 = arith.constant 1.000000e+00 : f32
    %232 = vector.broadcast %cst_170 : f32 to vector<8x128xf32>
    %233 = arith.subf %231, %232 : vector<8x128xf32>
    %234 = arith.select %230, %228, %233 : vector<8x128xi1>, vector<8x128xf32>
    %c0_171 = arith.constant 0 : index
    %c0_172 = arith.constant 0 : index
    %c0_173 = arith.constant 0 : index
    %235 = vector.load %arg19[%c0_171, %c0_172, %c0_173] : memref<2x128x384xf32, #tpu.memory_space<vmem>>, vector<1x128x384xf32>
    %236 = vector.shape_cast %235 : vector<1x128x384xf32> to vector<128x384xf32>
    %c0_174 = arith.constant 0 : index
    %c0_175 = arith.constant 0 : index
    %c0_176 = arith.constant 0 : index
    %237 = vector.load %arg20[%c0_174, %c0_175, %c0_176] : memref<2x128x384xf32, #tpu.memory_space<vmem>>, vector<1x128x384xf32>
    %238 = vector.shape_cast %237 : vector<1x128x384xf32> to vector<128x384xf32>
    %c0_177 = arith.constant 0 : index
    %c0_178 = arith.constant 0 : index
    %c0_179 = arith.constant 0 : index
    %239 = vector.load %arg21[%c0_177, %c0_178, %c0_179] : memref<2x1x384xf32, #tpu.memory_space<vmem>>, vector<1x1x384xf32>
    %240 = vector.shape_cast %239 : vector<1x1x384xf32> to vector<1x384xf32>
    %c0_180 = arith.constant 0 : index
    %c0_181 = arith.constant 0 : index
    %c0_182 = arith.constant 0 : index
    %241 = vector.load %arg22[%c0_180, %c0_181, %c0_182] : memref<2x1x384xf32, #tpu.memory_space<vmem>>, vector<1x1x384xf32>
    %242 = vector.shape_cast %241 : vector<1x1x384xf32> to vector<1x384xf32>
    %cst_183 = arith.constant dense<0.000000e+00> : vector<8x384xf32>
    %243 = tpu.matmul %234, %236, %cst_183 {dimension_numbers = #tpu.dot_dimension_numbers<[1], [0], [0], [1], [0, 0, 1, 1], [], []>} : vector<8x128xf32>, vector<128x384xf32>, vector<8x384xf32> -> vector<8x384xf32>
    %244 = vector.broadcast %240 : vector<1x384xf32> to vector<8x384xf32>
    %245 = arith.addf %243, %244 : vector<8x384xf32>
    %cst_184 = arith.constant dense<0.000000e+00> : vector<8x384xf32>
    %246 = tpu.matmul %16, %238, %cst_184 {dimension_numbers = #tpu.dot_dimension_numbers<[1], [0], [0], [1], [0, 0, 1, 1], [], []>} : vector<8x128xf32>, vector<128x384xf32>, vector<8x384xf32> -> vector<8x384xf32>
    %247 = vector.broadcast %242 : vector<1x384xf32> to vector<8x384xf32>
    %248 = arith.addf %246, %247 : vector<8x384xf32>
    %249 = vector.extract_strided_slice %245 {offsets = [0, 0], sizes = [8, 128], strides = [1, 1]} : vector<8x384xf32> to vector<8x128xf32>
    %250 = vector.extract_strided_slice %248 {offsets = [0, 0], sizes = [8, 128], strides = [1, 1]} : vector<8x384xf32> to vector<8x128xf32>
    %251 = arith.addf %249, %250 : vector<8x128xf32>
    %cst_185 = arith.constant 0.000000e+00 : f32
    %252 = vector.broadcast %cst_185 : f32 to vector<8x128xf32>
    %253 = arith.subf %252, %251 : vector<8x128xf32>
    %254 = math.exp %253 : vector<8x128xf32>
    %cst_186 = arith.constant 1.000000e+00 : f32
    %255 = vector.broadcast %cst_186 : f32 to vector<8x128xf32>
    %256 = arith.addf %255, %254 : vector<8x128xf32>
    %257 = tpu.reciprocal %256 {approx = true} : vector<8x128xf32> -> vector<8x128xf32>
    %258 = vector.extract_strided_slice %245 {offsets = [0, 128], sizes = [8, 128], strides = [1, 1]} : vector<8x384xf32> to vector<8x128xf32>
    %259 = vector.extract_strided_slice %248 {offsets = [0, 128], sizes = [8, 128], strides = [1, 1]} : vector<8x384xf32> to vector<8x128xf32>
    %260 = arith.addf %258, %259 : vector<8x128xf32>
    %cst_187 = arith.constant 0.000000e+00 : f32
    %261 = vector.broadcast %cst_187 : f32 to vector<8x128xf32>
    %262 = arith.subf %261, %260 : vector<8x128xf32>
    %263 = math.exp %262 : vector<8x128xf32>
    %cst_188 = arith.constant 1.000000e+00 : f32
    %264 = vector.broadcast %cst_188 : f32 to vector<8x128xf32>
    %265 = arith.addf %264, %263 : vector<8x128xf32>
    %266 = tpu.reciprocal %265 {approx = true} : vector<8x128xf32> -> vector<8x128xf32>
    %267 = vector.extract_strided_slice %245 {offsets = [0, 256], sizes = [8, 128], strides = [1, 1]} : vector<8x384xf32> to vector<8x128xf32>
    %268 = vector.extract_strided_slice %248 {offsets = [0, 256], sizes = [8, 128], strides = [1, 1]} : vector<8x384xf32> to vector<8x128xf32>
    %269 = arith.mulf %257, %268 : vector<8x128xf32>
    %270 = arith.addf %267, %269 : vector<8x128xf32>
    %271 = math.tanh %270 : vector<8x128xf32>
    %cst_189 = arith.constant 1.000000e+00 : f32
    %272 = vector.broadcast %cst_189 : f32 to vector<8x128xf32>
    %273 = arith.subf %272, %266 : vector<8x128xf32>
    %274 = arith.mulf %273, %271 : vector<8x128xf32>
    %275 = arith.mulf %266, %16 : vector<8x128xf32>
    %276 = arith.addf %274, %275 : vector<8x128xf32>
    %cst_190 = arith.constant 0.000000e+00 : f32
    %277 = vector.broadcast %cst_190 : f32 to vector<8x128xf32>
    %278 = arith.maximumf %276, %277 : vector<8x128xf32>
    %c0_191 = arith.constant 0 : index
    %c1_192 = arith.constant 1 : index
    %c0_193 = arith.constant 0 : index
    %c0_194 = arith.constant 0 : index
    %279 = vector.load %arg34[%c0_191, %c1_192, %c0_193, %c0_194] : memref<1x3x8x128xf32, #tpu.memory_space<vmem>>, vector<1x1x8x128xf32>
    %280 = vector.shape_cast %279 : vector<1x1x8x128xf32> to vector<8x128xf32>
    %281 = vector.shape_cast %278 : vector<8x128xf32> to vector<1x1x8x128xf32>
    tpu.vector_store %arg34[%c0_191, %c1_192, %c0_193, %c0_194], %281 {strides = array<i32>} : memref<1x3x8x128xf32, #tpu.memory_space<vmem>>, vector<1x1x8x128xf32>,
    %c0_195 = arith.constant 0 : index
    %c0_196 = arith.constant 0 : index
    %c0_197 = arith.constant 0 : index
    %c0_198 = arith.constant 0 : index
    %282 = vector.load %arg3[%c0_195, %c0_196, %c0_197, %c0_198] : memref<1x4x8x8xf32, #tpu.memory_space<vmem>>, vector<1x1x8x8xf32>
    %283 = vector.shape_cast %282 : vector<1x1x8x8xf32> to vector<8x8xf32>
    %cst_199 = arith.constant dense<0.000000e+00> : vector<8x128xf32>
    %284 = tpu.matmul %283, %278, %cst_199 {dimension_numbers = #tpu.dot_dimension_numbers<[1], [0], [0], [1], [0, 0, 1, 1], [], []>} : vector<8x8xf32>, vector<8x128xf32>, vector<8x128xf32> -> vector<8x128xf32>
    %c0_200 = arith.constant 0 : index
    %c1_201 = arith.constant 1 : index
    %c0_202 = arith.constant 0 : index
    %c0_203 = arith.constant 0 : index
    %285 = vector.load %arg3[%c0_200, %c1_201, %c0_202, %c0_203] : memref<1x4x8x8xf32, #tpu.memory_space<vmem>>, vector<1x1x8x8xf32>
    %286 = vector.shape_cast %285 : vector<1x1x8x8xf32> to vector<8x8xf32>
    %cst_204 = arith.constant dense<0.000000e+00> : vector<8x128xf32>
    %287 = tpu.matmul %286, %278, %cst_204 {dimension_numbers = #tpu.dot_dimension_numbers<[1], [0], [0], [1], [0, 0, 1, 1], [], []>} : vector<8x8xf32>, vector<8x128xf32>, vector<8x128xf32> -> vector<8x128xf32>
    %c0_205 = arith.constant 0 : index
    %c2_206 = arith.constant 2 : index
    %c0_207 = arith.constant 0 : index
    %c0_208 = arith.constant 0 : index
    %288 = vector.load %arg3[%c0_205, %c2_206, %c0_207, %c0_208] : memref<1x4x8x8xf32, #tpu.memory_space<vmem>>, vector<1x1x8x8xf32>
    %289 = vector.shape_cast %288 : vector<1x1x8x8xf32> to vector<8x8xf32>
    %cst_209 = arith.constant dense<0.000000e+00> : vector<8x128xf32>
    %290 = tpu.matmul %289, %278, %cst_209 {dimension_numbers = #tpu.dot_dimension_numbers<[1], [0], [0], [1], [0, 0, 1, 1], [], []>} : vector<8x8xf32>, vector<8x128xf32>, vector<8x128xf32> -> vector<8x128xf32>
    %c0_210 = arith.constant 0 : index
    %c3_211 = arith.constant 3 : index
    %c0_212 = arith.constant 0 : index
    %c0_213 = arith.constant 0 : index
    %291 = vector.load %arg3[%c0_210, %c3_211, %c0_212, %c0_213] : memref<1x4x8x8xf32, #tpu.memory_space<vmem>>, vector<1x1x8x8xf32>
    %292 = vector.shape_cast %291 : vector<1x1x8x8xf32> to vector<8x8xf32>
    %cst_214 = arith.constant dense<0.000000e+00> : vector<8x128xf32>
    %293 = tpu.matmul %292, %278, %cst_214 {dimension_numbers = #tpu.dot_dimension_numbers<[1], [0], [0], [1], [0, 0, 1, 1], [], []>} : vector<8x8xf32>, vector<8x128xf32>, vector<8x128xf32> -> vector<8x128xf32>
    %c1_215 = arith.constant 1 : index
    %c0_216 = arith.constant 0 : index
    %c0_217 = arith.constant 0 : index
    %294 = vector.load %arg14[%c1_215, %c0_216, %c0_217] : memref<2x1x128xf32, #tpu.memory_space<vmem>>, vector<1x1x128xf32>
    %295 = vector.shape_cast %294 : vector<1x1x128xf32> to vector<1x128xf32>
    %c1_218 = arith.constant 1 : index
    %c0_219 = arith.constant 0 : index
    %c0_220 = arith.constant 0 : index
    %296 = vector.load %arg15[%c1_218, %c0_219, %c0_220] : memref<2x1x128xf32, #tpu.memory_space<vmem>>, vector<1x1x128xf32>
    %297 = vector.shape_cast %296 : vector<1x1x128xf32> to vector<1x128xf32>
    %c1_221 = arith.constant 1 : index
    %c0_222 = arith.constant 0 : index
    %c0_223 = arith.constant 0 : index
    %298 = vector.load %arg16[%c1_221, %c0_222, %c0_223] : memref<2x1x1xf32, #tpu.memory_space<vmem>>, vector<1x1x1xf32>
    %299 = vector.shape_cast %298 : vector<1x1x1xf32> to vector<1x1xf32>
    %300 = vector.broadcast %295 : vector<1x128xf32> to vector<8x128xf32>
    %301 = arith.mulf %278, %300 : vector<8x128xf32>
    %cst_224 = arith.constant dense<0.000000e+00> : vector<8xf32>
    %302 = vector.multi_reduction <add>, %301, %cst_224 [1] : vector<8x128xf32> to vector<8xf32>
    %303 = vector.shape_cast %302 : vector<8xf32> to vector<8x1xf32>
    %304 = vector.broadcast %297 : vector<1x128xf32> to vector<8x128xf32>
    %305 = arith.mulf %284, %304 : vector<8x128xf32>
    %cst_225 = arith.constant dense<0.000000e+00> : vector<8xf32>
    %306 = vector.multi_reduction <add>, %305, %cst_225 [1] : vector<8x128xf32> to vector<8xf32>
    %307 = vector.shape_cast %306 : vector<8xf32> to vector<8x1xf32>
    %308 = arith.addf %303, %307 : vector<8x1xf32>
    %309 = vector.broadcast %299 : vector<1x1xf32> to vector<8x1xf32>
    %310 = arith.addf %308, %309 : vector<8x1xf32>
    %cst_226 = arith.constant 0.000000e+00 : f32
    %311 = vector.broadcast %cst_226 : f32 to vector<8x1xf32>
    %312 = arith.cmpf oge, %310, %311 : vector<8x1xf32>
    %cst_227 = arith.constant 0.00999999977 : f32
    %313 = vector.broadcast %cst_227 : f32 to vector<8x1xf32>
    %314 = arith.mulf %313, %310 : vector<8x1xf32>
    %315 = arith.select %312, %310, %314 : vector<8x1xi1>, vector<8x1xf32>
    %c0_228 = arith.constant 0 : index
    %c0_229 = arith.constant 0 : index
    %c0_230 = arith.constant 0 : index
    %c0_231 = arith.constant 0 : index
    %316 = vector.load %arg5[%c0_228, %c0_229, %c0_230, %c0_231] : memref<1x4x8x1xf32, #tpu.memory_space<vmem>>, vector<1x1x8x1xf32>
    %317 = vector.shape_cast %316 : vector<1x1x8x1xf32> to vector<8x1xf32>
    %318 = arith.addf %315, %317 : vector<8x1xf32>
    %319 = vector.broadcast %297 : vector<1x128xf32> to vector<8x128xf32>
    %320 = arith.mulf %287, %319 : vector<8x128xf32>
    %cst_232 = arith.constant dense<0.000000e+00> : vector<8xf32>
    %321 = vector.multi_reduction <add>, %320, %cst_232 [1] : vector<8x128xf32> to vector<8xf32>
    %322 = vector.shape_cast %321 : vector<8xf32> to vector<8x1xf32>
    %323 = arith.addf %303, %322 : vector<8x1xf32>
    %324 = vector.broadcast %299 : vector<1x1xf32> to vector<8x1xf32>
    %325 = arith.addf %323, %324 : vector<8x1xf32>
    %cst_233 = arith.constant 0.000000e+00 : f32
    %326 = vector.broadcast %cst_233 : f32 to vector<8x1xf32>
    %327 = arith.cmpf oge, %325, %326 : vector<8x1xf32>
    %cst_234 = arith.constant 0.00999999977 : f32
    %328 = vector.broadcast %cst_234 : f32 to vector<8x1xf32>
    %329 = arith.mulf %328, %325 : vector<8x1xf32>
    %330 = arith.select %327, %325, %329 : vector<8x1xi1>, vector<8x1xf32>
    %c0_235 = arith.constant 0 : index
    %c1_236 = arith.constant 1 : index
    %c0_237 = arith.constant 0 : index
    %c0_238 = arith.constant 0 : index
    %331 = vector.load %arg5[%c0_235, %c1_236, %c0_237, %c0_238] : memref<1x4x8x1xf32, #tpu.memory_space<vmem>>, vector<1x1x8x1xf32>
    %332 = vector.shape_cast %331 : vector<1x1x8x1xf32> to vector<8x1xf32>
    %333 = arith.addf %330, %332 : vector<8x1xf32>
    %334 = vector.broadcast %297 : vector<1x128xf32> to vector<8x128xf32>
    %335 = arith.mulf %290, %334 : vector<8x128xf32>
    %cst_239 = arith.constant dense<0.000000e+00> : vector<8xf32>
    %336 = vector.multi_reduction <add>, %335, %cst_239 [1] : vector<8x128xf32> to vector<8xf32>
    %337 = vector.shape_cast %336 : vector<8xf32> to vector<8x1xf32>
    %338 = arith.addf %303, %337 : vector<8x1xf32>
    %339 = vector.broadcast %299 : vector<1x1xf32> to vector<8x1xf32>
    %340 = arith.addf %338, %339 : vector<8x1xf32>
    %cst_240 = arith.constant 0.000000e+00 : f32
    %341 = vector.broadcast %cst_240 : f32 to vector<8x1xf32>
    %342 = arith.cmpf oge, %340, %341 : vector<8x1xf32>
    %cst_241 = arith.constant 0.00999999977 : f32
    %343 = vector.broadcast %cst_241 : f32 to vector<8x1xf32>
    %344 = arith.mulf %343, %340 : vector<8x1xf32>
    %345 = arith.select %342, %340, %344 : vector<8x1xi1>, vector<8x1xf32>
    %c0_242 = arith.constant 0 : index
    %c2_243 = arith.constant 2 : index
    %c0_244 = arith.constant 0 : index
    %c0_245 = arith.constant 0 : index
    %346 = vector.load %arg5[%c0_242, %c2_243, %c0_244, %c0_245] : memref<1x4x8x1xf32, #tpu.memory_space<vmem>>, vector<1x1x8x1xf32>
    %347 = vector.shape_cast %346 : vector<1x1x8x1xf32> to vector<8x1xf32>
    %348 = arith.addf %345, %347 : vector<8x1xf32>
    %349 = vector.broadcast %297 : vector<1x128xf32> to vector<8x128xf32>
    %350 = arith.mulf %293, %349 : vector<8x128xf32>
    %cst_246 = arith.constant dense<0.000000e+00> : vector<8xf32>
    %351 = vector.multi_reduction <add>, %350, %cst_246 [1] : vector<8x128xf32> to vector<8xf32>
    %352 = vector.shape_cast %351 : vector<8xf32> to vector<8x1xf32>
    %353 = arith.addf %303, %352 : vector<8x1xf32>
    %354 = vector.broadcast %299 : vector<1x1xf32> to vector<8x1xf32>
    %355 = arith.addf %353, %354 : vector<8x1xf32>
    %cst_247 = arith.constant 0.000000e+00 : f32
    %356 = vector.broadcast %cst_247 : f32 to vector<8x1xf32>
    %357 = arith.cmpf oge, %355, %356 : vector<8x1xf32>
    %cst_248 = arith.constant 0.00999999977 : f32
    %358 = vector.broadcast %cst_248 : f32 to vector<8x1xf32>
    %359 = arith.mulf %358, %355 : vector<8x1xf32>
    %360 = arith.select %357, %355, %359 : vector<8x1xi1>, vector<8x1xf32>
    %c0_249 = arith.constant 0 : index
    %c3_250 = arith.constant 3 : index
    %c0_251 = arith.constant 0 : index
    %c0_252 = arith.constant 0 : index
    %361 = vector.load %arg5[%c0_249, %c3_250, %c0_251, %c0_252] : memref<1x4x8x1xf32, #tpu.memory_space<vmem>>, vector<1x1x8x1xf32>
    %362 = vector.shape_cast %361 : vector<1x1x8x1xf32> to vector<8x1xf32>
    %363 = arith.addf %360, %362 : vector<8x1xf32>
    %364 = arith.maximumf %318, %333 : vector<8x1xf32>
    %365 = arith.maximumf %364, %348 : vector<8x1xf32>
    %366 = arith.maximumf %365, %363 : vector<8x1xf32>
    %367 = arith.subf %318, %366 : vector<8x1xf32>
    %368 = math.exp %367 : vector<8x1xf32>
    %369 = arith.subf %333, %366 : vector<8x1xf32>
    %370 = math.exp %369 : vector<8x1xf32>
    %371 = arith.subf %348, %366 : vector<8x1xf32>
    %372 = math.exp %371 : vector<8x1xf32>
    %373 = arith.subf %363, %366 : vector<8x1xf32>
    %374 = math.exp %373 : vector<8x1xf32>
    %375 = arith.addf %368, %370 : vector<8x1xf32>
    %376 = arith.addf %375, %372 : vector<8x1xf32>
    %377 = arith.addf %376, %374 : vector<8x1xf32>
    %378 = tpu.reciprocal %377 {approx = true} : vector<8x1xf32> -> vector<8x1xf32>
    %379 = arith.mulf %368, %378 : vector<8x1xf32>
    %c0_253 = arith.constant 0 : index
    %c0_254 = arith.constant 0 : index
    %c0_255 = arith.constant 0 : index
    %c0_256 = arith.constant 0 : index
    %380 = vector.load %arg6[%c0_253, %c0_254, %c0_255, %c0_256] : memref<1x4x8x1xf32, #tpu.memory_space<vmem>>, vector<1x1x8x1xf32>
    %381 = vector.shape_cast %380 : vector<1x1x8x1xf32> to vector<8x1xf32>
    %382 = arith.mulf %379, %381 : vector<8x1xf32>
    %383 = arith.mulf %370, %378 : vector<8x1xf32>
    %c0_257 = arith.constant 0 : index
    %c1_258 = arith.constant 1 : index
    %c0_259 = arith.constant 0 : index
    %c0_260 = arith.constant 0 : index
    %384 = vector.load %arg6[%c0_257, %c1_258, %c0_259, %c0_260] : memref<1x4x8x1xf32, #tpu.memory_space<vmem>>, vector<1x1x8x1xf32>
    %385 = vector.shape_cast %384 : vector<1x1x8x1xf32> to vector<8x1xf32>
    %386 = arith.mulf %383, %385 : vector<8x1xf32>
    %387 = arith.mulf %372, %378 : vector<8x1xf32>
    %c0_261 = arith.constant 0 : index
    %c2_262 = arith.constant 2 : index
    %c0_263 = arith.constant 0 : index
    %c0_264 = arith.constant 0 : index
    %388 = vector.load %arg6[%c0_261, %c2_262, %c0_263, %c0_264] : memref<1x4x8x1xf32, #tpu.memory_space<vmem>>, vector<1x1x8x1xf32>
    %389 = vector.shape_cast %388 : vector<1x1x8x1xf32> to vector<8x1xf32>
    %390 = arith.mulf %387, %389 : vector<8x1xf32>
    %391 = arith.mulf %374, %378 : vector<8x1xf32>
    %c0_265 = arith.constant 0 : index
    %c3_266 = arith.constant 3 : index
    %c0_267 = arith.constant 0 : index
    %c0_268 = arith.constant 0 : index
    %392 = vector.load %arg6[%c0_265, %c3_266, %c0_267, %c0_268] : memref<1x4x8x1xf32, #tpu.memory_space<vmem>>, vector<1x1x8x1xf32>
    %393 = vector.shape_cast %392 : vector<1x1x8x1xf32> to vector<8x1xf32>
    %394 = arith.mulf %391, %393 : vector<8x1xf32>
    %c0_269 = arith.constant 0 : index
    %c4 = arith.constant 4 : index
    %c0_270 = arith.constant 0 : index
    %c0_271 = arith.constant 0 : index
    %395 = vector.load %arg35[%c0_269, %c4, %c0_270, %c0_271] : memref<1x8x8x1xf32, #tpu.memory_space<vmem>>, vector<1x1x8x1xf32>
    %396 = vector.shape_cast %395 : vector<1x1x8x1xf32> to vector<8x1xf32>
    %397 = vector.shape_cast %382 : vector<8x1xf32> to vector<1x1x8x1xf32>
    tpu.vector_store %arg35[%c0_269, %c4, %c0_270, %c0_271], %397 {strides = array<i32>} : memref<1x8x8x1xf32, #tpu.memory_space<vmem>>, vector<1x1x8x1xf32>,
    %c0_272 = arith.constant 0 : index
    %c5 = arith.constant 5 : index
    %c0_273 = arith.constant 0 : index
    %c0_274 = arith.constant 0 : index
    %398 = vector.load %arg35[%c0_272, %c5, %c0_273, %c0_274] : memref<1x8x8x1xf32, #tpu.memory_space<vmem>>, vector<1x1x8x1xf32>
    %399 = vector.shape_cast %398 : vector<1x1x8x1xf32> to vector<8x1xf32>
    %400 = vector.shape_cast %386 : vector<8x1xf32> to vector<1x1x8x1xf32>
    tpu.vector_store %arg35[%c0_272, %c5, %c0_273, %c0_274], %400 {strides = array<i32>} : memref<1x8x8x1xf32, #tpu.memory_space<vmem>>, vector<1x1x8x1xf32>,
    %c0_275 = arith.constant 0 : index
    %c6 = arith.constant 6 : index
    %c0_276 = arith.constant 0 : index
    %c0_277 = arith.constant 0 : index
    %401 = vector.load %arg35[%c0_275, %c6, %c0_276, %c0_277] : memref<1x8x8x1xf32, #tpu.memory_space<vmem>>, vector<1x1x8x1xf32>
    %402 = vector.shape_cast %401 : vector<1x1x8x1xf32> to vector<8x1xf32>
    %403 = vector.shape_cast %390 : vector<8x1xf32> to vector<1x1x8x1xf32>
    tpu.vector_store %arg35[%c0_275, %c6, %c0_276, %c0_277], %403 {strides = array<i32>} : memref<1x8x8x1xf32, #tpu.memory_space<vmem>>, vector<1x1x8x1xf32>,
    %c0_278 = arith.constant 0 : index
    %c7 = arith.constant 7 : index
    %c0_279 = arith.constant 0 : index
    %c0_280 = arith.constant 0 : index
    %404 = vector.load %arg35[%c0_278, %c7, %c0_279, %c0_280] : memref<1x8x8x1xf32, #tpu.memory_space<vmem>>, vector<1x1x8x1xf32>
    %405 = vector.shape_cast %404 : vector<1x1x8x1xf32> to vector<8x1xf32>
    %406 = vector.shape_cast %394 : vector<8x1xf32> to vector<1x1x8x1xf32>
    tpu.vector_store %arg35[%c0_278, %c7, %c0_279, %c0_280], %406 {strides = array<i32>} : memref<1x8x8x1xf32, #tpu.memory_space<vmem>>, vector<1x1x8x1xf32>,
    %407 = vector.broadcast %382 : vector<8x1xf32> to vector<8x128xf32>
    %408 = arith.mulf %407, %284 : vector<8x128xf32>
    %409 = vector.broadcast %386 : vector<8x1xf32> to vector<8x128xf32>
    %410 = arith.mulf %409, %287 : vector<8x128xf32>
    %411 = arith.addf %408, %410 : vector<8x128xf32>
    %412 = arith.addf %382, %386 : vector<8x1xf32>
    %413 = vector.broadcast %390 : vector<8x1xf32> to vector<8x128xf32>
    %414 = arith.mulf %413, %290 : vector<8x128xf32>
    %415 = arith.addf %411, %414 : vector<8x128xf32>
    %416 = arith.addf %412, %390 : vector<8x1xf32>
    %417 = vector.broadcast %394 : vector<8x1xf32> to vector<8x128xf32>
    %418 = arith.mulf %417, %293 : vector<8x128xf32>
    %419 = arith.addf %415, %418 : vector<8x128xf32>
    %420 = arith.addf %416, %394 : vector<8x1xf32>
    %c1_281 = arith.constant 1 : index
    %c0_282 = arith.constant 0 : index
    %c0_283 = arith.constant 0 : index
    %421 = vector.load %arg17[%c1_281, %c0_282, %c0_283] : memref<2x128x128xf32, #tpu.memory_space<vmem>>, vector<1x128x128xf32>
    %422 = vector.shape_cast %421 : vector<1x128x128xf32> to vector<128x128xf32>
    %cst_284 = arith.constant dense<0.000000e+00> : vector<8x128xf32>
    %423 = tpu.matmul %419, %422, %cst_284 {dimension_numbers = #tpu.dot_dimension_numbers<[1], [0], [0], [1], [0, 0, 1, 1], [], []>} : vector<8x128xf32>, vector<128x128xf32>, vector<8x128xf32> -> vector<8x128xf32>
    %c1_285 = arith.constant 1 : index
    %c0_286 = arith.constant 0 : index
    %c0_287 = arith.constant 0 : index
    %424 = vector.load %arg18[%c1_285, %c0_286, %c0_287] : memref<2x1x128xf32, #tpu.memory_space<vmem>>, vector<1x1x128xf32>
    %425 = vector.shape_cast %424 : vector<1x1x128xf32> to vector<1x128xf32>
    %426 = vector.broadcast %420 : vector<8x1xf32> to vector<8x128xf32>
    %427 = vector.broadcast %425 : vector<1x128xf32> to vector<8x128xf32>
    %428 = arith.mulf %426, %427 : vector<8x128xf32>
    %429 = arith.addf %423, %428 : vector<8x128xf32>
    %cst_288 = arith.constant 0.000000e+00 : f32
    %430 = vector.broadcast %cst_288 : f32 to vector<8x128xf32>
    %431 = arith.cmpf ogt, %429, %430 : vector<8x128xf32>
    %432 = math.exp %429 : vector<8x128xf32>
    %cst_289 = arith.constant 1.000000e+00 : f32
    %433 = vector.broadcast %cst_289 : f32 to vector<8x128xf32>
    %434 = arith.subf %432, %433 : vector<8x128xf32>
    %435 = arith.select %431, %429, %434 : vector<8x128xi1>, vector<8x128xf32>
    %c1_290 = arith.constant 1 : index
    %c0_291 = arith.constant 0 : index
    %c0_292 = arith.constant 0 : index
    %436 = vector.load %arg19[%c1_290, %c0_291, %c0_292] : memref<2x128x384xf32, #tpu.memory_space<vmem>>, vector<1x128x384xf32>
    %437 = vector.shape_cast %436 : vector<1x128x384xf32> to vector<128x384xf32>
    %c1_293 = arith.constant 1 : index
    %c0_294 = arith.constant 0 : index
    %c0_295 = arith.constant 0 : index
    %438 = vector.load %arg20[%c1_293, %c0_294, %c0_295] : memref<2x128x384xf32, #tpu.memory_space<vmem>>, vector<1x128x384xf32>
    %439 = vector.shape_cast %438 : vector<1x128x384xf32> to vector<128x384xf32>
    %c1_296 = arith.constant 1 : index
    %c0_297 = arith.constant 0 : index
    %c0_298 = arith.constant 0 : index
    %440 = vector.load %arg21[%c1_296, %c0_297, %c0_298] : memref<2x1x384xf32, #tpu.memory_space<vmem>>, vector<1x1x384xf32>
    %441 = vector.shape_cast %440 : vector<1x1x384xf32> to vector<1x384xf32>
    %c1_299 = arith.constant 1 : index
    %c0_300 = arith.constant 0 : index
    %c0_301 = arith.constant 0 : index
    %442 = vector.load %arg22[%c1_299, %c0_300, %c0_301] : memref<2x1x384xf32, #tpu.memory_space<vmem>>, vector<1x1x384xf32>
    %443 = vector.shape_cast %442 : vector<1x1x384xf32> to vector<1x384xf32>
    %cst_302 = arith.constant dense<0.000000e+00> : vector<8x384xf32>
    %444 = tpu.matmul %435, %437, %cst_302 {dimension_numbers = #tpu.dot_dimension_numbers<[1], [0], [0], [1], [0, 0, 1, 1], [], []>} : vector<8x128xf32>, vector<128x384xf32>, vector<8x384xf32> -> vector<8x384xf32>
    %445 = vector.broadcast %441 : vector<1x384xf32> to vector<8x384xf32>
    %446 = arith.addf %444, %445 : vector<8x384xf32>
    %cst_303 = arith.constant dense<0.000000e+00> : vector<8x384xf32>
    %447 = tpu.matmul %276, %439, %cst_303 {dimension_numbers = #tpu.dot_dimension_numbers<[1], [0], [0], [1], [0, 0, 1, 1], [], []>} : vector<8x128xf32>, vector<128x384xf32>, vector<8x384xf32> -> vector<8x384xf32>
    %448 = vector.broadcast %443 : vector<1x384xf32> to vector<8x384xf32>
    %449 = arith.addf %447, %448 : vector<8x384xf32>
    %450 = vector.extract_strided_slice %446 {offsets = [0, 0], sizes = [8, 128], strides = [1, 1]} : vector<8x384xf32> to vector<8x128xf32>
    %451 = vector.extract_strided_slice %449 {offsets = [0, 0], sizes = [8, 128], strides = [1, 1]} : vector<8x384xf32> to vector<8x128xf32>
    %452 = arith.addf %450, %451 : vector<8x128xf32>
    %cst_304 = arith.constant 0.000000e+00 : f32
    %453 = vector.broadcast %cst_304 : f32 to vector<8x128xf32>
    %454 = arith.subf %453, %452 : vector<8x128xf32>
    %455 = math.exp %454 : vector<8x128xf32>
    %cst_305 = arith.constant 1.000000e+00 : f32
    %456 = vector.broadcast %cst_305 : f32 to vector<8x128xf32>
    %457 = arith.addf %456, %455 : vector<8x128xf32>
    %458 = tpu.reciprocal %457 {approx = true} : vector<8x128xf32> -> vector<8x128xf32>
    %459 = vector.extract_strided_slice %446 {offsets = [0, 128], sizes = [8, 128], strides = [1, 1]} : vector<8x384xf32> to vector<8x128xf32>
    %460 = vector.extract_strided_slice %449 {offsets = [0, 128], sizes = [8, 128], strides = [1, 1]} : vector<8x384xf32> to vector<8x128xf32>
    %461 = arith.addf %459, %460 : vector<8x128xf32>
    %cst_306 = arith.constant 0.000000e+00 : f32
    %462 = vector.broadcast %cst_306 : f32 to vector<8x128xf32>
    %463 = arith.subf %462, %461 : vector<8x128xf32>
    %464 = math.exp %463 : vector<8x128xf32>
    %cst_307 = arith.constant 1.000000e+00 : f32
    %465 = vector.broadcast %cst_307 : f32 to vector<8x128xf32>
    %466 = arith.addf %465, %464 : vector<8x128xf32>
    %467 = tpu.reciprocal %466 {approx = true} : vector<8x128xf32> -> vector<8x128xf32>
    %468 = vector.extract_strided_slice %446 {offsets = [0, 256], sizes = [8, 128], strides = [1, 1]} : vector<8x384xf32> to vector<8x128xf32>
    %469 = vector.extract_strided_slice %449 {offsets = [0, 256], sizes = [8, 128], strides = [1, 1]} : vector<8x384xf32> to vector<8x128xf32>
    %470 = arith.mulf %458, %469 : vector<8x128xf32>
    %471 = arith.addf %468, %470 : vector<8x128xf32>
    %472 = math.tanh %471 : vector<8x128xf32>
    %cst_308 = arith.constant 1.000000e+00 : f32
    %473 = vector.broadcast %cst_308 : f32 to vector<8x128xf32>
    %474 = arith.subf %473, %467 : vector<8x128xf32>
    %475 = arith.mulf %474, %472 : vector<8x128xf32>
    %476 = arith.mulf %467, %276 : vector<8x128xf32>
    %477 = arith.addf %475, %476 : vector<8x128xf32>
    %cst_309 = arith.constant 0.000000e+00 : f32
    %478 = vector.broadcast %cst_309 : f32 to vector<8x128xf32>
    %479 = arith.maximumf %477, %478 : vector<8x128xf32>
    %c0_310 = arith.constant 0 : index
    %c2_311 = arith.constant 2 : index
    %c0_312 = arith.constant 0 : index
    %c0_313 = arith.constant 0 : index
    %480 = vector.load %arg34[%c0_310, %c2_311, %c0_312, %c0_313] : memref<1x3x8x128xf32, #tpu.memory_space<vmem>>, vector<1x1x8x128xf32>
    %481 = vector.shape_cast %480 : vector<1x1x8x128xf32> to vector<8x128xf32>
    %482 = vector.shape_cast %479 : vector<8x128xf32> to vector<1x1x8x128xf32>
    tpu.vector_store %arg34[%c0_310, %c2_311, %c0_312, %c0_313], %482 {strides = array<i32>} : memref<1x3x8x128xf32, #tpu.memory_space<vmem>>, vector<1x1x8x128xf32>,
    %c0_314 = arith.constant 0 : index
    %c0_315 = arith.constant 0 : index
    %c0_316 = arith.constant 0 : index
    %483 = vector.load %arg7[%c0_314, %c0_315, %c0_316] : memref<1x8x1xf32, #tpu.memory_space<vmem>>, vector<1x8x1xf32>
    %484 = vector.shape_cast %483 : vector<1x8x1xf32> to vector<8x1xf32>
    %c0_317 = arith.constant 0 : index
    %c0_318 = arith.constant 0 : index
    %c0_319 = arith.constant 0 : index
    %485 = vector.load %arg8[%c0_317, %c0_318, %c0_319] : memref<1x8x1xf32, #tpu.memory_space<vmem>>, vector<1x8x1xf32>
    %486 = vector.shape_cast %485 : vector<1x8x1xf32> to vector<8x1xf32>
    %487 = vector.broadcast %484 : vector<8x1xf32> to vector<8x128xf32>
    %488 = arith.mulf %477, %487 : vector<8x128xf32>
    %cst_320 = arith.constant dense<0.000000e+00> : vector<128xf32>
    %489 = vector.multi_reduction <add>, %488, %cst_320 [0] : vector<8x128xf32> to vector<128xf32>
    %490 = vector.shape_cast %489 : vector<128xf32> to vector<1x128xf32>
    %c0_321 = arith.constant 0 : index
    %c0_322 = arith.constant 0 : index
    %c0_323 = arith.constant 0 : index
    %c0_324 = arith.constant 0 : index
    %491 = vector.load %arg37[%c0_321, %c0_322, %c0_323, %c0_324] : memref<1x3x1x128xf32, #tpu.memory_space<vmem>>, vector<1x1x1x128xf32>
    %492 = vector.shape_cast %491 : vector<1x1x1x128xf32> to vector<1x128xf32>
    %493 = vector.shape_cast %490 : vector<1x128xf32> to vector<1x1x1x128xf32>
    tpu.vector_store %arg37[%c0_321, %c0_322, %c0_323, %c0_324], %493 {strides = array<i32>} : memref<1x3x1x128xf32, #tpu.memory_space<vmem>>, vector<1x1x1x128xf32>,
    %494 = vector.broadcast %484 : vector<8x1xf32> to vector<8x128xf32>
    %495 = arith.mulf %479, %494 : vector<8x128xf32>
    %cst_325 = arith.constant dense<0.000000e+00> : vector<128xf32>
    %496 = vector.multi_reduction <add>, %495, %cst_325 [0] : vector<8x128xf32> to vector<128xf32>
    %497 = vector.shape_cast %496 : vector<128xf32> to vector<1x128xf32>
    %c0_326 = arith.constant 0 : index
    %c0_327 = arith.constant 0 : index
    %c0_328 = arith.constant 0 : index
    %c0_329 = arith.constant 0 : index
    %498 = vector.load %arg36[%c0_326, %c0_327, %c0_328, %c0_329] : memref<1x3x1x128xf32, #tpu.memory_space<vmem>>, vector<1x1x1x128xf32>
    %499 = vector.shape_cast %498 : vector<1x1x1x128xf32> to vector<1x128xf32>
    %500 = vector.shape_cast %497 : vector<1x128xf32> to vector<1x1x1x128xf32>
    tpu.vector_store %arg36[%c0_326, %c0_327, %c0_328, %c0_329], %500 {strides = array<i32>} : memref<1x3x1x128xf32, #tpu.memory_space<vmem>>, vector<1x1x1x128xf32>,
    %cst_330 = arith.constant 0.000000e+00 : f32
    %501 = vector.broadcast %cst_330 : f32 to vector<1x128xf32>
    %502 = arith.maximumf %497, %501 : vector<1x128xf32>
    %c0_331 = arith.constant 0 : index
    %c0_332 = arith.constant 0 : index
    %503 = vector.load %arg23[%c0_331, %c0_332] : memref<1x128xf32, #tpu.memory_space<vmem>>, vector<1x128xf32>
    %c0_333 = arith.constant 0 : index
    %c0_334 = arith.constant 0 : index
    %504 = vector.load %arg24[%c0_333, %c0_334] : memref<1x128xf32, #tpu.memory_space<vmem>>, vector<1x128xf32>
    %c0_335 = arith.constant 0 : index
    %c0_336 = arith.constant 0 : index
    %505 = vector.load %arg25[%c0_335, %c0_336] : memref<1x1xf32, #tpu.memory_space<vmem>>, vector<1x1xf32>
    %506 = arith.mulf %502, %503 : vector<1x128xf32>
    %cst_337 = arith.constant dense<0.000000e+00> : vector<1xf32>
    %507 = vector.multi_reduction <add>, %506, %cst_337 [1] : vector<1x128xf32> to vector<1xf32>
    %508 = vector.shape_cast %507 : vector<1xf32> to vector<1x1xf32>
    %509 = vector.broadcast %504 : vector<1x128xf32> to vector<8x128xf32>
    %510 = arith.mulf %479, %509 : vector<8x128xf32>
    %cst_338 = arith.constant dense<0.000000e+00> : vector<8xf32>
    %511 = vector.multi_reduction <add>, %510, %cst_338 [1] : vector<8x128xf32> to vector<8xf32>
    %512 = vector.shape_cast %511 : vector<8xf32> to vector<8x1xf32>
    %513 = vector.broadcast %508 : vector<1x1xf32> to vector<8x1xf32>
    %514 = arith.addf %513, %512 : vector<8x1xf32>
    %515 = vector.broadcast %505 : vector<1x1xf32> to vector<8x1xf32>
    %516 = arith.addf %514, %515 : vector<8x1xf32>
    %cst_339 = arith.constant 0.000000e+00 : f32
    %517 = vector.broadcast %cst_339 : f32 to vector<8x1xf32>
    %518 = arith.cmpf oge, %516, %517 : vector<8x1xf32>
    %cst_340 = arith.constant 0.00999999977 : f32
    %519 = vector.broadcast %cst_340 : f32 to vector<8x1xf32>
    %520 = arith.mulf %519, %516 : vector<8x1xf32>
    %521 = arith.select %518, %516, %520 : vector<8x1xi1>, vector<8x1xf32>
    %522 = arith.addf %521, %486 : vector<8x1xf32>
    %cst_341 = arith.constant dense<0xFF800000> : vector<1xf32>
    %523 = vector.multi_reduction <maximumf>, %522, %cst_341 [0] : vector<8x1xf32> to vector<1xf32>
    %524 = vector.shape_cast %523 : vector<1xf32> to vector<1x1xf32>
    %525 = vector.broadcast %524 : vector<1x1xf32> to vector<8x1xf32>
    %526 = arith.subf %522, %525 : vector<8x1xf32>
    %527 = math.exp %526 : vector<8x1xf32>
    %cst_342 = arith.constant dense<0.000000e+00> : vector<1xf32>
    %528 = vector.multi_reduction <add>, %527, %cst_342 [0] : vector<8x1xf32> to vector<1xf32>
    %529 = vector.shape_cast %528 : vector<1xf32> to vector<1x1xf32>
    %530 = tpu.reciprocal %529 {approx = true} : vector<1x1xf32> -> vector<1x1xf32>
    %531 = vector.broadcast %530 : vector<1x1xf32> to vector<8x1xf32>
    %532 = arith.mulf %527, %531 : vector<8x1xf32>
    %533 = arith.mulf %532, %484 : vector<8x1xf32>
    %c0_343 = arith.constant 0 : index
    %c0_344 = arith.constant 0 : index
    %c0_345 = arith.constant 0 : index
    %c0_346 = arith.constant 0 : index
    %534 = vector.load %arg38[%c0_343, %c0_344, %c0_345, %c0_346] : memref<1x2x8x1xf32, #tpu.memory_space<vmem>>, vector<1x1x8x1xf32>
    %535 = vector.shape_cast %534 : vector<1x1x8x1xf32> to vector<8x1xf32>
    %536 = vector.shape_cast %533 : vector<8x1xf32> to vector<1x1x8x1xf32>
    tpu.vector_store %arg38[%c0_343, %c0_344, %c0_345, %c0_346], %536 {strides = array<i32>} : memref<1x2x8x1xf32, #tpu.memory_space<vmem>>, vector<1x1x8x1xf32>,
    %537 = vector.broadcast %533 : vector<8x1xf32> to vector<8x128xf32>
    %538 = arith.mulf %537, %479 : vector<8x128xf32>
    %cst_347 = arith.constant dense<0.000000e+00> : vector<128xf32>
    %539 = vector.multi_reduction <add>, %538, %cst_347 [0] : vector<8x128xf32> to vector<128xf32>
    %540 = vector.shape_cast %539 : vector<128xf32> to vector<1x128xf32>
    %cst_348 = arith.constant dense<0.000000e+00> : vector<1xf32>
    %541 = vector.multi_reduction <add>, %533, %cst_348 [0] : vector<8x1xf32> to vector<1xf32>
    %542 = vector.shape_cast %541 : vector<1xf32> to vector<1x1xf32>
    %c0_349 = arith.constant 0 : index
    %c0_350 = arith.constant 0 : index
    %543 = vector.load %arg26[%c0_349, %c0_350] : memref<128x128xf32, #tpu.memory_space<vmem>>, vector<128x128xf32>
    %cst_351 = arith.constant dense<0.000000e+00> : vector<1x128xf32>
    %544 = tpu.matmul %540, %543, %cst_351 {dimension_numbers = #tpu.dot_dimension_numbers<[1], [0], [0], [1], [0, 0, 1, 1], [], []>} : vector<1x128xf32>, vector<128x128xf32>, vector<1x128xf32> -> vector<1x128xf32>
    %c0_352 = arith.constant 0 : index
    %c0_353 = arith.constant 0 : index
    %545 = vector.load %arg27[%c0_352, %c0_353] : memref<1x128xf32, #tpu.memory_space<vmem>>, vector<1x128xf32>
    %546 = vector.broadcast %542 : vector<1x1xf32> to vector<1x128xf32>
    %547 = arith.mulf %546, %545 : vector<1x128xf32>
    %548 = arith.addf %544, %547 : vector<1x128xf32>
    %cst_354 = arith.constant 0.000000e+00 : f32
    %549 = vector.broadcast %cst_354 : f32 to vector<1x128xf32>
    %550 = arith.cmpf ogt, %548, %549 : vector<1x128xf32>
    %551 = math.exp %548 : vector<1x128xf32>
    %cst_355 = arith.constant 1.000000e+00 : f32
    %552 = vector.broadcast %cst_355 : f32 to vector<1x128xf32>
    %553 = arith.subf %551, %552 : vector<1x128xf32>
    %554 = arith.select %550, %548, %553 : vector<1x128xi1>, vector<1x128xf32>
    %c0_356 = arith.constant 0 : index
    %c0_357 = arith.constant 0 : index
    %555 = vector.load %arg28[%c0_356, %c0_357] : memref<128x384xf32, #tpu.memory_space<vmem>>, vector<128x384xf32>
    %c0_358 = arith.constant 0 : index
    %c0_359 = arith.constant 0 : index
    %556 = vector.load %arg29[%c0_358, %c0_359] : memref<128x384xf32, #tpu.memory_space<vmem>>, vector<128x384xf32>
    %c0_360 = arith.constant 0 : index
    %c0_361 = arith.constant 0 : index
    %557 = vector.load %arg30[%c0_360, %c0_361] : memref<1x384xf32, #tpu.memory_space<vmem>>, vector<1x384xf32>
    %c0_362 = arith.constant 0 : index
    %c0_363 = arith.constant 0 : index
    %558 = vector.load %arg31[%c0_362, %c0_363] : memref<1x384xf32, #tpu.memory_space<vmem>>, vector<1x384xf32>
    %cst_364 = arith.constant dense<0.000000e+00> : vector<1x384xf32>
    %559 = tpu.matmul %554, %555, %cst_364 {dimension_numbers = #tpu.dot_dimension_numbers<[1], [0], [0], [1], [0, 0, 1, 1], [], []>} : vector<1x128xf32>, vector<128x384xf32>, vector<1x384xf32> -> vector<1x384xf32>
    %560 = arith.addf %559, %557 : vector<1x384xf32>
    %cst_365 = arith.constant dense<0.000000e+00> : vector<1x384xf32>
    %561 = tpu.matmul %497, %556, %cst_365 {dimension_numbers = #tpu.dot_dimension_numbers<[1], [0], [0], [1], [0, 0, 1, 1], [], []>} : vector<1x128xf32>, vector<128x384xf32>, vector<1x384xf32> -> vector<1x384xf32>
    %562 = arith.addf %561, %558 : vector<1x384xf32>
    %563 = vector.extract_strided_slice %560 {offsets = [0, 0], sizes = [1, 128], strides = [1, 1]} : vector<1x384xf32> to vector<1x128xf32>
    %564 = vector.extract_strided_slice %562 {offsets = [0, 0], sizes = [1, 128], strides = [1, 1]} : vector<1x384xf32> to vector<1x128xf32>
    %565 = arith.addf %563, %564 : vector<1x128xf32>
    %cst_366 = arith.constant 0.000000e+00 : f32
    %566 = vector.broadcast %cst_366 : f32 to vector<1x128xf32>
    %567 = arith.subf %566, %565 : vector<1x128xf32>
    %568 = math.exp %567 : vector<1x128xf32>
    %cst_367 = arith.constant 1.000000e+00 : f32
    %569 = vector.broadcast %cst_367 : f32 to vector<1x128xf32>
    %570 = arith.addf %569, %568 : vector<1x128xf32>
    %571 = tpu.reciprocal %570 {approx = true} : vector<1x128xf32> -> vector<1x128xf32>
    %572 = vector.extract_strided_slice %560 {offsets = [0, 128], sizes = [1, 128], strides = [1, 1]} : vector<1x384xf32> to vector<1x128xf32>
    %573 = vector.extract_strided_slice %562 {offsets = [0, 128], sizes = [1, 128], strides = [1, 1]} : vector<1x384xf32> to vector<1x128xf32>
    %574 = arith.addf %572, %573 : vector<1x128xf32>
    %cst_368 = arith.constant 0.000000e+00 : f32
    %575 = vector.broadcast %cst_368 : f32 to vector<1x128xf32>
    %576 = arith.subf %575, %574 : vector<1x128xf32>
    %577 = math.exp %576 : vector<1x128xf32>
    %cst_369 = arith.constant 1.000000e+00 : f32
    %578 = vector.broadcast %cst_369 : f32 to vector<1x128xf32>
    %579 = arith.addf %578, %577 : vector<1x128xf32>
    %580 = tpu.reciprocal %579 {approx = true} : vector<1x128xf32> -> vector<1x128xf32>
    %581 = vector.extract_strided_slice %560 {offsets = [0, 256], sizes = [1, 128], strides = [1, 1]} : vector<1x384xf32> to vector<1x128xf32>
    %582 = vector.extract_strided_slice %562 {offsets = [0, 256], sizes = [1, 128], strides = [1, 1]} : vector<1x384xf32> to vector<1x128xf32>
    %583 = arith.mulf %571, %582 : vector<1x128xf32>
    %584 = arith.addf %581, %583 : vector<1x128xf32>
    %585 = math.tanh %584 : vector<1x128xf32>
    %cst_370 = arith.constant 1.000000e+00 : f32
    %586 = vector.broadcast %cst_370 : f32 to vector<1x128xf32>
    %587 = arith.subf %586, %580 : vector<1x128xf32>
    %588 = arith.mulf %587, %585 : vector<1x128xf32>
    %589 = arith.mulf %580, %497 : vector<1x128xf32>
    %590 = arith.addf %588, %589 : vector<1x128xf32>
    %c0_371 = arith.constant 0 : index
    %c1_372 = arith.constant 1 : index
    %c0_373 = arith.constant 0 : index
    %c0_374 = arith.constant 0 : index
    %591 = vector.load %arg37[%c0_371, %c1_372, %c0_373, %c0_374] : memref<1x3x1x128xf32, #tpu.memory_space<vmem>>, vector<1x1x1x128xf32>
    %592 = vector.shape_cast %591 : vector<1x1x1x128xf32> to vector<1x128xf32>
    %593 = vector.shape_cast %590 : vector<1x128xf32> to vector<1x1x1x128xf32>
    tpu.vector_store %arg37[%c0_371, %c1_372, %c0_373, %c0_374], %593 {strides = array<i32>} : memref<1x3x1x128xf32, #tpu.memory_space<vmem>>, vector<1x1x1x128xf32>,
    %cst_375 = arith.constant 0.000000e+00 : f32
    %594 = vector.broadcast %cst_375 : f32 to vector<1x128xf32>
    %595 = arith.maximumf %590, %594 : vector<1x128xf32>
    %c0_376 = arith.constant 0 : index
    %c1_377 = arith.constant 1 : index
    %c0_378 = arith.constant 0 : index
    %c0_379 = arith.constant 0 : index
    %596 = vector.load %arg36[%c0_376, %c1_377, %c0_378, %c0_379] : memref<1x3x1x128xf32, #tpu.memory_space<vmem>>, vector<1x1x1x128xf32>
    %597 = vector.shape_cast %596 : vector<1x1x1x128xf32> to vector<1x128xf32>
    %598 = vector.shape_cast %595 : vector<1x128xf32> to vector<1x1x1x128xf32>
    tpu.vector_store %arg36[%c0_376, %c1_377, %c0_378, %c0_379], %598 {strides = array<i32>} : memref<1x3x1x128xf32, #tpu.memory_space<vmem>>, vector<1x1x1x128xf32>,
    %599 = arith.mulf %595, %503 : vector<1x128xf32>
    %cst_380 = arith.constant dense<0.000000e+00> : vector<1xf32>
    %600 = vector.multi_reduction <add>, %599, %cst_380 [1] : vector<1x128xf32> to vector<1xf32>
    %601 = vector.shape_cast %600 : vector<1xf32> to vector<1x1xf32>
    %602 = vector.broadcast %504 : vector<1x128xf32> to vector<8x128xf32>
    %603 = arith.mulf %479, %602 : vector<8x128xf32>
    %cst_381 = arith.constant dense<0.000000e+00> : vector<8xf32>
    %604 = vector.multi_reduction <add>, %603, %cst_381 [1] : vector<8x128xf32> to vector<8xf32>
    %605 = vector.shape_cast %604 : vector<8xf32> to vector<8x1xf32>
    %606 = vector.broadcast %601 : vector<1x1xf32> to vector<8x1xf32>
    %607 = arith.addf %606, %605 : vector<8x1xf32>
    %608 = vector.broadcast %505 : vector<1x1xf32> to vector<8x1xf32>
    %609 = arith.addf %607, %608 : vector<8x1xf32>
    %cst_382 = arith.constant 0.000000e+00 : f32
    %610 = vector.broadcast %cst_382 : f32 to vector<8x1xf32>
    %611 = arith.cmpf oge, %609, %610 : vector<8x1xf32>
    %cst_383 = arith.constant 0.00999999977 : f32
    %612 = vector.broadcast %cst_383 : f32 to vector<8x1xf32>
    %613 = arith.mulf %612, %609 : vector<8x1xf32>
    %614 = arith.select %611, %609, %613 : vector<8x1xi1>, vector<8x1xf32>
    %615 = arith.addf %614, %486 : vector<8x1xf32>
    %cst_384 = arith.constant dense<0xFF800000> : vector<1xf32>
    %616 = vector.multi_reduction <maximumf>, %615, %cst_384 [0] : vector<8x1xf32> to vector<1xf32>
    %617 = vector.shape_cast %616 : vector<1xf32> to vector<1x1xf32>
    %618 = vector.broadcast %617 : vector<1x1xf32> to vector<8x1xf32>
    %619 = arith.subf %615, %618 : vector<8x1xf32>
    %620 = math.exp %619 : vector<8x1xf32>
    %cst_385 = arith.constant dense<0.000000e+00> : vector<1xf32>
    %621 = vector.multi_reduction <add>, %620, %cst_385 [0] : vector<8x1xf32> to vector<1xf32>
    %622 = vector.shape_cast %621 : vector<1xf32> to vector<1x1xf32>
    %623 = tpu.reciprocal %622 {approx = true} : vector<1x1xf32> -> vector<1x1xf32>
    %624 = vector.broadcast %623 : vector<1x1xf32> to vector<8x1xf32>
    %625 = arith.mulf %620, %624 : vector<8x1xf32>
    %626 = arith.mulf %625, %484 : vector<8x1xf32>
    %c0_386 = arith.constant 0 : index
    %c1_387 = arith.constant 1 : index
    %c0_388 = arith.constant 0 : index
    %c0_389 = arith.constant 0 : index
    %627 = vector.load %arg38[%c0_386, %c1_387, %c0_388, %c0_389] : memref<1x2x8x1xf32, #tpu.memory_space<vmem>>, vector<1x1x8x1xf32>
    %628 = vector.shape_cast %627 : vector<1x1x8x1xf32> to vector<8x1xf32>
    %629 = vector.shape_cast %626 : vector<8x1xf32> to vector<1x1x8x1xf32>
    tpu.vector_store %arg38[%c0_386, %c1_387, %c0_388, %c0_389], %629 {strides = array<i32>} : memref<1x2x8x1xf32, #tpu.memory_space<vmem>>, vector<1x1x8x1xf32>,
    %630 = vector.broadcast %626 : vector<8x1xf32> to vector<8x128xf32>
    %631 = arith.mulf %630, %479 : vector<8x128xf32>
    %cst_390 = arith.constant dense<0.000000e+00> : vector<128xf32>
    %632 = vector.multi_reduction <add>, %631, %cst_390 [0] : vector<8x128xf32> to vector<128xf32>
    %633 = vector.shape_cast %632 : vector<128xf32> to vector<1x128xf32>
    %cst_391 = arith.constant dense<0.000000e+00> : vector<1xf32>
    %634 = vector.multi_reduction <add>, %626, %cst_391 [0] : vector<8x1xf32> to vector<1xf32>
    %635 = vector.shape_cast %634 : vector<1xf32> to vector<1x1xf32>
    %c0_392 = arith.constant 0 : index
    %c0_393 = arith.constant 0 : index
    %636 = vector.load %arg26[%c0_392, %c0_393] : memref<128x128xf32, #tpu.memory_space<vmem>>, vector<128x128xf32>
    %cst_394 = arith.constant dense<0.000000e+00> : vector<1x128xf32>
    %637 = tpu.matmul %633, %636, %cst_394 {dimension_numbers = #tpu.dot_dimension_numbers<[1], [0], [0], [1], [0, 0, 1, 1], [], []>} : vector<1x128xf32>, vector<128x128xf32>, vector<1x128xf32> -> vector<1x128xf32>
    %c0_395 = arith.constant 0 : index
    %c0_396 = arith.constant 0 : index
    %638 = vector.load %arg27[%c0_395, %c0_396] : memref<1x128xf32, #tpu.memory_space<vmem>>, vector<1x128xf32>
    %639 = vector.broadcast %635 : vector<1x1xf32> to vector<1x128xf32>
    %640 = arith.mulf %639, %638 : vector<1x128xf32>
    %641 = arith.addf %637, %640 : vector<1x128xf32>
    %cst_397 = arith.constant 0.000000e+00 : f32
    %642 = vector.broadcast %cst_397 : f32 to vector<1x128xf32>
    %643 = arith.cmpf ogt, %641, %642 : vector<1x128xf32>
    %644 = math.exp %641 : vector<1x128xf32>
    %cst_398 = arith.constant 1.000000e+00 : f32
    %645 = vector.broadcast %cst_398 : f32 to vector<1x128xf32>
    %646 = arith.subf %644, %645 : vector<1x128xf32>
    %647 = arith.select %643, %641, %646 : vector<1x128xi1>, vector<1x128xf32>
    %c0_399 = arith.constant 0 : index
    %c0_400 = arith.constant 0 : index
    %648 = vector.load %arg28[%c0_399, %c0_400] : memref<128x384xf32, #tpu.memory_space<vmem>>, vector<128x384xf32>
    %c0_401 = arith.constant 0 : index
    %c0_402 = arith.constant 0 : index
    %649 = vector.load %arg29[%c0_401, %c0_402] : memref<128x384xf32, #tpu.memory_space<vmem>>, vector<128x384xf32>
    %c0_403 = arith.constant 0 : index
    %c0_404 = arith.constant 0 : index
    %650 = vector.load %arg30[%c0_403, %c0_404] : memref<1x384xf32, #tpu.memory_space<vmem>>, vector<1x384xf32>
    %c0_405 = arith.constant 0 : index
    %c0_406 = arith.constant 0 : index
    %651 = vector.load %arg31[%c0_405, %c0_406] : memref<1x384xf32, #tpu.memory_space<vmem>>, vector<1x384xf32>
    %cst_407 = arith.constant dense<0.000000e+00> : vector<1x384xf32>
    %652 = tpu.matmul %647, %648, %cst_407 {dimension_numbers = #tpu.dot_dimension_numbers<[1], [0], [0], [1], [0, 0, 1, 1], [], []>} : vector<1x128xf32>, vector<128x384xf32>, vector<1x384xf32> -> vector<1x384xf32>
    %653 = arith.addf %652, %650 : vector<1x384xf32>
    %cst_408 = arith.constant dense<0.000000e+00> : vector<1x384xf32>
    %654 = tpu.matmul %590, %649, %cst_408 {dimension_numbers = #tpu.dot_dimension_numbers<[1], [0], [0], [1], [0, 0, 1, 1], [], []>} : vector<1x128xf32>, vector<128x384xf32>, vector<1x384xf32> -> vector<1x384xf32>
    %655 = arith.addf %654, %651 : vector<1x384xf32>
    %656 = vector.extract_strided_slice %653 {offsets = [0, 0], sizes = [1, 128], strides = [1, 1]} : vector<1x384xf32> to vector<1x128xf32>
    %657 = vector.extract_strided_slice %655 {offsets = [0, 0], sizes = [1, 128], strides = [1, 1]} : vector<1x384xf32> to vector<1x128xf32>
    %658 = arith.addf %656, %657 : vector<1x128xf32>
    %cst_409 = arith.constant 0.000000e+00 : f32
    %659 = vector.broadcast %cst_409 : f32 to vector<1x128xf32>
    %660 = arith.subf %659, %658 : vector<1x128xf32>
    %661 = math.exp %660 : vector<1x128xf32>
    %cst_410 = arith.constant 1.000000e+00 : f32
    %662 = vector.broadcast %cst_410 : f32 to vector<1x128xf32>
    %663 = arith.addf %662, %661 : vector<1x128xf32>
    %664 = tpu.reciprocal %663 {approx = true} : vector<1x128xf32> -> vector<1x128xf32>
    %665 = vector.extract_strided_slice %653 {offsets = [0, 128], sizes = [1, 128], strides = [1, 1]} : vector<1x384xf32> to vector<1x128xf32>
    %666 = vector.extract_strided_slice %655 {offsets = [0, 128], sizes = [1, 128], strides = [1, 1]} : vector<1x384xf32> to vector<1x128xf32>
    %667 = arith.addf %665, %666 : vector<1x128xf32>
    %cst_411 = arith.constant 0.000000e+00 : f32
    %668 = vector.broadcast %cst_411 : f32 to vector<1x128xf32>
    %669 = arith.subf %668, %667 : vector<1x128xf32>
    %670 = math.exp %669 : vector<1x128xf32>
    %cst_412 = arith.constant 1.000000e+00 : f32
    %671 = vector.broadcast %cst_412 : f32 to vector<1x128xf32>
    %672 = arith.addf %671, %670 : vector<1x128xf32>
    %673 = tpu.reciprocal %672 {approx = true} : vector<1x128xf32> -> vector<1x128xf32>
    %674 = vector.extract_strided_slice %653 {offsets = [0, 256], sizes = [1, 128], strides = [1, 1]} : vector<1x384xf32> to vector<1x128xf32>
    %675 = vector.extract_strided_slice %655 {offsets = [0, 256], sizes = [1, 128], strides = [1, 1]} : vector<1x384xf32> to vector<1x128xf32>
    %676 = arith.mulf %664, %675 : vector<1x128xf32>
    %677 = arith.addf %674, %676 : vector<1x128xf32>
    %678 = math.tanh %677 : vector<1x128xf32>
    %cst_413 = arith.constant 1.000000e+00 : f32
    %679 = vector.broadcast %cst_413 : f32 to vector<1x128xf32>
    %680 = arith.subf %679, %673 : vector<1x128xf32>
    %681 = arith.mulf %680, %678 : vector<1x128xf32>
    %682 = arith.mulf %673, %590 : vector<1x128xf32>
    %683 = arith.addf %681, %682 : vector<1x128xf32>
    %c0_414 = arith.constant 0 : index
    %c2_415 = arith.constant 2 : index
    %c0_416 = arith.constant 0 : index
    %c0_417 = arith.constant 0 : index
    %684 = vector.load %arg37[%c0_414, %c2_415, %c0_416, %c0_417] : memref<1x3x1x128xf32, #tpu.memory_space<vmem>>, vector<1x1x1x128xf32>
    %685 = vector.shape_cast %684 : vector<1x1x1x128xf32> to vector<1x128xf32>
    %686 = vector.shape_cast %683 : vector<1x128xf32> to vector<1x1x1x128xf32>
    tpu.vector_store %arg37[%c0_414, %c2_415, %c0_416, %c0_417], %686 {strides = array<i32>} : memref<1x3x1x128xf32, #tpu.memory_space<vmem>>, vector<1x1x1x128xf32>,
    %cst_418 = arith.constant 0.000000e+00 : f32
    %687 = vector.broadcast %cst_418 : f32 to vector<1x128xf32>
    %688 = arith.maximumf %683, %687 : vector<1x128xf32>
    %c0_419 = arith.constant 0 : index
    %c2_420 = arith.constant 2 : index
    %c0_421 = arith.constant 0 : index
    %c0_422 = arith.constant 0 : index
    %689 = vector.load %arg36[%c0_419, %c2_420, %c0_421, %c0_422] : memref<1x3x1x128xf32, #tpu.memory_space<vmem>>, vector<1x1x1x128xf32>
    %690 = vector.shape_cast %689 : vector<1x1x1x128xf32> to vector<1x128xf32>
    %691 = vector.shape_cast %688 : vector<1x128xf32> to vector<1x1x1x128xf32>
    tpu.vector_store %arg36[%c0_419, %c2_420, %c0_421, %c0_422], %691 {strides = array<i32>} : memref<1x3x1x128xf32, #tpu.memory_space<vmem>>, vector<1x1x1x128xf32>,
    %c0_423 = arith.constant 0 : index
    %c0_424 = arith.constant 0 : index
    %692 = vector.load %arg32[%c0_423, %c0_424] : memref<128x128xf32, #tpu.memory_space<vmem>>, vector<128x128xf32>
    %cst_425 = arith.constant dense<0.000000e+00> : vector<1x128xf32>
    %693 = tpu.matmul %683, %692, %cst_425 {dimension_numbers = #tpu.dot_dimension_numbers<[1], [0], [0], [1], [0, 0, 1, 1], [], []>} : vector<1x128xf32>, vector<128x128xf32>, vector<1x128xf32> -> vector<1x128xf32>
    %c0_426 = arith.constant 0 : index
    %c0_427 = arith.constant 0 : index
    %694 = vector.load %arg33[%c0_426, %c0_427] : memref<1x128xf32, #tpu.memory_space<vmem>>, vector<1x128xf32>
    %695 = arith.addf %693, %694 : vector<1x128xf32>
    %c0_428 = arith.constant 0 : index
    %c0_429 = arith.constant 0 : index
    %c0_430 = arith.constant 0 : index
    %696 = vector.load %arg39[%c0_428, %c0_429, %c0_430] : memref<1x1x128xf32, #tpu.memory_space<vmem>>, vector<1x1x128xf32>
    %697 = vector.shape_cast %696 : vector<1x1x128xf32> to vector<1x128xf32>
    %698 = vector.shape_cast %695 : vector<1x128xf32> to vector<1x1x128xf32>
    tpu.vector_store %arg39[%c0_428, %c0_429, %c0_430], %698 {strides = array<i32>} : memref<1x1x128xf32, #tpu.memory_space<vmem>>, vector<1x1x128xf32>,
    return
  }
  func.func @transform_0(%arg0: i32) -> (i32, i32, i32) {
    %c0_i32 = arith.constant 0 : i32
    %c0_i32_0 = arith.constant 0 : i32
    %c0_i32_1 = arith.constant 0 : i32
    return %arg0, %c0_i32, %c0_i32_0 : i32, i32, i32
  }
  func.func @transform_1(%arg0: i32) -> (i32, i32, i32) {
    %c0_i32 = arith.constant 0 : i32
    %c0_i32_0 = arith.constant 0 : i32
    %c0_i32_1 = arith.constant 0 : i32
    return %arg0, %c0_i32, %c0_i32_0 : i32, i32, i32
  }
  func.func @transform_2(%arg0: i32) -> (i32, i32, i32, i32) {
    %c0_i32 = arith.constant 0 : i32
    %c0_i32_0 = arith.constant 0 : i32
    %c0_i32_1 = arith.constant 0 : i32
    %c0_i32_2 = arith.constant 0 : i32
    return %arg0, %c0_i32, %c0_i32_0, %c0_i32_1 : i32, i32, i32, i32
  }
  func.func @transform_3(%arg0: i32) -> (i32, i32, i32, i32) {
    %c0_i32 = arith.constant 0 : i32
    %c0_i32_0 = arith.constant 0 : i32
    %c0_i32_1 = arith.constant 0 : i32
    %c0_i32_2 = arith.constant 0 : i32
    return %arg0, %c0_i32, %c0_i32_0, %c0_i32_1 : i32, i32, i32, i32
  }
  func.func @transform_4(%arg0: i32) -> (i32, i32, i32, i32) {
    %c0_i32 = arith.constant 0 : i32
    %c0_i32_0 = arith.constant 0 : i32
    %c0_i32_1 = arith.constant 0 : i32
    %c0_i32_2 = arith.constant 0 : i32
    return %arg0, %c0_i32, %c0_i32_0, %c0_i32_1 : i32, i32, i32, i32
  }
  func.func @transform_5(%arg0: i32) -> (i32, i32, i32, i32) {
    %c0_i32 = arith.constant 0 : i32
    %c0_i32_0 = arith.constant 0 : i32
    %c0_i32_1 = arith.constant 0 : i32
    %c0_i32_2 = arith.constant 0 : i32
    return %arg0, %c0_i32, %c0_i32_0, %c0_i32_1 : i32, i32, i32, i32
  }
  func.func @transform_6(%arg0: i32) -> (i32, i32, i32) {
    %c0_i32 = arith.constant 0 : i32
    %c0_i32_0 = arith.constant 0 : i32
    %c0_i32_1 = arith.constant 0 : i32
    return %arg0, %c0_i32, %c0_i32_0 : i32, i32, i32
  }
  func.func @transform_7(%arg0: i32) -> (i32, i32, i32) {
    %c0_i32 = arith.constant 0 : i32
    %c0_i32_0 = arith.constant 0 : i32
    %c0_i32_1 = arith.constant 0 : i32
    return %arg0, %c0_i32, %c0_i32_0 : i32, i32, i32
  }
  func.func @transform_8(%arg0: i32) -> (i32, i32) {
    %c0_i32 = arith.constant 0 : i32
    %c0_i32_0 = arith.constant 0 : i32
    %c0_i32_1 = arith.constant 0 : i32
    return %c0_i32, %c0_i32_0 : i32, i32
  }
  func.func @transform_9(%arg0: i32) -> (i32, i32) {
    %c0_i32 = arith.constant 0 : i32
    %c0_i32_0 = arith.constant 0 : i32
    %c0_i32_1 = arith.constant 0 : i32
    return %c0_i32, %c0_i32_0 : i32, i32
  }
  func.func @transform_10(%arg0: i32) -> (i32, i32) {
    %c0_i32 = arith.constant 0 : i32
    %c0_i32_0 = arith.constant 0 : i32
    %c0_i32_1 = arith.constant 0 : i32
    return %c0_i32, %c0_i32_0 : i32, i32
  }
  func.func @transform_11(%arg0: i32) -> (i32, i32) {
    %c0_i32 = arith.constant 0 : i32
    %c0_i32_0 = arith.constant 0 : i32
    %c0_i32_1 = arith.constant 0 : i32
    return %c0_i32, %c0_i32_0 : i32, i32
  }
  func.func @transform_12(%arg0: i32) -> (i32, i32) {
    %c0_i32 = arith.constant 0 : i32
    %c0_i32_0 = arith.constant 0 : i32
    %c0_i32_1 = arith.constant 0 : i32
    return %c0_i32, %c0_i32_0 : i32, i32
  }
  func.func @transform_13(%arg0: i32) -> (i32, i32, i32) {
    %c0_i32 = arith.constant 0 : i32
    %c0_i32_0 = arith.constant 0 : i32
    %c0_i32_1 = arith.constant 0 : i32
    %c0_i32_2 = arith.constant 0 : i32
    return %c0_i32, %c0_i32_0, %c0_i32_1 : i32, i32, i32
  }
  func.func @transform_14(%arg0: i32) -> (i32, i32, i32) {
    %c0_i32 = arith.constant 0 : i32
    %c0_i32_0 = arith.constant 0 : i32
    %c0_i32_1 = arith.constant 0 : i32
    %c0_i32_2 = arith.constant 0 : i32
    return %c0_i32, %c0_i32_0, %c0_i32_1 : i32, i32, i32
  }
  func.func @transform_15(%arg0: i32) -> (i32, i32, i32) {
    %c0_i32 = arith.constant 0 : i32
    %c0_i32_0 = arith.constant 0 : i32
    %c0_i32_1 = arith.constant 0 : i32
    %c0_i32_2 = arith.constant 0 : i32
    return %c0_i32, %c0_i32_0, %c0_i32_1 : i32, i32, i32
  }
  func.func @transform_16(%arg0: i32) -> (i32, i32, i32) {
    %c0_i32 = arith.constant 0 : i32
    %c0_i32_0 = arith.constant 0 : i32
    %c0_i32_1 = arith.constant 0 : i32
    %c0_i32_2 = arith.constant 0 : i32
    return %c0_i32, %c0_i32_0, %c0_i32_1 : i32, i32, i32
  }
  func.func @transform_17(%arg0: i32) -> (i32, i32, i32) {
    %c0_i32 = arith.constant 0 : i32
    %c0_i32_0 = arith.constant 0 : i32
    %c0_i32_1 = arith.constant 0 : i32
    %c0_i32_2 = arith.constant 0 : i32
    return %c0_i32, %c0_i32_0, %c0_i32_1 : i32, i32, i32
  }
  func.func @transform_18(%arg0: i32) -> (i32, i32, i32) {
    %c0_i32 = arith.constant 0 : i32
    %c0_i32_0 = arith.constant 0 : i32
    %c0_i32_1 = arith.constant 0 : i32
    %c0_i32_2 = arith.constant 0 : i32
    return %c0_i32, %c0_i32_0, %c0_i32_1 : i32, i32, i32
  }
  func.func @transform_19(%arg0: i32) -> (i32, i32, i32) {
    %c0_i32 = arith.constant 0 : i32
    %c0_i32_0 = arith.constant 0 : i32
    %c0_i32_1 = arith.constant 0 : i32
    %c0_i32_2 = arith.constant 0 : i32
    return %c0_i32, %c0_i32_0, %c0_i32_1 : i32, i32, i32
  }
  func.func @transform_20(%arg0: i32) -> (i32, i32, i32) {
    %c0_i32 = arith.constant 0 : i32
    %c0_i32_0 = arith.constant 0 : i32
    %c0_i32_1 = arith.constant 0 : i32
    %c0_i32_2 = arith.constant 0 : i32
    return %c0_i32, %c0_i32_0, %c0_i32_1 : i32, i32, i32
  }
  func.func @transform_21(%arg0: i32) -> (i32, i32, i32) {
    %c0_i32 = arith.constant 0 : i32
    %c0_i32_0 = arith.constant 0 : i32
    %c0_i32_1 = arith.constant 0 : i32
    %c0_i32_2 = arith.constant 0 : i32
    return %c0_i32, %c0_i32_0, %c0_i32_1 : i32, i32, i32
  }
  func.func @transform_22(%arg0: i32) -> (i32, i32) {
    %c0_i32 = arith.constant 0 : i32
    %c0_i32_0 = arith.constant 0 : i32
    %c0_i32_1 = arith.constant 0 : i32
    return %c0_i32, %c0_i32_0 : i32, i32
  }
  func.func @transform_23(%arg0: i32) -> (i32, i32) {
    %c0_i32 = arith.constant 0 : i32
    %c0_i32_0 = arith.constant 0 : i32
    %c0_i32_1 = arith.constant 0 : i32
    return %c0_i32, %c0_i32_0 : i32, i32
  }
  func.func @transform_24(%arg0: i32) -> (i32, i32) {
    %c0_i32 = arith.constant 0 : i32
    %c0_i32_0 = arith.constant 0 : i32
    %c0_i32_1 = arith.constant 0 : i32
    return %c0_i32, %c0_i32_0 : i32, i32
  }
  func.func @transform_25(%arg0: i32) -> (i32, i32) {
    %c0_i32 = arith.constant 0 : i32
    %c0_i32_0 = arith.constant 0 : i32
    %c0_i32_1 = arith.constant 0 : i32
    return %c0_i32, %c0_i32_0 : i32, i32
  }
  func.func @transform_26(%arg0: i32) -> (i32, i32) {
    %c0_i32 = arith.constant 0 : i32
    %c0_i32_0 = arith.constant 0 : i32
    %c0_i32_1 = arith.constant 0 : i32
    return %c0_i32, %c0_i32_0 : i32, i32
  }
  func.func @transform_27(%arg0: i32) -> (i32, i32) {
    %c0_i32 = arith.constant 0 : i32
    %c0_i32_0 = arith.constant 0 : i32
    %c0_i32_1 = arith.constant 0 : i32
    return %c0_i32, %c0_i32_0 : i32, i32
  }
  func.func @transform_28(%arg0: i32) -> (i32, i32) {
    %c0_i32 = arith.constant 0 : i32
    %c0_i32_0 = arith.constant 0 : i32
    %c0_i32_1 = arith.constant 0 : i32
    return %c0_i32, %c0_i32_0 : i32, i32
  }
  func.func @transform_29(%arg0: i32) -> (i32, i32) {
    %c0_i32 = arith.constant 0 : i32
    %c0_i32_0 = arith.constant 0 : i32
    %c0_i32_1 = arith.constant 0 : i32
    return %c0_i32, %c0_i32_0 : i32, i32
  }
  func.func @transform_30(%arg0: i32) -> (i32, i32) {
    %c0_i32 = arith.constant 0 : i32
    %c0_i32_0 = arith.constant 0 : i32
    %c0_i32_1 = arith.constant 0 : i32
    return %c0_i32, %c0_i32_0 : i32, i32
  }
  func.func @transform_31(%arg0: i32) -> (i32, i32) {
    %c0_i32 = arith.constant 0 : i32
    %c0_i32_0 = arith.constant 0 : i32
    %c0_i32_1 = arith.constant 0 : i32
    return %c0_i32, %c0_i32_0 : i32, i32
  }
  func.func @transform_32(%arg0: i32) -> (i32, i32) {
    %c0_i32 = arith.constant 0 : i32
    %c0_i32_0 = arith.constant 0 : i32
    %c0_i32_1 = arith.constant 0 : i32
    return %c0_i32, %c0_i32_0 : i32, i32
  }
  func.func @transform_33(%arg0: i32) -> (i32, i32, i32, i32) {
    %c0_i32 = arith.constant 0 : i32
    %c0_i32_0 = arith.constant 0 : i32
    %c0_i32_1 = arith.constant 0 : i32
    %c0_i32_2 = arith.constant 0 : i32
    return %arg0, %c0_i32, %c0_i32_0, %c0_i32_1 : i32, i32, i32, i32
  }
  func.func @transform_34(%arg0: i32) -> (i32, i32, i32, i32) {
    %c0_i32 = arith.constant 0 : i32
    %c0_i32_0 = arith.constant 0 : i32
    %c0_i32_1 = arith.constant 0 : i32
    %c0_i32_2 = arith.constant 0 : i32
    return %arg0, %c0_i32, %c0_i32_0, %c0_i32_1 : i32, i32, i32, i32
  }
  func.func @transform_35(%arg0: i32) -> (i32, i32, i32, i32) {
    %c0_i32 = arith.constant 0 : i32
    %c0_i32_0 = arith.constant 0 : i32
    %c0_i32_1 = arith.constant 0 : i32
    %c0_i32_2 = arith.constant 0 : i32
    return %arg0, %c0_i32, %c0_i32_0, %c0_i32_1 : i32, i32, i32, i32
  }
  func.func @transform_36(%arg0: i32) -> (i32, i32, i32, i32) {
    %c0_i32 = arith.constant 0 : i32
    %c0_i32_0 = arith.constant 0 : i32
    %c0_i32_1 = arith.constant 0 : i32
    %c0_i32_2 = arith.constant 0 : i32
    return %arg0, %c0_i32, %c0_i32_0, %c0_i32_1 : i32, i32, i32, i32
  }
  func.func @transform_37(%arg0: i32) -> (i32, i32, i32, i32) {
    %c0_i32 = arith.constant 0 : i32
    %c0_i32_0 = arith.constant 0 : i32
    %c0_i32_1 = arith.constant 0 : i32
    %c0_i32_2 = arith.constant 0 : i32
    return %arg0, %c0_i32, %c0_i32_0, %c0_i32_1 : i32, i32, i32, i32
  }
  func.func @transform_38(%arg0: i32) -> (i32, i32, i32) {
    %c0_i32 = arith.constant 0 : i32
    %c0_i32_0 = arith.constant 0 : i32
    %c0_i32_1 = arith.constant 0 : i32
    return %arg0, %c0_i32, %c0_i32_0 : i32, i32, i32
  }
}

</mosaic_0001>

<llo_original>
// kernel: fingerprint_forward.1
$region0: #{fingerprint_forward.1}
  #allocation0 [shape = 'u32[]', space=smem, size = 0x4, offset = 0x4, fixed_abs, tag = 'smem constant byte address 0x4 - core index']
  #allocation1 [shape = 'u32[72,128]{1,0:T(1,128)}', space=vmem, size = 0x9000, scoped, tag = 'internal scratch']
  #allocation2 [shape = 'f32[1,1]{1,0:T(1,128)S(1)}', space=vmem, size = 0x200, scoped, tag = 'scoped memory for fingerprint_forward.1']
  %s0 = inlined_call_operand.smem [shape: u32[39], index: -1, kind: input, shape index: {}]
  %s1 = sld [smem:[%s0]]
  %s2 = scalar_lea.smem %s0, 1
  %s3 = sld [smem:[%s2]]
  %s4 = scalar_lea.smem %s0, 2
  %s5 = sld [smem:[%s4]]
  %s6 = scalar_lea.smem %s0, 3
  %s7 = sld [smem:[%s6]]
  %s8 = scalar_lea.smem %s0, 4
  %s9 = sld [smem:[%s8]]
  %s10 = scalar_lea.smem %s0, 5
  %s11 = sld [smem:[%s10]]
  %s12 = scalar_lea.smem %s0, 6
  %s13 = sld [smem:[%s12]]
  %s14 = scalar_lea.smem %s0, 7
  %s15 = sld [smem:[%s14]]
  %s16 = scalar_lea.smem %s0, 8
  %s17 = sld [smem:[%s16]]
  %s18 = scalar_lea.smem %s0, 9
  %s19 = sld [smem:[%s18]]
  %s20 = scalar_lea.smem %s0, 10
  %s21 = sld [smem:[%s20]]
  %s22 = scalar_lea.smem %s0, 11
  %s23 = sld [smem:[%s22]]
  %s24 = scalar_lea.smem %s0, 12
  %s25 = sld [smem:[%s24]]
  %s26 = scalar_lea.smem %s0, 13
  %s27 = sld [smem:[%s26]]
  %s28 = scalar_lea.smem %s0, 14
  %s29 = sld [smem:[%s28]]
  %s30 = scalar_lea.smem %s0, 15
  %s31 = sld [smem:[%s30]]
  %s32 = scalar_lea.smem %s0, 16
  %s33 = sld [smem:[%s32]]
  %s34 = scalar_lea.smem %s0, 17
  %s35 = sld [smem:[%s34]]
  %s36 = scalar_lea.smem %s0, 18
  %s37 = sld [smem:[%s36]]
  %s38 = scalar_lea.smem %s0, 19
  %s39 = sld [smem:[%s38]]
  %s40 = scalar_lea.smem %s0, 20
  %s41 = sld [smem:[%s40]]
  %s42 = scalar_lea.smem %s0, 21
  %s43 = sld [smem:[%s42]]
  %s44 = scalar_lea.smem %s0, 22
  %s45 = sld [smem:[%s44]]
  %s46 = scalar_lea.smem %s0, 23
  %s47 = sld [smem:[%s46]]
  %s48 = scalar_lea.smem %s0, 24
  %s49 = sld [smem:[%s48]]
  %s50 = scalar_lea.smem %s0, 25
  %s51 = sld [smem:[%s50]]
  %s52 = scalar_lea.smem %s0, 26
  %s53 = sld [smem:[%s52]]
  %s54 = scalar_lea.smem %s0, 27
  %s55 = sld [smem:[%s54]]
  %s56 = scalar_lea.smem %s0, 28
  %s57 = sld [smem:[%s56]]
  %s58 = scalar_lea.smem %s0, 29
  %s59 = sld [smem:[%s58]]
  %s60 = scalar_lea.smem %s0, 30
  %s61 = sld [smem:[%s60]]
  %s62 = scalar_lea.smem %s0, 31
  %s63 = sld [smem:[%s62]]
  %s64 = scalar_lea.smem %s0, 32
  %s65 = sld [smem:[%s64]]
  %s66 = scalar_lea.smem %s0, 33
  %s67 = sld [smem:[%s66]]
  %s68 = scalar_lea.smem %s0, 34
  %s69 = sld [smem:[%s68]]
  %s70 = scalar_lea.smem %s0, 35
  %s71 = sld [smem:[%s70]]
  %s72 = scalar_lea.smem %s0, 36
  %s73 = sld [smem:[%s72]]
  %s74 = scalar_lea.smem %s0, 37
  %s75 = sld [smem:[%s74]]
  %s76 = scalar_lea.smem %s0, 38
  %s77 = sld [smem:[%s76]]
  %78 = xla_tuple %s67, %s69, %s71, %s73, %s75, %s77
  %s79 = sld [smem:[#allocation0]]
  $region225: #{fingerprint_forward.1} parent=0
    _
  %s81 = ssub.s32 1, %s79
  %s82 = scalar_select 0, %s81, %s79
  %v83 = vstv %s49
  %84 = vst [vmem:[#allocation2] sm:$0x1] %v83
  $region1: #{fingerprint_forward.1} parent=0
    #allocation3 [shape = 'u8[131072]{0}', space=vmem, size = 0x20000, scoped, tag = 'input window, operand 16, single buffered']
    #allocation4 [shape = 's32[2]{0}', space=sflag, size = 0x8, scoped, tag = 'scoped memory for fingerprint_forward.1']
    #allocation5 [shape = 's32[2]{0}', space=sflag, size = 0x8, scoped, tag = 'scoped memory for fingerprint_forward.1']
    #allocation6 [shape = 'u8[393216]{0}', space=vmem, size = 0x60000, scoped, tag = 'input window, operand 18, single buffered']
    #allocation7 [shape = 's32[1]{0}', space=sflag, size = 0x4, scoped, tag = 'scoped memory for fingerprint_forward.1']
    #allocation8 [shape = 'u8[393216]{0}', space=vmem, size = 0x60000, scoped, tag = 'input window, operand 19, single buffered']
    #allocation9 [shape = 'u8[196608]{0}', space=vmem, size = 0x30000, scoped, tag = 'input window, operand 27, single buffered']
    #allocation10 [shape = 's32[1]{0}', space=sflag, size = 0x4, scoped, tag = 'scoped memory for fingerprint_forward.1']
    #allocation11 [shape = 'u8[196608]{0}', space=vmem, size = 0x30000, scoped, tag = 'input window, operand 28, single buffered']
    #allocation12 [shape = 'u8[1024]{0}', space=vmem, size = 0x400, scoped, tag = 'output window, operand 5']
    %85 = vsyncpa [#allocation4], 0
    %86 = vsyncpa [#allocation7], 0
    %87 = vsyncpa [#allocation10], 0
    %88 = vsyncpa [#allocation5], 0
    %s89 = scalar_lea.sflag [#allocation5], 1
    %90 = vsyncpa %s89, 0
    loop: start=0, step=1, limit=4
    $region2: #{fingerprint_forward.1} parent=1 // loop_pre_header
      _
    $region3: #{fingerprint_forward.1} parent=1 // loop_header
      %s92 = sphi 0, %s96
      %p93 = scmp.ge.s32.totalorder %s92, 4
      %s102 = sphi 0, %s104
      %s105 = sphi 0, %s102
      %s106 = sphi 0, %s105
      %s122 = sphi 0, %s106
      %s128 = sphi 0, %s130
      %s131 = sphi 0, %s128
      %s132 = sphi 0, %s131
      %s148 = sphi 0, %s132
      %s154 = sphi 0, %s156
      %s157 = sphi 0, %s154
      %s158 = sphi 0, %s157
      %s174 = sphi 0, %s158
      %s180 = sphi 0, %s182
      %s183 = sphi 0, %s180
      %s184 = sphi 0, %s183
      %s200 = sphi 0, %s184
      %s206 = sphi 0, %s208
      %s209 = sphi 0, %s206
      %s210 = sphi 0, %s209
      %s226 = sphi 0, %s210
      %s232 = sphi 0, %s234
      %s235 = sphi 0, %s232
      %s236 = sphi 0, %s235
      %s252 = sphi 0, %s236
      %s258 = sphi 0, %s260
      %s261 = sphi 0, %s258
      %s262 = sphi 0, %s261
      %s278 = sphi 0, %s262
      %s284 = sphi 0, %s286
      %s287 = sphi 0, %s284
      %s288 = sphi 0, %s287
      %s304 = sphi 0, %s288
      %s308 = sphi 0, %s308
      %s310 = sphi 0, %s308
      %s311 = sphi 0, %s310
      %s325 = sphi 0, %s311
      %s329 = sphi 0, %s329
      %s331 = sphi 0, %s329
      %s332 = sphi 0, %s331
      %s346 = sphi 0, %s332
      %s350 = sphi 0, %s350
      %s352 = sphi 0, %s350
      %s353 = sphi 0, %s352
      %s367 = sphi 0, %s353
      %s371 = sphi 0, %s371
      %s373 = sphi 0, %s371
      %s374 = sphi 0, %s373
      %s388 = sphi 0, %s374
      %s392 = sphi 0, %s392
      %s394 = sphi 0, %s392
      %s395 = sphi 0, %s394
      %s409 = sphi 0, %s395
      %s413 = sphi 0, %s413
      %s415 = sphi 0, %s413
      %s416 = sphi 0, %s415
      %s430 = sphi 0, %s416
      %s434 = sphi 0, %s434
      %s436 = sphi 0, %s434
      %s437 = sphi 0, %s436
      %s451 = sphi 0, %s437
      %s455 = sphi 0, %s455
      %s457 = sphi 0, %s455
      %s458 = sphi 0, %s457
      %s472 = sphi 0, %s458
      %s476 = sphi 0, %s476
      %s478 = sphi 0, %s476
      %s479 = sphi 0, %s478
      %s493 = sphi 0, %s479
      %s497 = sphi 0, %s497
      %s499 = sphi 0, %s497
      %s500 = sphi 0, %s499
      %s514 = sphi 0, %s500
      %s518 = sphi 0, %s518
      %s520 = sphi 0, %s518
      %s521 = sphi 0, %s520
      %s535 = sphi 0, %s521
      %s539 = sphi 0, %s539
      %s541 = sphi 0, %s539
      %s542 = sphi 0, %s541
      %s556 = sphi 0, %s542
      %s560 = sphi 0, %s560
      %s562 = sphi 0, %s560
      %s563 = sphi 0, %s562
      %s577 = sphi 0, %s563
      %s581 = sphi 0, %s581
      %s583 = sphi 0, %s581
      %s584 = sphi 0, %s583
      %s598 = sphi 0, %s584
      %s602 = sphi 0, %s602
      %s604 = sphi 0, %s602
      %s605 = sphi 0, %s604
      %s619 = sphi 0, %s605
      %s623 = sphi 0, %s623
      %s625 = sphi 0, %s623
      %s626 = sphi 0, %s625
      %s640 = sphi 0, %s626
      %s644 = sphi 0, %s644
      %s646 = sphi 0, %s644
      %s647 = sphi 0, %s646
      %s661 = sphi 0, %s647
      %s665 = sphi 0, %s665
      %s667 = sphi 0, %s665
      %s668 = sphi 0, %s667
      %s682 = sphi 0, %s668
      %s686 = sphi 0, %s686
      %s688 = sphi 0, %s686
      %s689 = sphi 0, %s688
      %s703 = sphi 0, %s689
      %s707 = sphi 0, %s707
      %s709 = sphi 0, %s707
      %s710 = sphi 0, %s709
      %s724 = sphi 0, %s710
      %s728 = sphi 0, %s728
      %s730 = sphi 0, %s728
      %s731 = sphi 0, %s730
      %s745 = sphi 0, %s731
      %s749 = sphi 0, %s749
      %s751 = sphi 0, %s749
      %s752 = sphi 0, %s751
      %s766 = sphi 0, %s752
      %s770 = sphi 0, %s770
      %s772 = sphi 0, %s770
      %s773 = sphi 0, %s772
      %s787 = sphi 0, %s773
      %s791 = sphi 0, %s791
      %s793 = sphi 0, %s791
      %s794 = sphi 0, %s793
      %s808 = sphi 0, %s794
      %s812 = sphi 0, %s812
      %s814 = sphi 0, %s812
      %s815 = sphi 0, %s814
      %s829 = sphi 0, %s815
      %s835 = sphi 0, %s837
      %s838 = sphi 0, %s835
      %s839 = sphi 0, %s838
      %s855 = sphi 0, %s839
      %s861 = sphi 0, %s863
      %s864 = sphi 0, %s861
      %s865 = sphi 0, %s864
      %s881 = sphi 0, %s865
      %s887 = sphi 0, %s889
      %s890 = sphi 0, %s887
      %s891 = sphi 0, %s890
      %s907 = sphi 0, %s891
      %s913 = sphi 0, %s915
      %s916 = sphi 0, %s913
      %s917 = sphi 0, %s916
      %s933 = sphi 0, %s917
      %s939 = sphi 0, %s941
      %s942 = sphi 0, %s939
      %s943 = sphi 0, %s942
      %s959 = sphi 0, %s943
      %s965 = sphi 0, %s967
      %s968 = sphi 0, %s965
      %s969 = sphi 0, %s968
      %s985 = sphi 0, %s969
    $region4: #{fingerprint_forward.1} parent=1 // loop_header_branch
      %95 = sbr.rel (%p93) target = $region8
    $region5: #{fingerprint_forward.1} parent=1 // loop_body
      %s97 = ssub.s32 %s92, 1
      %s98 = ssub.s32 %s92, 2
      %s99 = sadd.s32 %s92, 1
      %s100 = ssub.s32 %s92, %s99
      %p101 = scmp.eq.s32.totalorder %s100, 0
      %s103 = sadd.s32 %s102, 1
      %s104 = scalar_select %p101, %s102, %s103
      %p107 = pneg %p101
      %p108 = scmp.eq.s32.totalorder %s92, 1
      %p109 = por %p107, %p108
      %p110 = scmp.ne.s32.totalorder %s102, %s105
      %p111 = scmp.eq.s32.totalorder %s92, 0
      %p112 = por %p110, %p111
      %p113 = scmp.ne.s32.totalorder %s102, %s105
      %p114 = scmp.eq.s32.totalorder %s97, 1
      %p115 = por %p113, %p114
      %p116 = scmp.ne.s32.totalorder %s105, %s106
      %p117 = scmp.eq.s32.totalorder %s97, 0
      %p118 = por %p116, %p117
      %p119 = scmp.ne.s32.totalorder %s105, %s106
      %p120 = scmp.eq.s32.totalorder %s98, 1
      %p121 = por %p119, %p120
      %p123 = scmp.ne.s32.totalorder %s106, %s122
      %p124 = scmp.eq.s32.totalorder %s98, 0
      %p125 = por %p123, %p124
      %s126 = ssub.s32 %s92, %s99
      %p127 = scmp.eq.s32.totalorder %s126, 0
      %s129 = sadd.s32 %s128, 1
      %s130 = scalar_select %p127, %s128, %s129
      %p133 = pneg %p127
      %p134 = scmp.eq.s32.totalorder %s92, 1
      %p135 = por %p133, %p134
      %p136 = scmp.ne.s32.totalorder %s128, %s131
      %p137 = scmp.eq.s32.totalorder %s92, 0
      %p138 = por %p136, %p137
      %p139 = scmp.ne.s32.totalorder %s128, %s131
      %p140 = scmp.eq.s32.totalorder %s97, 1
      %p141 = por %p139, %p140
      %p142 = scmp.ne.s32.totalorder %s131, %s132
      %p143 = scmp.eq.s32.totalorder %s97, 0
      %p144 = por %p142, %p143
      %p145 = scmp.ne.s32.totalorder %s131, %s132
      %p146 = scmp.eq.s32.totalorder %s98, 1
      %p147 = por %p145, %p146
      %p149 = scmp.ne.s32.totalorder %s132, %s148
      %p150 = scmp.eq.s32.totalorder %s98, 0
      %p151 = por %p149, %p150
      %s152 = ssub.s32 %s92, %s99
      %p153 = scmp.eq.s32.totalorder %s152, 0
      %s155 = sadd.s32 %s154, 1
      %s156 = scalar_select %p153, %s154, %s155
      %p159 = pneg %p153
      %p160 = scmp.eq.s32.totalorder %s92, 1
      %p161 = por %p159, %p160
      %p162 = scmp.ne.s32.totalorder %s154, %s157
      %p163 = scmp.eq.s32.totalorder %s92, 0
      %p164 = por %p162, %p163
      %p165 = scmp.ne.s32.totalorder %s154, %s157
      %p166 = scmp.eq.s32.totalorder %s97, 1
      %p167 = por %p165, %p166
      %p168 = scmp.ne.s32.totalorder %s157, %s158
      %p169 = scmp.eq.s32.totalorder %s97, 0
      %p170 = por %p168, %p169
      %p171 = scmp.ne.s32.totalorder %s157, %s158
      %p172 = scmp.eq.s32.totalorder %s98, 1
      %p173 = por %p171, %p172
      %p175 = scmp.ne.s32.totalorder %s158, %s174
      %p176 = scmp.eq.s32.totalorder %s98, 0
      %p177 = por %p175, %p176
      %s178 = ssub.s32 %s92, %s99
      %p179 = scmp.eq.s32.totalorder %s178, 0
      %s181 = sadd.s32 %s180, 1
      %s182 = scalar_select %p179, %s180, %s181
      %p185 = pneg %p179
      %p186 = scmp.eq.s32.totalorder %s92, 1
      %p187 = por %p185, %p186
      %p188 = scmp.ne.s32.totalorder %s180, %s183
      %p189 = scmp.eq.s32.totalorder %s92, 0
      %p190 = por %p188, %p189
      %p191 = scmp.ne.s32.totalorder %s180, %s183
      %p192 = scmp.eq.s32.totalorder %s97, 1
      %p193 = por %p191, %p192
      %p194 = scmp.ne.s32.totalorder %s183, %s184
      %p195 = scmp.eq.s32.totalorder %s97, 0
      %p196 = por %p194, %p195
      %p197 = scmp.ne.s32.totalorder %s183, %s184
      %p198 = scmp.eq.s32.totalorder %s98, 1
      %p199 = por %p197, %p198
      %p201 = scmp.ne.s32.totalorder %s184, %s200
      %p202 = scmp.eq.s32.totalorder %s98, 0
      %p203 = por %p201, %p202
      %s204 = ssub.s32 %s92, %s99
      %p205 = scmp.eq.s32.totalorder %s204, 0
      %s207 = sadd.s32 %s206, 1
      %s208 = scalar_select %p205, %s206, %s207
      %p211 = pneg %p205
      %p212 = scmp.eq.s32.totalorder %s92, 1
      %p213 = por %p211, %p212
      %p214 = scmp.ne.s32.totalorder %s206, %s209
      %p215 = scmp.eq.s32.totalorder %s92, 0
      %p216 = por %p214, %p215
      %p217 = scmp.ne.s32.totalorder %s206, %s209
      %p218 = scmp.eq.s32.totalorder %s97, 1
      %p219 = por %p217, %p218
      %p220 = scmp.ne.s32.totalorder %s209, %s210
      %p221 = scmp.eq.s32.totalorder %s97, 0
      %p222 = por %p220, %p221
      %p223 = scmp.ne.s32.totalorder %s209, %s210
      %p224 = scmp.eq.s32.totalorder %s98, 1
      %p225 = por %p223, %p224
      %p227 = scmp.ne.s32.totalorder %s210, %s226
      %p228 = scmp.eq.s32.totalorder %s98, 0
      %p229 = por %p227, %p228
      %s230 = ssub.s32 %s92, %s99
      %p231 = scmp.eq.s32.totalorder %s230, 0
      %s233 = sadd.s32 %s232, 1
      %s234 = scalar_select %p231, %s232, %s233
      %p237 = pneg %p231
      %p238 = scmp.eq.s32.totalorder %s92, 1
      %p239 = por %p237, %p238
      %p240 = scmp.ne.s32.totalorder %s232, %s235
      %p241 = scmp.eq.s32.totalorder %s92, 0
      %p242 = por %p240, %p241
      %p243 = scmp.ne.s32.totalorder %s232, %s235
      %p244 = scmp.eq.s32.totalorder %s97, 1
      %p245 = por %p243, %p244
      %p246 = scmp.ne.s32.totalorder %s235, %s236
      %p247 = scmp.eq.s32.totalorder %s97, 0
      %p248 = por %p246, %p247
      %p249 = scmp.ne.s32.totalorder %s235, %s236
      %p250 = scmp.eq.s32.totalorder %s98, 1
      %p251 = por %p249, %p250
      %p253 = scmp.ne.s32.totalorder %s236, %s252
      %p254 = scmp.eq.s32.totalorder %s98, 0
      %p255 = por %p253, %p254
      %s256 = ssub.s32 %s92, %s99
      %p257 = scmp.eq.s32.totalorder %s256, 0
      %s259 = sadd.s32 %s258, 1
      %s260 = scalar_select %p257, %s258, %s259
      %p263 = pneg %p257
      %p264 = scmp.eq.s32.totalorder %s92, 1
      %p265 = por %p263, %p264
      %p266 = scmp.ne.s32.totalorder %s258, %s261
      %p267 = scmp.eq.s32.totalorder %s92, 0
      %p268 = por %p266, %p267
      %p269 = scmp.ne.s32.totalorder %s258, %s261
      %p270 = scmp.eq.s32.totalorder %s97, 1
      %p271 = por %p269, %p270
      %p272 = scmp.ne.s32.totalorder %s261, %s262
      %p273 = scmp.eq.s32.totalorder %s97, 0
      %p274 = por %p272, %p273
      %p275 = scmp.ne.s32.totalorder %s261, %s262
      %p276 = scmp.eq.s32.totalorder %s98, 1
      %p277 = por %p275, %p276
      %p279 = scmp.ne.s32.totalorder %s262, %s278
      %p280 = scmp.eq.s32.totalorder %s98, 0
      %p281 = por %p279, %p280
      %s282 = ssub.s32 %s92, %s99
      %p283 = scmp.eq.s32.totalorder %s282, 0
      %s285 = sadd.s32 %s284, 1
      %s286 = scalar_select %p283, %s284, %s285
      %p289 = pneg %p283
      %p290 = scmp.eq.s32.totalorder %s92, 1
      %p291 = por %p289, %p290
      %p292 = scmp.ne.s32.totalorder %s284, %s287
      %p293 = scmp.eq.s32.totalorder %s92, 0
      %p294 = por %p292, %p293
      %p295 = scmp.ne.s32.totalorder %s284, %s287
      %p296 = scmp.eq.s32.totalorder %s97, 1
      %p297 = por %p295, %p296
      %p298 = scmp.ne.s32.totalorder %s287, %s288
      %p299 = scmp.eq.s32.totalorder %s97, 0
      %p300 = por %p298, %p299
      %p301 = scmp.ne.s32.totalorder %s287, %s288
      %p302 = scmp.eq.s32.totalorder %s98, 1
      %p303 = por %p301, %p302
      %p305 = scmp.ne.s32.totalorder %s288, %s304
      %p306 = scmp.eq.s32.totalorder %s98, 0
      %p307 = por %p305, %p306
      %s309 = sadd.s32 %s308, 1
      %p312 = scmp.eq.s32.totalorder %s92, 1
      %p313 = scmp.ne.s32.totalorder %s308, %s310
      %p314 = scmp.eq.s32.totalorder %s92, 0
      %p315 = por %p313, %p314
      %p316 = scmp.ne.s32.totalorder %s308, %s310
      %p317 = scmp.eq.s32.totalorder %s97, 1
      %p318 = por %p316, %p317
      %p319 = scmp.ne.s32.totalorder %s310, %s311
      %p320 = scmp.eq.s32.totalorder %s97, 0
      %p321 = por %p319, %p320
      %p322 = scmp.ne.s32.totalorder %s310, %s311
      %p323 = scmp.eq.s32.totalorder %s98, 1
      %p324 = por %p322, %p323
      %p326 = scmp.ne.s32.totalorder %s311, %s325
      %p327 = scmp.eq.s32.totalorder %s98, 0
      %p328 = por %p326, %p327
      %s330 = sadd.s32 %s329, 1
      %p333 = scmp.eq.s32.totalorder %s92, 1
      %p334 = scmp.ne.s32.totalorder %s329, %s331
      %p335 = scmp.eq.s32.totalorder %s92, 0
      %p336 = por %p334, %p335
      %p337 = scmp.ne.s32.totalorder %s329, %s331
      %p338 = scmp.eq.s32.totalorder %s97, 1
      %p339 = por %p337, %p338
      %p340 = scmp.ne.s32.totalorder %s331, %s332
      %p341 = scmp.eq.s32.totalorder %s97, 0
      %p342 = por %p340, %p341
      %p343 = scmp.ne.s32.totalorder %s331, %s332
      %p344 = scmp.eq.s32.totalorder %s98, 1
      %p345 = por %p343, %p344
      %p347 = scmp.ne.s32.totalorder %s332, %s346
      %p348 = scmp.eq.s32.totalorder %s98, 0
      %p349 = por %p347, %p348
      %s351 = sadd.s32 %s350, 1
      %p354 = scmp.eq.s32.totalorder %s92, 1
      %p355 = scmp.ne.s32.totalorder %s350, %s352
      %p356 = scmp.eq.s32.totalorder %s92, 0
      %p357 = por %p355, %p356
      %p358 = scmp.ne.s32.totalorder %s350, %s352
      %p359 = scmp.eq.s32.totalorder %s97, 1
      %p360 = por %p358, %p359
      %p361 = scmp.ne.s32.totalorder %s352, %s353
      %p362 = scmp.eq.s32.totalorder %s97, 0
      %p363 = por %p361, %p362
      %p364 = scmp.ne.s32.totalorder %s352, %s353
      %p365 = scmp.eq.s32.totalorder %s98, 1
      %p366 = por %p364, %p365
      %p368 = scmp.ne.s32.totalorder %s353, %s367
      %p369 = scmp.eq.s32.totalorder %s98, 0
      %p370 = por %p368, %p369
      %s372 = sadd.s32 %s371, 1
      %p375 = scmp.eq.s32.totalorder %s92, 1
      %p376 = scmp.ne.s32.totalorder %s371, %s373
      %p377 = scmp.eq.s32.totalorder %s92, 0
      %p378 = por %p376, %p377
      %p379 = scmp.ne.s32.totalorder %s371, %s373
      %p380 = scmp.eq.s32.totalorder %s97, 1
      %p381 = por %p379, %p380
      %p382 = scmp.ne.s32.totalorder %s373, %s374
      %p383 = scmp.eq.s32.totalorder %s97, 0
      %p384 = por %p382, %p383
      %p385 = scmp.ne.s32.totalorder %s373, %s374
      %p386 = scmp.eq.s32.totalorder %s98, 1
      %p387 = por %p385, %p386
      %p389 = scmp.ne.s32.totalorder %s374, %s388
      %p390 = scmp.eq.s32.totalorder %s98, 0
      %p391 = por %p389, %p390
      %s393 = sadd.s32 %s392, 1
      %p396 = scmp.eq.s32.totalorder %s92, 1
      %p397 = scmp.ne.s32.totalorder %s392, %s394
      %p398 = scmp.eq.s32.totalorder %s92, 0
      %p399 = por %p397, %p398
      %p400 = scmp.ne.s32.totalorder %s392, %s394
      %p401 = scmp.eq.s32.totalorder %s97, 1
      %p402 = por %p400, %p401
      %p403 = scmp.ne.s32.totalorder %s394, %s395
      %p404 = scmp.eq.s32.totalorder %s97, 0
      %p405 = por %p403, %p404
      %p406 = scmp.ne.s32.totalorder %s394, %s395
      %p407 = scmp.eq.s32.totalorder %s98, 1
      %p408 = por %p406, %p407
      %p410 = scmp.ne.s32.totalorder %s395, %s409
      %p411 = scmp.eq.s32.totalorder %s98, 0
      %p412 = por %p410, %p411
      %s414 = sadd.s32 %s413, 1
      %p417 = scmp.eq.s32.totalorder %s92, 1
      %p418 = scmp.ne.s32.totalorder %s413, %s415
      %p419 = scmp.eq.s32.totalorder %s92, 0
      %p420 = por %p418, %p419
      %p421 = scmp.ne.s32.totalorder %s413, %s415
      %p422 = scmp.eq.s32.totalorder %s97, 1
      %p423 = por %p421, %p422
      %p424 = scmp.ne.s32.totalorder %s415, %s416
      %p425 = scmp.eq.s32.totalorder %s97, 0
      %p426 = por %p424, %p425
      %p427 = scmp.ne.s32.totalorder %s415, %s416
      %p428 = scmp.eq.s32.totalorder %s98, 1
      %p429 = por %p427, %p428
      %p431 = scmp.ne.s32.totalorder %s416, %s430
      %p432 = scmp.eq.s32.totalorder %s98, 0
      %p433 = por %p431, %p432
      %s435 = sadd.s32 %s434, 1
      %p438 = scmp.eq.s32.totalorder %s92, 1
      %p439 = scmp.ne.s32.totalorder %s434, %s436
      %p440 = scmp.eq.s32.totalorder %s92, 0
      %p441 = por %p439, %p440
      %p442 = scmp.ne.s32.totalorder %s434, %s436
      %p443 = scmp.eq.s32.totalorder %s97, 1
      %p444 = por %p442, %p443
      %p445 = scmp.ne.s32.totalorder %s436, %s437
      %p446 = scmp.eq.s32.totalorder %s97, 0
      %p447 = por %p445, %p446
      %p448 = scmp.ne.s32.totalorder %s436, %s437
      %p449 = scmp.eq.s32.totalorder %s98, 1
      %p450 = por %p448, %p449
      %p452 = scmp.ne.s32.totalorder %s437, %s451
      %p453 = scmp.eq.s32.totalorder %s98, 0
      %p454 = por %p452, %p453
      %s456 = sadd.s32 %s455, 1
      %p459 = scmp.eq.s32.totalorder %s92, 1
      %p460 = scmp.ne.s32.totalorder %s455, %s457
      %p461 = scmp.eq.s32.totalorder %s92, 0
      %p462 = por %p460, %p461
      %p463 = scmp.ne.s32.totalorder %s455, %s457
      %p464 = scmp.eq.s32.totalorder %s97, 1
      %p465 = por %p463, %p464
      %p466 = scmp.ne.s32.totalorder %s457, %s458
      %p467 = scmp.eq.s32.totalorder %s97, 0
      %p468 = por %p466, %p467
      %p469 = scmp.ne.s32.totalorder %s457, %s458
      %p470 = scmp.eq.s32.totalorder %s98, 1
      %p471 = por %p469, %p470
      %p473 = scmp.ne.s32.totalorder %s458, %s472
      %p474 = scmp.eq.s32.totalorder %s98, 0
      %p475 = por %p473, %p474
      %s477 = sadd.s32 %s476, 1
      %p480 = scmp.eq.s32.totalorder %s92, 1
      %p481 = scmp.ne.s32.totalorder %s476, %s478
      %p482 = scmp.eq.s32.totalorder %s92, 0
      %p483 = por %p481, %p482
      %p484 = scmp.ne.s32.totalorder %s476, %s478
      %p485 = scmp.eq.s32.totalorder %s97, 1
      %p486 = por %p484, %p485
      %p487 = scmp.ne.s32.totalorder %s478, %s479
      %p488 = scmp.eq.s32.totalorder %s97, 0
      %p489 = por %p487, %p488
      %p490 = scmp.ne.s32.totalorder %s478, %s479
      %p491 = scmp.eq.s32.totalorder %s98, 1
      %p492 = por %p490, %p491
      %p494 = scmp.ne.s32.totalorder %s479, %s493
      %p495 = scmp.eq.s32.totalorder %s98, 0
      %p496 = por %p494, %p495
      %s498 = sadd.s32 %s497, 1
      %p501 = scmp.eq.s32.totalorder %s92, 1
      %p502 = scmp.ne.s32.totalorder %s497, %s499
      %p503 = scmp.eq.s32.totalorder %s92, 0
      %p504 = por %p502, %p503
      %p505 = scmp.ne.s32.totalorder %s497, %s499
      %p506 = scmp.eq.s32.totalorder %s97, 1
      %p507 = por %p505, %p506
      %p508 = scmp.ne.s32.totalorder %s499, %s500
      %p509 = scmp.eq.s32.totalorder %s97, 0
      %p510 = por %p508, %p509
      %p511 = scmp.ne.s32.totalorder %s499, %s500
      %p512 = scmp.eq.s32.totalorder %s98, 1
      %p513 = por %p511, %p512
      %p515 = scmp.ne.s32.totalorder %s500, %s514
      %p516 = scmp.eq.s32.totalorder %s98, 0
      %p517 = por %p515, %p516
      %s519 = sadd.s32 %s518, 1
      %p522 = scmp.eq.s32.totalorder %s92, 1
      %p523 = scmp.ne.s32.totalorder %s518, %s520
      %p524 = scmp.eq.s32.totalorder %s92, 0
      %p525 = por %p523, %p524
      %p526 = scmp.ne.s32.totalorder %s518, %s520
      %p527 = scmp.eq.s32.totalorder %s97, 1
      %p528 = por %p526, %p527
      %p529 = scmp.ne.s32.totalorder %s520, %s521
      %p530 = scmp.eq.s32.totalorder %s97, 0
      %p531 = por %p529, %p530
      %p532 = scmp.ne.s32.totalorder %s520, %s521
      %p533 = scmp.eq.s32.totalorder %s98, 1
      %p534 = por %p532, %p533
      %p536 = scmp.ne.s32.totalorder %s521, %s535
      %p537 = scmp.eq.s32.totalorder %s98, 0
      %p538 = por %p536, %p537
      %s540 = sadd.s32 %s539, 1
      %p543 = scmp.eq.s32.totalorder %s92, 1
      %p544 = scmp.ne.s32.totalorder %s539, %s541
      %p545 = scmp.eq.s32.totalorder %s92, 0
      %p546 = por %p544, %p545
      %p547 = scmp.ne.s32.totalorder %s539, %s541
      %p548 = scmp.eq.s32.totalorder %s97, 1
      %p549 = por %p547, %p548
      %p550 = scmp.ne.s32.totalorder %s541, %s542
      %p551 = scmp.eq.s32.totalorder %s97, 0
      %p552 = por %p550, %p551
      %p553 = scmp.ne.s32.totalorder %s541, %s542
      %p554 = scmp.eq.s32.totalorder %s98, 1
      %p555 = por %p553, %p554
      %p557 = scmp.ne.s32.totalorder %s542, %s556
      %p558 = scmp.eq.s32.totalorder %s98, 0
      %p559 = por %p557, %p558
      %s561 = sadd.s32 %s560, 1
      %p564 = scmp.eq.s32.totalorder %s92, 1
      %p565 = scmp.ne.s32.totalorder %s560, %s562
      %p566 = scmp.eq.s32.totalorder %s92, 0
      %p567 = por %p565, %p566
      %p568 = scmp.ne.s32.totalorder %s560, %s562
      %p569 = scmp.eq.s32.totalorder %s97, 1
      %p570 = por %p568, %p569
      %p571 = scmp.ne.s32.totalorder %s562, %s563
      %p572 = scmp.eq.s32.totalorder %s97, 0
      %p573 = por %p571, %p572
      %p574 = scmp.ne.s32.totalorder %s562, %s563
      %p575 = scmp.eq.s32.totalorder %s98, 1
      %p576 = por %p574, %p575
      %p578 = scmp.ne.s32.totalorder %s563, %s577
      %p579 = scmp.eq.s32.totalorder %s98, 0
      %p580 = por %p578, %p579
      %s582 = sadd.s32 %s581, 1
      %p585 = scmp.eq.s32.totalorder %s92, 1
      %p586 = scmp.ne.s32.totalorder %s581, %s583
      %p587 = scmp.eq.s32.totalorder %s92, 0
      %p588 = por %p586, %p587
      %p589 = scmp.ne.s32.totalorder %s581, %s583
      %p590 = scmp.eq.s32.totalorder %s97, 1
      %p591 = por %p589, %p590
      %p592 = scmp.ne.s32.totalorder %s583, %s584
      %p593 = scmp.eq.s32.totalorder %s97, 0
      %p594 = por %p592, %p593
      %p595 = scmp.ne.s32.totalorder %s583, %s584
      %p596 = scmp.eq.s32.totalorder %s98, 1
      %p597 = por %p595, %p596
      %p599 = scmp.ne.s32.totalorder %s584, %s598
      %p600 = scmp.eq.s32.totalorder %s98, 0
      %p601 = por %p599, %p600
      %s603 = sadd.s32 %s602, 1
      %p606 = scmp.eq.s32.totalorder %s92, 1
      %p607 = scmp.ne.s32.totalorder %s602, %s604
      %p608 = scmp.eq.s32.totalorder %s92, 0
      %p609 = por %p607, %p608
      %p610 = scmp.ne.s32.totalorder %s602, %s604
      %p611 = scmp.eq.s32.totalorder %s97, 1
      %p612 = por %p610, %p611
      %p613 = scmp.ne.s32.totalorder %s604, %s605
      %p614 = scmp.eq.s32.totalorder %s97, 0
      %p615 = por %p613, %p614
      %p616 = scmp.ne.s32.totalorder %s604, %s605
      %p617 = scmp.eq.s32.totalorder %s98, 1
      %p618 = por %p616, %p617
      %p620 = scmp.ne.s32.totalorder %s605, %s619
      %p621 = scmp.eq.s32.totalorder %s98, 0
      %p622 = por %p620, %p621
      %s624 = sadd.s32 %s623, 1
      %p627 = scmp.eq.s32.totalorder %s92, 1
      %p628 = scmp.ne.s32.totalorder %s623, %s625
      %p629 = scmp.eq.s32.totalorder %s92, 0
      %p630 = por %p628, %p629
      %p631 = scmp.ne.s32.totalorder %s623, %s625
      %p632 = scmp.eq.s32.totalorder %s97, 1
      %p633 = por %p631, %p632
      %p634 = scmp.ne.s32.totalorder %s625, %s626
      %p635 = scmp.eq.s32.totalorder %s97, 0
      %p636 = por %p634, %p635
      %p637 = scmp.ne.s32.totalorder %s625, %s626
      %p638 = scmp.eq.s32.totalorder %s98, 1
      %p639 = por %p637, %p638
      %p641 = scmp.ne.s32.totalorder %s626, %s640
      %p642 = scmp.eq.s32.totalorder %s98, 0
      %p643 = por %p641, %p642
      %s645 = sadd.s32 %s644, 1
      %p648 = scmp.eq.s32.totalorder %s92, 1
      %p649 = scmp.ne.s32.totalorder %s644, %s646
      %p650 = scmp.eq.s32.totalorder %s92, 0
      %p651 = por %p649, %p650
      %p652 = scmp.ne.s32.totalorder %s644, %s646
      %p653 = scmp.eq.s32.totalorder %s97, 1
      %p654 = por %p652, %p653
      %p655 = scmp.ne.s32.totalorder %s646, %s647
      %p656 = scmp.eq.s32.totalorder %s97, 0
      %p657 = por %p655, %p656
      %p658 = scmp.ne.s32.totalorder %s646, %s647
      %p659 = scmp.eq.s32.totalorder %s98, 1
      %p660 = por %p658, %p659
      %p662 = scmp.ne.s32.totalorder %s647, %s661
      %p663 = scmp.eq.s32.totalorder %s98, 0
      %p664 = por %p662, %p663
      %s666 = sadd.s32 %s665, 1
      %p669 = scmp.eq.s32.totalorder %s92, 1
      %p670 = scmp.ne.s32.totalorder %s665, %s667
      %p671 = scmp.eq.s32.totalorder %s92, 0
      %p672 = por %p670, %p671
      %p673 = scmp.ne.s32.totalorder %s665, %s667
      %p674 = scmp.eq.s32.totalorder %s97, 1
      %p675 = por %p673, %p674
      %p676 = scmp.ne.s32.totalorder %s667, %s668
      %p677 = scmp.eq.s32.totalorder %s97, 0
      %p678 = por %p676, %p677
      %p679 = scmp.ne.s32.totalorder %s667, %s668
      %p680 = scmp.eq.s32.totalorder %s98, 1
      %p681 = por %p679, %p680
      %p683 = scmp.ne.s32.totalorder %s668, %s682
      %p684 = scmp.eq.s32.totalorder %s98, 0
      %p685 = por %p683, %p684
      %s687 = sadd.s32 %s686, 1
      %p690 = scmp.eq.s32.totalorder %s92, 1
      %p691 = scmp.ne.s32.totalorder %s686, %s688
      %p692 = scmp.eq.s32.totalorder %s92, 0
      %p693 = por %p691, %p692
      %p694 = scmp.ne.s32.totalorder %s686, %s688
      %p695 = scmp.eq.s32.totalorder %s97, 1
      %p696 = por %p694, %p695
      %p697 = scmp.ne.s32.totalorder %s688, %s689
      %p698 = scmp.eq.s32.totalorder %s97, 0
      %p699 = por %p697, %p698
      %p700 = scmp.ne.s32.totalorder %s688, %s689
      %p701 = scmp.eq.s32.totalorder %s98, 1
      %p702 = por %p700, %p701
      %p704 = scmp.ne.s32.totalorder %s689, %s703
      %p705 = scmp.eq.s32.totalorder %s98, 0
      %p706 = por %p704, %p705
      %s708 = sadd.s32 %s707, 1
      %p711 = scmp.eq.s32.totalorder %s92, 1
      %p712 = scmp.ne.s32.totalorder %s707, %s709
      %p713 = scmp.eq.s32.totalorder %s92, 0
      %p714 = por %p712, %p713
      %p715 = scmp.ne.s32.totalorder %s707, %s709
      %p716 = scmp.eq.s32.totalorder %s97, 1
      %p717 = por %p715, %p716
      %p718 = scmp.ne.s32.totalorder %s709, %s710
      %p719 = scmp.eq.s32.totalorder %s97, 0
      %p720 = por %p718, %p719
      %p721 = scmp.ne.s32.totalorder %s709, %s710
      %p722 = scmp.eq.s32.totalorder %s98, 1
      %p723 = por %p721, %p722
      %p725 = scmp.ne.s32.totalorder %s710, %s724
      %p726 = scmp.eq.s32.totalorder %s98, 0
      %p727 = por %p725, %p726
      %s729 = sadd.s32 %s728, 1
      %p732 = scmp.eq.s32.totalorder %s92, 1
      %p733 = scmp.ne.s32.totalorder %s728, %s730
      %p734 = scmp.eq.s32.totalorder %s92, 0
      %p735 = por %p733, %p734
      %p736 = scmp.ne.s32.totalorder %s728, %s730
      %p737 = scmp.eq.s32.totalorder %s97, 1
      %p738 = por %p736, %p737
      %p739 = scmp.ne.s32.totalorder %s730, %s731
      %p740 = scmp.eq.s32.totalorder %s97, 0
      %p741 = por %p739, %p740
      %p742 = scmp.ne.s32.totalorder %s730, %s731
      %p743 = scmp.eq.s32.totalorder %s98, 1
      %p744 = por %p742, %p743
      %p746 = scmp.ne.s32.totalorder %s731, %s745
      %p747 = scmp.eq.s32.totalorder %s98, 0
      %p748 = por %p746, %p747
      %s750 = sadd.s32 %s749, 1
      %p753 = scmp.eq.s32.totalorder %s92, 1
      %p754 = scmp.ne.s32.totalorder %s749, %s751
      %p755 = scmp.eq.s32.totalorder %s92, 0
      %p756 = por %p754, %p755
      %p757 = scmp.ne.s32.totalorder %s749, %s751
      %p758 = scmp.eq.s32.totalorder %s97, 1
      %p759 = por %p757, %p758
      %p760 = scmp.ne.s32.totalorder %s751, %s752
      %p761 = scmp.eq.s32.totalorder %s97, 0
      %p762 = por %p760, %p761
      %p763 = scmp.ne.s32.totalorder %s751, %s752
      %p764 = scmp.eq.s32.totalorder %s98, 1
      %p765 = por %p763, %p764
      %p767 = scmp.ne.s32.totalorder %s752, %s766
      %p768 = scmp.eq.s32.totalorder %s98, 0
      %p769 = por %p767, %p768
      %s771 = sadd.s32 %s770, 1
      %p774 = scmp.eq.s32.totalorder %s92, 1
      %p775 = scmp.ne.s32.totalorder %s770, %s772
      %p776 = scmp.eq.s32.totalorder %s92, 0
      %p777 = por %p775, %p776
      %p778 = scmp.ne.s32.totalorder %s770, %s772
      %p779 = scmp.eq.s32.totalorder %s97, 1
      %p780 = por %p778, %p779
      %p781 = scmp.ne.s32.totalorder %s772, %s773
      %p782 = scmp.eq.s32.totalorder %s97, 0
      %p783 = por %p781, %p782
      %p784 = scmp.ne.s32.totalorder %s772, %s773
      %p785 = scmp.eq.s32.totalorder %s98, 1
      %p786 = por %p784, %p785
      %p788 = scmp.ne.s32.totalorder %s773, %s787
      %p789 = scmp.eq.s32.totalorder %s98, 0
      %p790 = por %p788, %p789
      %s792 = sadd.s32 %s791, 1
      %p795 = scmp.eq.s32.totalorder %s92, 1
      %p796 = scmp.ne.s32.totalorder %s791, %s793
      %p797 = scmp.eq.s32.totalorder %s92, 0
      %p798 = por %p796, %p797
      %p799 = scmp.ne.s32.totalorder %s791, %s793
      %p800 = scmp.eq.s32.totalorder %s97, 1
      %p801 = por %p799, %p800
      %p802 = scmp.ne.s32.totalorder %s793, %s794
      %p803 = scmp.eq.s32.totalorder %s97, 0
      %p804 = por %p802, %p803
      %p805 = scmp.ne.s32.totalorder %s793, %s794
      %p806 = scmp.eq.s32.totalorder %s98, 1
      %p807 = por %p805, %p806
      %p809 = scmp.ne.s32.totalorder %s794, %s808
      %p810 = scmp.eq.s32.totalorder %s98, 0
      %p811 = por %p809, %p810
      %s813 = sadd.s32 %s812, 1
      %p816 = scmp.eq.s32.totalorder %s92, 1
      %p817 = scmp.ne.s32.totalorder %s812, %s814
      %p818 = scmp.eq.s32.totalorder %s92, 0
      %p819 = por %p817, %p818
      %p820 = scmp.ne.s32.totalorder %s812, %s814
      %p821 = scmp.eq.s32.totalorder %s97, 1
      %p822 = por %p820, %p821
      %p823 = scmp.ne.s32.totalorder %s814, %s815
      %p824 = scmp.eq.s32.totalorder %s97, 0
      %p825 = por %p823, %p824
      %p826 = scmp.ne.s32.totalorder %s814, %s815
      %p827 = scmp.eq.s32.totalorder %s98, 1
      %p828 = por %p826, %p827
      %p830 = scmp.ne.s32.totalorder %s815, %s829
      %p831 = scmp.eq.s32.totalorder %s98, 0
      %p832 = por %p830, %p831
      %s833 = ssub.s32 %s92, %s99
      %p834 = scmp.eq.s32.totalorder %s833, 0
      %s836 = sadd.s32 %s835, 1
      %s837 = scalar_select %p834, %s835, %s836
      %p840 = pneg %p834
      %p841 = scmp.eq.s32.totalorder %s92, 1
      %p842 = por %p840, %p841
      %p843 = scmp.ne.s32.totalorder %s835, %s838
      %p844 = scmp.eq.s32.totalorder %s92, 0
      %p845 = por %p843, %p844
      %p846 = scmp.ne.s32.totalorder %s835, %s838
      %p847 = scmp.eq.s32.totalorder %s97, 1
      %p848 = por %p846, %p847
      %p849 = scmp.ne.s32.totalorder %s838, %s839
      %p850 = scmp.eq.s32.totalorder %s97, 0
      %p851 = por %p849, %p850
      %p852 = scmp.ne.s32.totalorder %s838, %s839
      %p853 = scmp.eq.s32.totalorder %s98, 1
      %p854 = por %p852, %p853
      %p856 = scmp.ne.s32.totalorder %s839, %s855
      %p857 = scmp.eq.s32.totalorder %s98, 0
      %p858 = por %p856, %p857
      %s859 = ssub.s32 %s92, %s99
      %p860 = scmp.eq.s32.totalorder %s859, 0
      %s862 = sadd.s32 %s861, 1
      %s863 = scalar_select %p860, %s861, %s862
      %p866 = pneg %p860
      %p867 = scmp.eq.s32.totalorder %s92, 1
      %p868 = por %p866, %p867
      %p869 = scmp.ne.s32.totalorder %s861, %s864
      %p870 = scmp.eq.s32.totalorder %s92, 0
      %p871 = por %p869, %p870
      %p872 = scmp.ne.s32.totalorder %s861, %s864
      %p873 = scmp.eq.s32.totalorder %s97, 1
      %p874 = por %p872, %p873
      %p875 = scmp.ne.s32.totalorder %s864, %s865
      %p876 = scmp.eq.s32.totalorder %s97, 0
      %p877 = por %p875, %p876
      %p878 = scmp.ne.s32.totalorder %s864, %s865
      %p879 = scmp.eq.s32.totalorder %s98, 1
      %p880 = por %p878, %p879
      %p882 = scmp.ne.s32.totalorder %s865, %s881
      %p883 = scmp.eq.s32.totalorder %s98, 0
      %p884 = por %p882, %p883
      %s885 = ssub.s32 %s92, %s99
      %p886 = scmp.eq.s32.totalorder %s885, 0
      %s888 = sadd.s32 %s887, 1
      %s889 = scalar_select %p886, %s887, %s888
      %p892 = pneg %p886
      %p893 = scmp.eq.s32.totalorder %s92, 1
      %p894 = por %p892, %p893
      %p895 = scmp.ne.s32.totalorder %s887, %s890
      %p896 = scmp.eq.s32.totalorder %s92, 0
      %p897 = por %p895, %p896
      %p898 = scmp.ne.s32.totalorder %s887, %s890
      %p899 = scmp.eq.s32.totalorder %s97, 1
      %p900 = por %p898, %p899
      %p901 = scmp.ne.s32.totalorder %s890, %s891
      %p902 = scmp.eq.s32.totalorder %s97, 0
      %p903 = por %p901, %p902
      %p904 = scmp.ne.s32.totalorder %s890, %s891
      %p905 = scmp.eq.s32.totalorder %s98, 1
      %p906 = por %p904, %p905
      %p908 = scmp.ne.s32.totalorder %s891, %s907
      %p909 = scmp.eq.s32.totalorder %s98, 0
      %p910 = por %p908, %p909
      %s911 = ssub.s32 %s92, %s99
      %p912 = scmp.eq.s32.totalorder %s911, 0
      %s914 = sadd.s32 %s913, 1
      %s915 = scalar_select %p912, %s913, %s914
      %p918 = pneg %p912
      %p919 = scmp.eq.s32.totalorder %s92, 1
      %p920 = por %p918, %p919
      %p921 = scmp.ne.s32.totalorder %s913, %s916
      %p922 = scmp.eq.s32.totalorder %s92, 0
      %p923 = por %p921, %p922
      %p924 = scmp.ne.s32.totalorder %s913, %s916
      %p925 = scmp.eq.s32.totalorder %s97, 1
      %p926 = por %p924, %p925
      %p927 = scmp.ne.s32.totalorder %s916, %s917
      %p928 = scmp.eq.s32.totalorder %s97, 0
      %p929 = por %p927, %p928
      %p930 = scmp.ne.s32.totalorder %s916, %s917
      %p931 = scmp.eq.s32.totalorder %s98, 1
      %p932 = por %p930, %p931
      %p934 = scmp.ne.s32.totalorder %s917, %s933
      %p935 = scmp.eq.s32.totalorder %s98, 0
      %p936 = por %p934, %p935
      %s937 = ssub.s32 %s92, %s99
      %p938 = scmp.eq.s32.totalorder %s937, 0
      %s940 = sadd.s32 %s939, 1
      %s941 = scalar_select %p938, %s939, %s940
      %p944 = pneg %p938
      %p945 = scmp.eq.s32.totalorder %s92, 1
      %p946 = por %p944, %p945
      %p947 = scmp.ne.s32.totalorder %s939, %s942
      %p948 = scmp.eq.s32.totalorder %s92, 0
      %p949 = por %p947, %p948
      %p950 = scmp.ne.s32.totalorder %s939, %s942
      %p951 = scmp.eq.s32.totalorder %s97, 1
      %p952 = por %p950, %p951
      %p953 = scmp.ne.s32.totalorder %s942, %s943
      %p954 = scmp.eq.s32.totalorder %s97, 0
      %p955 = por %p953, %p954
      %p956 = scmp.ne.s32.totalorder %s942, %s943
      %p957 = scmp.eq.s32.totalorder %s98, 1
      %p958 = por %p956, %p957
      %p960 = scmp.ne.s32.totalorder %s943, %s959
      %p961 = scmp.eq.s32.totalorder %s98, 0
      %p962 = por %p960, %p961
      %s963 = ssub.s32 %s92, %s99
      %p964 = scmp.eq.s32.totalorder %s963, 0
      %s966 = sadd.s32 %s965, 1
      %s967 = scalar_select %p964, %s965, %s966
      %p970 = pneg %p964
      %p971 = scmp.eq.s32.totalorder %s92, 1
      %p972 = por %p970, %p971
      %p973 = scmp.ne.s32.totalorder %s965, %s968
      %p974 = scmp.eq.s32.totalorder %s92, 0
      %p975 = por %p973, %p974
      %p976 = scmp.ne.s32.totalorder %s965, %s968
      %p977 = scmp.eq.s32.totalorder %s97, 1
      %p978 = por %p976, %p977
      %p979 = scmp.ne.s32.totalorder %s968, %s969
      %p980 = scmp.eq.s32.totalorder %s97, 0
      %p981 = por %p979, %p980
      %p982 = scmp.ne.s32.totalorder %s968, %s969
      %p983 = scmp.eq.s32.totalorder %s98, 1
      %p984 = por %p982, %p983
      %p986 = scmp.ne.s32.totalorder %s969, %s985
      %p987 = scmp.eq.s32.totalorder %s98, 0
      %p988 = por %p986, %p987
      %p989 = scmp.le.s32.totalorder 1, %s92
      %p990 = scmp.lt.s32.totalorder %s92, 3
      %p991 = pnand %p989, %p990
      %p992 = pneg %p991
      // Predicated region
      $region9: #{fingerprint_forward.1} parent=5 // pred_check
        _
      $region10: #{fingerprint_forward.1} parent=5 // pred_check_branch
        %994 = sbr.rel (%p991) target = $region12
      $region11: #{fingerprint_forward.1} parent=5 // pred_region
        %s995 = ssub.s32 %s92, 1
        // Predicated region
        $region13: #{fingerprint_forward.1} parent=11 // pred_check
          %p996 = pneg %p321
        $region14: #{fingerprint_forward.1} parent=11 // pred_check_branch
          %998 = sbr.rel (%p996) target = $region16
        $region15: #{fingerprint_forward.1} parent=11 // pred_region
          _
        $region16: #{fingerprint_forward.1} parent=11 // pred_fallthru
          _
        // Predicated region
        $region17: #{fingerprint_forward.1} parent=11 // pred_check
          %p999 = pneg %p342
        $region18: #{fingerprint_forward.1} parent=11 // pred_check_branch
          %1001 = sbr.rel (%p999) target = $region20
        $region19: #{fingerprint_forward.1} parent=11 // pred_region
          _
        $region20: #{fingerprint_forward.1} parent=11 // pred_fallthru
          _
        // Predicated region
        $region21: #{fingerprint_forward.1} parent=11 // pred_check
          %p1002 = pneg %p363
        $region22: #{fingerprint_forward.1} parent=11 // pred_check_branch
          %1004 = sbr.rel (%p1002) target = $region24
        $region23: #{fingerprint_forward.1} parent=11 // pred_region
          _
        $region24: #{fingerprint_forward.1} parent=11 // pred_fallthru
          _
        // Predicated region
        $region25: #{fingerprint_forward.1} parent=11 // pred_check
          %p1005 = pneg %p384
        $region26: #{fingerprint_forward.1} parent=11 // pred_check_branch
          %1007 = sbr.rel (%p1005) target = $region28
        $region27: #{fingerprint_forward.1} parent=11 // pred_region
          _
        $region28: #{fingerprint_forward.1} parent=11 // pred_fallthru
          _
        // Predicated region
        $region29: #{fingerprint_forward.1} parent=11 // pred_check
          %p1008 = pneg %p405
        $region30: #{fingerprint_forward.1} parent=11 // pred_check_branch
          %1010 = sbr.rel (%p1008) target = $region32
        $region31: #{fingerprint_forward.1} parent=11 // pred_region
          _
        $region32: #{fingerprint_forward.1} parent=11 // pred_fallthru
          _
        // Predicated region
        $region33: #{fingerprint_forward.1} parent=11 // pred_check
          %p1011 = pneg %p426
        $region34: #{fingerprint_forward.1} parent=11 // pred_check_branch
          %1013 = sbr.rel (%p1011) target = $region36
        $region35: #{fingerprint_forward.1} parent=11 // pred_region
          _
        $region36: #{fingerprint_forward.1} parent=11 // pred_fallthru
          _
        // Predicated region
        $region37: #{fingerprint_forward.1} parent=11 // pred_check
          %p1014 = pneg %p447
        $region38: #{fingerprint_forward.1} parent=11 // pred_check_branch
          %1016 = sbr.rel (%p1014) target = $region40
        $region39: #{fingerprint_forward.1} parent=11 // pred_region
          _
        $region40: #{fingerprint_forward.1} parent=11 // pred_fallthru
          _
        // Predicated region
        $region41: #{fingerprint_forward.1} parent=11 // pred_check
          %p1017 = pneg %p468
        $region42: #{fingerprint_forward.1} parent=11 // pred_check_branch
          %1019 = sbr.rel (%p1017) target = $region44
        $region43: #{fingerprint_forward.1} parent=11 // pred_region
          _
        $region44: #{fingerprint_forward.1} parent=11 // pred_fallthru
          _
        // Predicated region
        $region45: #{fingerprint_forward.1} parent=11 // pred_check
          %p1020 = pneg %p489
        $region46: #{fingerprint_forward.1} parent=11 // pred_check_branch
          %1022 = sbr.rel (%p1020) target = $region48
        $region47: #{fingerprint_forward.1} parent=11 // pred_region
          %1024 = vsyncadd [#allocation4], 0
          %s1025 = sshll.u32 %s33, 4
          %s1026 = int_to_ptr.hbm [resolvable:$true] %s1025
          %s1027 = sshll.u32 [#allocation3], 4
          %s1028 = int_to_ptr.vmem [resolvable:$true] %s1027
          %1033 = dma.hbm_to_vmem [thread:$0]  %s1026, 4096, %s1028, [#allocation4], 128, 128, 8
        $region48: #{fingerprint_forward.1} parent=11 // pred_fallthru
          _
        // Predicated region
        $region49: #{fingerprint_forward.1} parent=11 // pred_check
          %p1034 = pneg %p510
        $region50: #{fingerprint_forward.1} parent=11 // pred_check_branch
          %1036 = sbr.rel (%p1034) target = $region52
        $region51: #{fingerprint_forward.1} parent=11 // pred_region
          _
        $region52: #{fingerprint_forward.1} parent=11 // pred_fallthru
          _
        // Predicated region
        $region53: #{fingerprint_forward.1} parent=11 // pred_check
          %p1037 = pneg %p531
        $region54: #{fingerprint_forward.1} parent=11 // pred_check_branch
          %1039 = sbr.rel (%p1037) target = $region56
        $region55: #{fingerprint_forward.1} parent=11 // pred_region
          %1041 = vsyncadd [#allocation7], 0
          %s1042 = sshll.u32 %s37, 4
          %s1043 = int_to_ptr.hbm [resolvable:$true] %s1042
          %s1044 = sshll.u32 [#allocation6], 4
          %s1045 = int_to_ptr.vmem [resolvable:$true] %s1044
          %1050 = dma.hbm_to_vmem [thread:$0]  %s1043, 12288, %s1045, [#allocation7], 384, 384, 24
        $region56: #{fingerprint_forward.1} parent=11 // pred_fallthru
          _
        // Predicated region
        $region57: #{fingerprint_forward.1} parent=11 // pred_check
          %p1051 = pneg %p552
        $region58: #{fingerprint_forward.1} parent=11 // pred_check_branch
          %1053 = sbr.rel (%p1051) target = $region60
        $region59: #{fingerprint_forward.1} parent=11 // pred_region
          %1055 = vsyncadd [#allocation7], 0
          %s1056 = sshll.u32 %s39, 4
          %s1057 = int_to_ptr.hbm [resolvable:$true] %s1056
          %s1058 = sshll.u32 [#allocation8], 4
          %s1059 = int_to_ptr.vmem [resolvable:$true] %s1058
          %1064 = dma.hbm_to_vmem [thread:$0]  %s1057, 12288, %s1059, [#allocation7], 384, 384, 24
        $region60: #{fingerprint_forward.1} parent=11 // pred_fallthru
          _
        // Predicated region
        $region61: #{fingerprint_forward.1} parent=11 // pred_check
          %p1065 = pneg %p573
        $region62: #{fingerprint_forward.1} parent=11 // pred_check_branch
          %1067 = sbr.rel (%p1065) target = $region64
        $region63: #{fingerprint_forward.1} parent=11 // pred_region
          _
        $region64: #{fingerprint_forward.1} parent=11 // pred_fallthru
          _
        // Predicated region
        $region65: #{fingerprint_forward.1} parent=11 // pred_check
          %p1068 = pneg %p594
        $region66: #{fingerprint_forward.1} parent=11 // pred_check_branch
          %1070 = sbr.rel (%p1068) target = $region68
        $region67: #{fingerprint_forward.1} parent=11 // pred_region
          _
        $region68: #{fingerprint_forward.1} parent=11 // pred_fallthru
          _
        // Predicated region
        $region69: #{fingerprint_forward.1} parent=11 // pred_check
          %p1071 = pneg %p615
        $region70: #{fingerprint_forward.1} parent=11 // pred_check_branch
          %1073 = sbr.rel (%p1071) target = $region72
        $region71: #{fingerprint_forward.1} parent=11 // pred_region
          _
        $region72: #{fingerprint_forward.1} parent=11 // pred_fallthru
          _
        // Predicated region
        $region73: #{fingerprint_forward.1} parent=11 // pred_check
          %p1074 = pneg %p636
        $region74: #{fingerprint_forward.1} parent=11 // pred_check_branch
          %1076 = sbr.rel (%p1074) target = $region76
        $region75: #{fingerprint_forward.1} parent=11 // pred_region
          _
        $region76: #{fingerprint_forward.1} parent=11 // pred_fallthru
          _
        // Predicated region
        $region77: #{fingerprint_forward.1} parent=11 // pred_check
          %p1077 = pneg %p657
        $region78: #{fingerprint_forward.1} parent=11 // pred_check_branch
          %1079 = sbr.rel (%p1077) target = $region80
        $region79: #{fingerprint_forward.1} parent=11 // pred_region
          _
        $region80: #{fingerprint_forward.1} parent=11 // pred_fallthru
          _
        // Predicated region
        $region81: #{fingerprint_forward.1} parent=11 // pred_check
          %p1080 = pneg %p678
        $region82: #{fingerprint_forward.1} parent=11 // pred_check_branch
          %1082 = sbr.rel (%p1080) target = $region84
        $region83: #{fingerprint_forward.1} parent=11 // pred_region
          _
        $region84: #{fingerprint_forward.1} parent=11 // pred_fallthru
          _
        // Predicated region
        $region85: #{fingerprint_forward.1} parent=11 // pred_check
          %p1083 = pneg %p699
        $region86: #{fingerprint_forward.1} parent=11 // pred_check_branch
          %1085 = sbr.rel (%p1083) target = $region88
        $region87: #{fingerprint_forward.1} parent=11 // pred_region
          _
        $region88: #{fingerprint_forward.1} parent=11 // pred_fallthru
          _
        // Predicated region
        $region89: #{fingerprint_forward.1} parent=11 // pred_check
          %p1086 = pneg %p720
        $region90: #{fingerprint_forward.1} parent=11 // pred_check_branch
          %1088 = sbr.rel (%p1086) target = $region92
        $region91: #{fingerprint_forward.1} parent=11 // pred_region
          %1090 = vsyncadd [#allocation10], 0
          %s1091 = sshll.u32 %s55, 4
          %s1092 = int_to_ptr.hbm [resolvable:$true] %s1091
          %s1093 = sshll.u32 [#allocation9], 4
          %s1094 = int_to_ptr.vmem [resolvable:$true] %s1093
          %1099 = dma.hbm_to_vmem [thread:$0]  %s1092, 6144, %s1094, [#allocation10], 384, 384, 24
        $region92: #{fingerprint_forward.1} parent=11 // pred_fallthru
          _
        // Predicated region
        $region93: #{fingerprint_forward.1} parent=11 // pred_check
          %p1100 = pneg %p741
        $region94: #{fingerprint_forward.1} parent=11 // pred_check_branch
          %1102 = sbr.rel (%p1100) target = $region96
        $region95: #{fingerprint_forward.1} parent=11 // pred_region
          %1104 = vsyncadd [#allocation10], 0
          %s1105 = sshll.u32 %s57, 4
          %s1106 = int_to_ptr.hbm [resolvable:$true] %s1105
          %s1107 = sshll.u32 [#allocation11], 4
          %s1108 = int_to_ptr.vmem [resolvable:$true] %s1107
          %1113 = dma.hbm_to_vmem [thread:$0]  %s1106, 6144, %s1108, [#allocation10], 384, 384, 24
        $region96: #{fingerprint_forward.1} parent=11 // pred_fallthru
          _
        // Predicated region
        $region97: #{fingerprint_forward.1} parent=11 // pred_check
          %p1114 = pneg %p762
        $region98: #{fingerprint_forward.1} parent=11 // pred_check_branch
          %1116 = sbr.rel (%p1114) target = $region100
        $region99: #{fingerprint_forward.1} parent=11 // pred_region
          _
        $region100: #{fingerprint_forward.1} parent=11 // pred_fallthru
          _
        // Predicated region
        $region101: #{fingerprint_forward.1} parent=11 // pred_check
          %p1117 = pneg %p783
        $region102: #{fingerprint_forward.1} parent=11 // pred_check_branch
          %1119 = sbr.rel (%p1117) target = $region104
        $region103: #{fingerprint_forward.1} parent=11 // pred_region
          _
        $region104: #{fingerprint_forward.1} parent=11 // pred_fallthru
          _
        // Predicated region
        $region105: #{fingerprint_forward.1} parent=11 // pred_check
          %p1120 = pneg %p804
        $region106: #{fingerprint_forward.1} parent=11 // pred_check_branch
          %1122 = sbr.rel (%p1120) target = $region108
        $region107: #{fingerprint_forward.1} parent=11 // pred_region
          _
        $region108: #{fingerprint_forward.1} parent=11 // pred_fallthru
          _
        // Predicated region
        $region109: #{fingerprint_forward.1} parent=11 // pred_check
          %p1123 = pneg %p825
        $region110: #{fingerprint_forward.1} parent=11 // pred_check_branch
          %1125 = sbr.rel (%p1123) target = $region112
        $region111: #{fingerprint_forward.1} parent=11 // pred_region
          _
        $region112: #{fingerprint_forward.1} parent=11 // pred_fallthru
          _
      $region12: #{fingerprint_forward.1} parent=5 // pred_fallthru
        _
      %p1126 = scmp.lt.s32.totalorder %s92, 2
      // Predicated region
      $region113: #{fingerprint_forward.1} parent=5 // pred_check
        %p1127 = pneg %p1126
      $region114: #{fingerprint_forward.1} parent=5 // pred_check_branch
        %1129 = sbr.rel (%p1127) target = $region116
      $region115: #{fingerprint_forward.1} parent=5 // pred_region
        // Predicated region
        $region117: #{fingerprint_forward.1} parent=115 // pred_check
          %p1130 = pneg %p112
        $region118: #{fingerprint_forward.1} parent=115 // pred_check_branch
          %1132 = sbr.rel (%p1130) target = $region120
        $region119: #{fingerprint_forward.1} parent=115 // pred_region
          %p1133 = scmp.lt.s32.totalorder %s92, 1
          %s1134 = scalar_select %p1133, %s92, 1
          %s1135 = smul.addr %s1134, 8
          %s1136 = scalar_lea.vmem %s1, %s1135
        $region120: #{fingerprint_forward.1} parent=115 // pred_fallthru
          _
        // Predicated region
        $region121: #{fingerprint_forward.1} parent=115 // pred_check
          %p1137 = pneg %p138
        $region122: #{fingerprint_forward.1} parent=115 // pred_check_branch
          %1139 = sbr.rel (%p1137) target = $region124
        $region123: #{fingerprint_forward.1} parent=115 // pred_region
          %p1140 = scmp.lt.s32.totalorder %s92, 1
          %s1141 = scalar_select %p1140, %s92, 1
          %s1142 = smul.addr %s1141, 2
          %s1143 = smul.addr %s1142, 8
          %s1144 = scalar_lea.vmem %s3, %s1143
        $region124: #{fingerprint_forward.1} parent=115 // pred_fallthru
          _
        // Predicated region
        $region125: #{fingerprint_forward.1} parent=115 // pred_check
          %p1145 = pneg %p164
        $region126: #{fingerprint_forward.1} parent=115 // pred_check_branch
          %1147 = sbr.rel (%p1145) target = $region128
        $region127: #{fingerprint_forward.1} parent=115 // pred_region
          %p1148 = scmp.lt.s32.totalorder %s92, 1
          %s1149 = scalar_select %p1148, %s92, 1
          %s1150 = smul.addr %s1149, 4
          %s1151 = smul.addr %s1150, 8
          %s1152 = scalar_lea.vmem %s5, %s1151
        $region128: #{fingerprint_forward.1} parent=115 // pred_fallthru
          _
        // Predicated region
        $region129: #{fingerprint_forward.1} parent=115 // pred_check
          %p1153 = pneg %p190
        $region130: #{fingerprint_forward.1} parent=115 // pred_check_branch
          %1155 = sbr.rel (%p1153) target = $region132
        $region131: #{fingerprint_forward.1} parent=115 // pred_region
          %p1156 = scmp.lt.s32.totalorder %s92, 1
          %s1157 = scalar_select %p1156, %s92, 1
          %s1158 = smul.addr %s1157, 4
          %s1159 = smul.addr %s1158, 8
          %s1160 = scalar_lea.vmem %s7, %s1159
        $region132: #{fingerprint_forward.1} parent=115 // pred_fallthru
          _
        // Predicated region
        $region133: #{fingerprint_forward.1} parent=115 // pred_check
          %p1161 = pneg %p216
        $region134: #{fingerprint_forward.1} parent=115 // pred_check_branch
          %1163 = sbr.rel (%p1161) target = $region136
        $region135: #{fingerprint_forward.1} parent=115 // pred_region
          %p1164 = scmp.lt.s32.totalorder %s92, 1
          %s1165 = scalar_select %p1164, %s92, 1
          %s1166 = smul.addr %s1165, 4
          %s1167 = smul.addr %s1166, 8
          %s1168 = scalar_lea.vmem %s9, %s1167
        $region136: #{fingerprint_forward.1} parent=115 // pred_fallthru
          _
        // Predicated region
        $region137: #{fingerprint_forward.1} parent=115 // pred_check
          %p1169 = pneg %p242
        $region138: #{fingerprint_forward.1} parent=115 // pred_check_branch
          %1171 = sbr.rel (%p1169) target = $region140
        $region139: #{fingerprint_forward.1} parent=115 // pred_region
          %p1172 = scmp.lt.s32.totalorder %s92, 1
          %s1173 = scalar_select %p1172, %s92, 1
          %s1174 = smul.addr %s1173, 4
          %s1175 = smul.addr %s1174, 8
          %s1176 = scalar_lea.vmem %s11, %s1175
        $region140: #{fingerprint_forward.1} parent=115 // pred_fallthru
          _
        // Predicated region
        $region141: #{fingerprint_forward.1} parent=115 // pred_check
          %p1177 = pneg %p268
        $region142: #{fingerprint_forward.1} parent=115 // pred_check_branch
          %1179 = sbr.rel (%p1177) target = $region144
        $region143: #{fingerprint_forward.1} parent=115 // pred_region
          %p1180 = scmp.lt.s32.totalorder %s92, 1
          %s1181 = scalar_select %p1180, %s92, 1
          %s1182 = smul.addr %s1181, 8
          %s1183 = scalar_lea.vmem %s13, %s1182
        $region144: #{fingerprint_forward.1} parent=115 // pred_fallthru
          _
        // Predicated region
        $region145: #{fingerprint_forward.1} parent=115 // pred_check
          %p1184 = pneg %p294
        $region146: #{fingerprint_forward.1} parent=115 // pred_check_branch
          %1186 = sbr.rel (%p1184) target = $region148
        $region147: #{fingerprint_forward.1} parent=115 // pred_region
          %p1187 = scmp.lt.s32.totalorder %s92, 1
          %s1188 = scalar_select %p1187, %s92, 1
          %s1189 = smul.addr %s1188, 8
          %s1190 = scalar_lea.vmem %s15, %s1189
        $region148: #{fingerprint_forward.1} parent=115 // pred_fallthru
          _
      $region116: #{fingerprint_forward.1} parent=5 // pred_fallthru
        _
      %p1191 = scmp.le.s32.totalorder 1, %s92
      %p1192 = scmp.lt.s32.totalorder %s92, 3
      %p1193 = pnand %p1191, %p1192
      %p1194 = pneg %p1193
      // Predicated region
      $region149: #{fingerprint_forward.1} parent=5 // pred_check
        _
      $region150: #{fingerprint_forward.1} parent=5 // pred_check_branch
        %1196 = sbr.rel (%p1193) target = $region152
      $region151: #{fingerprint_forward.1} parent=5 // pred_region
        %s1197 = ssub.s32 %s92, 1
        // Predicated region
        $region153: #{fingerprint_forward.1} parent=151 // pred_check
          %p1198 = pneg %p489
        $region154: #{fingerprint_forward.1} parent=151 // pred_check_branch
          %1200 = sbr.rel (%p1198) target = $region156
        $region155: #{fingerprint_forward.1} parent=151 // pred_region
          %1202 = dma.done [#allocation4], 4096
        $region156: #{fingerprint_forward.1} parent=151 // pred_fallthru
          _
        // Predicated region
        $region157: #{fingerprint_forward.1} parent=151 // pred_check
          %p1203 = pneg %p531
        $region158: #{fingerprint_forward.1} parent=151 // pred_check_branch
          %1205 = sbr.rel (%p1203) target = $region160
        $region159: #{fingerprint_forward.1} parent=151 // pred_region
          %1207 = dma.done [#allocation7], 12288
        $region160: #{fingerprint_forward.1} parent=151 // pred_fallthru
          _
        // Predicated region
        $region161: #{fingerprint_forward.1} parent=151 // pred_check
          %p1208 = pneg %p552
        $region162: #{fingerprint_forward.1} parent=151 // pred_check_branch
          %1210 = sbr.rel (%p1208) target = $region164
        $region163: #{fingerprint_forward.1} parent=151 // pred_region
          %1212 = dma.done [#allocation7], 12288
        $region164: #{fingerprint_forward.1} parent=151 // pred_fallthru
          _
        // Predicated region
        $region165: #{fingerprint_forward.1} parent=151 // pred_check
          %p1213 = pneg %p720
        $region166: #{fingerprint_forward.1} parent=151 // pred_check_branch
          %1215 = sbr.rel (%p1213) target = $region168
        $region167: #{fingerprint_forward.1} parent=151 // pred_region
          %1217 = dma.done [#allocation10], 6144
        $region168: #{fingerprint_forward.1} parent=151 // pred_fallthru
          _
        // Predicated region
        $region169: #{fingerprint_forward.1} parent=151 // pred_check
          %p1218 = pneg %p741
        $region170: #{fingerprint_forward.1} parent=151 // pred_check_branch
          %1220 = sbr.rel (%p1218) target = $region172
        $region171: #{fingerprint_forward.1} parent=151 // pred_region
          %1222 = dma.done [#allocation10], 6144
        $region172: #{fingerprint_forward.1} parent=151 // pred_fallthru
          _
        %p1223 = scmp.lt.s32.totalorder %s97, 1
        %s1224 = scalar_select %p1223, %s97, 1
        %s1225 = smul.addr %s1224, 8
        %s1226 = scalar_lea.vmem %s1, %s1225
        %p1227 = pneg %p118
        %p1228 = pneg %p115
        %p1229 = scmp.lt.s32.totalorder %s97, 1
        %s1230 = scalar_select %p1229, %s97, 1
        %s1231 = smul.addr %s1230, 2
        %s1232 = smul.addr %s1231, 8
        %s1233 = scalar_lea.vmem %s3, %s1232
        %p1234 = pneg %p144
        %p1235 = pneg %p141
        %p1236 = scmp.lt.s32.totalorder %s97, 1
        %s1237 = scalar_select %p1236, %s97, 1
        %s1238 = smul.addr %s1237, 4
        %s1239 = smul.addr %s1238, 8
        %s1240 = scalar_lea.vmem %s5, %s1239
        %p1241 = pneg %p170
        %p1242 = pneg %p167
        %p1243 = scmp.lt.s32.totalorder %s97, 1
        %s1244 = scalar_select %p1243, %s97, 1
        %s1245 = smul.addr %s1244, 4
        %s1246 = smul.addr %s1245, 8
        %s1247 = scalar_lea.vmem %s7, %s1246
        %p1248 = pneg %p196
        %p1249 = pneg %p193
        %p1250 = scmp.lt.s32.totalorder %s97, 1
        %s1251 = scalar_select %p1250, %s97, 1
        %s1252 = smul.addr %s1251, 4
        %s1253 = smul.addr %s1252, 8
        %s1254 = scalar_lea.vmem %s9, %s1253
        %p1255 = pneg %p222
        %p1256 = pneg %p219
        %p1257 = scmp.lt.s32.totalorder %s97, 1
        %s1258 = scalar_select %p1257, %s97, 1
        %s1259 = smul.addr %s1258, 4
        %s1260 = smul.addr %s1259, 8
        %s1261 = scalar_lea.vmem %s11, %s1260
        %p1262 = pneg %p248
        %p1263 = pneg %p245
        %p1264 = scmp.lt.s32.totalorder %s97, 1
        %s1265 = scalar_select %p1264, %s97, 1
        %s1266 = smul.addr %s1265, 8
        %s1267 = scalar_lea.vmem %s13, %s1266
        %p1268 = pneg %p274
        %p1269 = pneg %p271
        %p1270 = scmp.lt.s32.totalorder %s97, 1
        %s1271 = scalar_select %p1270, %s97, 1
        %s1272 = smul.addr %s1271, 8
        %s1273 = scalar_lea.vmem %s15, %s1272
        %p1274 = pneg %p300
        %p1275 = pneg %p297
        %p1276 = pneg %p321
        %p1277 = pneg %p318
        %p1278 = pneg %p342
        %p1279 = pneg %p339
        %p1280 = pneg %p363
        %p1281 = pneg %p360
        %p1282 = pneg %p384
        %p1283 = pneg %p381
        %p1284 = pneg %p405
        %p1285 = pneg %p402
        %p1286 = pneg %p426
        %p1287 = pneg %p423
        %p1288 = pneg %p447
        %p1289 = pneg %p444
        %p1290 = pneg %p468
        %p1291 = pneg %p465
        %p1292 = pneg %p489
        %p1293 = pneg %p486
        %p1294 = pneg %p510
        %p1295 = pneg %p507
        %p1296 = pneg %p531
        %p1297 = pneg %p528
        %p1298 = pneg %p552
        %p1299 = pneg %p549
        %p1300 = pneg %p573
        %p1301 = pneg %p570
        %p1302 = pneg %p594
        %p1303 = pneg %p591
        %p1304 = pneg %p615
        %p1305 = pneg %p612
        %p1306 = pneg %p636
        %p1307 = pneg %p633
        %p1308 = pneg %p657
        %p1309 = pneg %p654
        %p1310 = pneg %p678
        %p1311 = pneg %p675
        %p1312 = pneg %p699
        %p1313 = pneg %p696
        %p1314 = pneg %p720
        %p1315 = pneg %p717
        %p1316 = pneg %p741
        %p1317 = pneg %p738
        %p1318 = pneg %p762
        %p1319 = pneg %p759
        %p1320 = pneg %p783
        %p1321 = pneg %p780
        %p1322 = pneg %p804
        %p1323 = pneg %p801
        %p1324 = pneg %p825
        %p1325 = pneg %p822
        %p1326 = pneg %p851
        %p1327 = pneg %p848
        %p1328 = scmp.lt.s32.totalorder %s97, 1
        %s1329 = scalar_select %p1328, %s97, 1
        %s1330 = smul.addr %s1329, 3
        %s1331 = smul.addr %s1330, 8
        %s1332 = scalar_lea.vmem %s67, %s1331
        %p1333 = pneg %p877
        %p1334 = pneg %p874
        %p1335 = scmp.lt.s32.totalorder %s97, 1
        %s1336 = scalar_select %p1335, %s97, 1
        %s1337 = smul.addr %s1336, 8
        %s1338 = smul.addr %s1337, 8
        %s1339 = scalar_lea.vmem %s69, %s1338
        %p1340 = pneg %p903
        %p1341 = pneg %p900
        %p1342 = scmp.lt.s32.totalorder %s97, 1
        %s1343 = scalar_select %p1342, %s97, 1
        %s1344 = smul.addr %s1343, 3
        %s1345 = scalar_lea.vmem %s71, %s1344
        %p1346 = pneg %p929
        %p1347 = pneg %p926
        %p1348 = scmp.lt.s32.totalorder %s97, 1
        %s1349 = scalar_select %p1348, %s97, 1
        %s1350 = smul.addr %s1349, 3
        %s1351 = scalar_lea.vmem %s73, %s1350
        %p1352 = pneg %p955
        %p1353 = pneg %p952
        %p1354 = scmp.lt.s32.totalorder %s97, 1
        %s1355 = scalar_select %p1354, %s97, 1
        %s1356 = smul.addr %s1355, 2
        %s1357 = smul.addr %s1356, 8
        %s1358 = scalar_lea.vmem %s75, %s1357
        %p1359 = pneg %p981
        %p1360 = pneg %p978
        %s1361 = sand.u32 %s968, 1
        %s1362 = scalar_lea.sflag [#allocation5], %s1361
        %s1363 = sand.u32 %s968, 1
        %s1364 = scalar_lea.vmem [#allocation12], %s1363
        %p1365 = scmp.lt.s32.totalorder %s97, 1
        %s1366 = scalar_select %p1365, %s97, 1
        %s1367 = smul.addr %s1366, 8
        %s1368 = scalar_lea.vmem %s1, %s1367
        %p1369 = scmp.lt.s32.totalorder %s97, 1
        %s1370 = scalar_select %p1369, %s97, 1
        %s1371 = smul.addr %s1370, 2
        %s1372 = smul.addr %s1371, 8
        %s1373 = scalar_lea.vmem %s3, %s1372
        %p1374 = scmp.lt.s32.totalorder %s97, 1
        %s1375 = scalar_select %p1374, %s97, 1
        %s1376 = smul.addr %s1375, 4
        %s1377 = smul.addr %s1376, 8
        %s1378 = scalar_lea.vmem %s5, %s1377
        %p1379 = scmp.lt.s32.totalorder %s97, 1
        %s1380 = scalar_select %p1379, %s97, 1
        %s1381 = smul.addr %s1380, 4
        %s1382 = smul.addr %s1381, 8
        %s1383 = scalar_lea.vmem %s7, %s1382
        %p1384 = scmp.lt.s32.totalorder %s97, 1
        %s1385 = scalar_select %p1384, %s97, 1
        %s1386 = smul.addr %s1385, 4
        %s1387 = smul.addr %s1386, 8
        %s1388 = scalar_lea.vmem %s9, %s1387
        %p1389 = scmp.lt.s32.totalorder %s97, 1
        %s1390 = scalar_select %p1389, %s97, 1
        %s1391 = smul.addr %s1390, 4
        %s1392 = smul.addr %s1391, 8
        %s1393 = scalar_lea.vmem %s11, %s1392
        %p1394 = scmp.lt.s32.totalorder %s97, 1
        %s1395 = scalar_select %p1394, %s97, 1
        %s1396 = smul.addr %s1395, 8
        %s1397 = scalar_lea.vmem %s13, %s1396
        %p1398 = scmp.lt.s32.totalorder %s97, 1
        %s1399 = scalar_select %p1398, %s97, 1
        %s1400 = smul.addr %s1399, 8
        %s1401 = scalar_lea.vmem %s15, %s1400
        %p1402 = scmp.lt.s32.totalorder %s97, 1
        %s1403 = scalar_select %p1402, %s97, 1
        %s1404 = smul.addr %s1403, 3
        %s1405 = smul.addr %s1404, 8
        %s1406 = scalar_lea.vmem %s67, %s1405
        %p1407 = scmp.lt.s32.totalorder %s97, 1
        %s1408 = scalar_select %p1407, %s97, 1
        %s1409 = smul.addr %s1408, 8
        %s1410 = smul.addr %s1409, 8
        %s1411 = scalar_lea.vmem %s69, %s1410
        %p1412 = scmp.lt.s32.totalorder %s97, 1
        %s1413 = scalar_select %p1412, %s97, 1
        %s1414 = smul.addr %s1413, 3
        %s1415 = scalar_lea.vmem %s71, %s1414
        %p1416 = scmp.lt.s32.totalorder %s97, 1
        %s1417 = scalar_select %p1416, %s97, 1
        %s1418 = smul.addr %s1417, 3
        %s1419 = scalar_lea.vmem %s73, %s1418
        %p1420 = scmp.lt.s32.totalorder %s97, 1
        %s1421 = scalar_select %p1420, %s97, 1
        %s1422 = smul.addr %s1421, 2
        %s1423 = smul.addr %s1422, 8
        %s1424 = scalar_lea.vmem %s75, %s1423
        %v1425 = vld [vmem:[%s1368] sm:$0xff]
        %v1426 = vld [vmem:[%s1373] sm:$0xff]
        %v1427 = vld [vmem:[%s1373 + $0x8] sm:$0xf]
        %v1428 = vld [vmem:[%s17] sm:$0xff]
        %v1429 = vld [vmem:[%s17 + $0x8] sm:$0xff]
        %v1430 = vld [vmem:[%s19] sm:$0x1]
        %v1432 = vperm.slane %v1430, 0
        %vm1434 = vcmask 130048
        %v1436 = vsel %vm1434, %v1425, 0
        %1438 = vmatpush.msra.mxu0 0.0
        %1439 = vmatpush.msra.mxu0 0.0
        %1440 = vmatpush.msra.mxu0 0.0
        %1441 = vmatpush.msra.mxu0 0.0
        %1442 = vmatpush.msra.mxu0 0.0
        %1443 = vmatpush.msra.mxu0 0.0
        %1444 = vmatpush.msra.mxu0 0.0
        %1445 = vmatpush.msra.mxu0 0.0
        %1446 = vmatpush.msra.mxu0 0.0
        %1447 = vmatpush.msra.mxu0 0.0
        %1448 = vmatpush.msra.mxu0 0.0
        %1449 = vmatpush.msra.mxu0 0.0
        %1450 = vmatpush.msra.mxu0 0.0
        %1451 = vmatpush.msra.mxu0 0.0
        %1452 = vmatpush.msra.mxu0 %v1429
        %1453 = vmatpush.msra.mxu0 %v1428
        %1454 = vmatmul.f32.gmra.mxu0 %v1436
        %v1455 = vpop.f32.mrf.mxu0
        %v1456 = vadd.f32 %v1432, %v1455
        %1457 = vdwg.mxu0
        %1458 = vst [vmem:[%s1406] sm:$0xff] %v1456
        %vm1459 = vcmp.ge.f32.partialorder %v1456, 0.0
        %v1460 = vmul.f32 %v1456, 0.01
        %v1461 = vsel %vm1459, %v1456, %v1460
        %v1462 = vld [vmem:[%s1378] sm:$0xff]
        %vm1463 = vcmask 64512
        %v1465 = vsel %vm1463, %v1462, 0
        %1467 = vmatpush.msra.mxu0 0.0
        %1468 = vmatpush.msra.mxu0 0.0
        %1469 = vmatpush.msra.mxu0 0.0
        %1470 = vmatpush.msra.mxu0 0.0
        %1471 = vmatpush.msra.mxu0 0.0
        %1472 = vmatpush.msra.mxu0 0.0
        %1473 = vmatpush.msra.mxu0 0.0
        %1474 = vmatpush.msra.mxu0 0.0
        %1475 = vmatpush.msra.mxu0 0.0
        %1476 = vmatpush.msra.mxu0 0.0
        %1477 = vmatpush.msra.mxu0 0.0
        %1478 = vmatpush.msra.mxu0 0.0
        %1479 = vmatpush.msra.mxu0 0.0
        %1480 = vmatpush.msra.mxu0 0.0
        %1481 = vmatpush.msra.mxu0 0.0
        %1482 = vmatpush.msra.mxu0 %v1425
        %1483 = vmatmul.f32.gmra.mxu0 %v1465
        %v1484 = vpop.f32.mrf.mxu0
        %v1485 = vadd.f32 0.0, %v1484
        %1486 = vdwg.mxu0
        %v1487 = vld [vmem:[%s1383] sm:$0xff]
        %vm1488 = vcmask 97280
        %v1490 = vsel %vm1488, %v1487, 0
        %vm1492 = vcmask 1043456
        %v1494 = vsel %vm1492, %v1427, 0
        %1496 = vmatpush.msra.mxu0 0.0
        %1497 = vmatpush.msra.mxu0 0.0
        %1498 = vmatpush.msra.mxu0 0.0
        %1499 = vmatpush.msra.mxu0 0.0
        %1500 = vmatpush.msra.mxu0 0.0
        %1501 = vmatpush.msra.mxu0 0.0
        %1502 = vmatpush.msra.mxu0 0.0
        %1503 = vmatpush.msra.mxu0 0.0
        %1504 = vmatpush.msra.mxu0 0.0
        %1505 = vmatpush.msra.mxu0 0.0
        %1506 = vmatpush.msra.mxu0 0.0
        %1507 = vmatpush.msra.mxu0 0.0
        %1508 = vmatpush.msra.mxu0 0.0
        %1509 = vmatpush.msra.mxu0 0.0
        %1510 = vmatpush.msra.mxu0 %v1494
        %1511 = vmatpush.msra.mxu0 %v1426
        %1512 = vmatmul.f32.gmra.mxu0 %v1490
        %v1513 = vpop.f32.mrf.mxu0
        %v1514 = vadd.f32 0.0, %v1513
        %1515 = vdwg.mxu0
        %v1516 = vld [vmem:[%s21] sm:$0xff]
        %v1517 = vld [vmem:[%s21 + $0x8] sm:$0xff]
        %v1518 = vld [vmem:[%s23] sm:$0xff]
        %v1520 = vsel %vm1463, %v1514, 0
        %1522 = vmatpush.msra.mxu0 0.0
        %1523 = vmatpush.msra.mxu0 0.0
        %1524 = vmatpush.msra.mxu0 0.0
        %1525 = vmatpush.msra.mxu0 0.0
        %1526 = vmatpush.msra.mxu0 0.0
        %1527 = vmatpush.msra.mxu0 0.0
        %1528 = vmatpush.msra.mxu0 0.0
        %1529 = vmatpush.msra.mxu0 0.0
        %1530 = vmatpush.msra.mxu0 0.0
        %1531 = vmatpush.msra.mxu0 0.0
        %1532 = vmatpush.msra.mxu0 0.0
        %1533 = vmatpush.msra.mxu0 0.0
        %1534 = vmatpush.msra.mxu0 0.0
        %1535 = vmatpush.msra.mxu0 0.0
        %1536 = vmatpush.msra.mxu0 0.0
        %1537 = vmatpush.msra.mxu0 %v1518
        %1538 = vmatmul.f32.gmra.mxu0 %v1520
        %v1539 = vpop.f32.mrf.mxu0
        %v1540 = vadd.f32 0.0, %v1539
        %1541 = vdwg.mxu0
        %v1543 = vsel %vm1434, %v1485, 0
        %1545 = vmatpush.msra.mxu0 0.0
        %1546 = vmatpush.msra.mxu0 0.0
        %1547 = vmatpush.msra.mxu0 0.0
        %1548 = vmatpush.msra.mxu0 0.0
        %1549 = vmatpush.msra.mxu0 0.0
        %1550 = vmatpush.msra.mxu0 0.0
        %1551 = vmatpush.msra.mxu0 0.0
        %1552 = vmatpush.msra.mxu0 0.0
        %1553 = vmatpush.msra.mxu0 0.0
        %1554 = vmatpush.msra.mxu0 0.0
        %1555 = vmatpush.msra.mxu0 0.0
        %1556 = vmatpush.msra.mxu0 0.0
        %1557 = vmatpush.msra.mxu0 0.0
        %1558 = vmatpush.msra.mxu0 0.0
        %1559 = vmatpush.msra.mxu0 %v1517
        %1560 = vmatpush.msra.mxu0 %v1516
        %1561 = vmatmul.f32.gmra.mxu0 %v1543
        %v1562 = vpop.f32.mrf.mxu0
        %v1563 = vadd.f32 %v1540, %v1562
        %1564 = vdwg.mxu0
        %v1565 = vld [vmem:[%s25] sm:$0x1]
        %v1567 = vperm.slane %v1565, 0
        %v1569 = vadd.f32 %v1563, %v1567
        %vm1570 = vcmp.ge.f32.partialorder %v1569, 0.0
        %v1571 = vmul.f32 %v1569, 0.01
        %v1572 = vsel %vm1570, %v1569, %v1571
        %s1573 = scalar_lea.vmem %s1378, 8
        %v1574 = vld [vmem:[%s1573] sm:$0xff]
        %v1576 = vsel %vm1463, %v1574, 0
        %1578 = vmatpush.msra.mxu0 0.0
        %1579 = vmatpush.msra.mxu0 0.0
        %1580 = vmatpush.msra.mxu0 0.0
        %1581 = vmatpush.msra.mxu0 0.0
        %1582 = vmatpush.msra.mxu0 0.0
        %1583 = vmatpush.msra.mxu0 0.0
        %1584 = vmatpush.msra.mxu0 0.0
        %1585 = vmatpush.msra.mxu0 0.0
        %1586 = vmatpush.msra.mxu0 0.0
        %1587 = vmatpush.msra.mxu0 0.0
        %1588 = vmatpush.msra.mxu0 0.0
        %1589 = vmatpush.msra.mxu0 0.0
        %1590 = vmatpush.msra.mxu0 0.0
        %1591 = vmatpush.msra.mxu0 0.0
        %1592 = vmatpush.msra.mxu0 0.0
        %1593 = vmatpush.msra.mxu0 %v1425
        %1594 = vmatmul.f32.gmra.mxu0 %v1576
        %v1595 = vpop.f32.mrf.mxu0
        %v1596 = vadd.f32 0.0, %v1595
        %1597 = vdwg.mxu0
        %s1598 = scalar_lea.vmem %s1383, 8
        %v1599 = vld [vmem:[%s1598] sm:$0xff]
        %v1601 = vsel %vm1488, %v1599, 0
        %1603 = vmatpush.msra.mxu0 0.0
        %1604 = vmatpush.msra.mxu0 0.0
        %1605 = vmatpush.msra.mxu0 0.0
        %1606 = vmatpush.msra.mxu0 0.0
        %1607 = vmatpush.msra.mxu0 0.0
        %1608 = vmatpush.msra.mxu0 0.0
        %1609 = vmatpush.msra.mxu0 0.0
        %1610 = vmatpush.msra.mxu0 0.0
        %1611 = vmatpush.msra.mxu0 0.0
        %1612 = vmatpush.msra.mxu0 0.0
        %1613 = vmatpush.msra.mxu0 0.0
        %1614 = vmatpush.msra.mxu0 0.0
        %1615 = vmatpush.msra.mxu0 0.0
        %1616 = vmatpush.msra.mxu0 0.0
        %1617 = vmatpush.msra.mxu0 %v1494
        %1618 = vmatpush.msra.mxu0 %v1426
        %1619 = vmatmul.f32.gmra.mxu0 %v1601
        %v1620 = vpop.f32.mrf.mxu0
        %v1621 = vadd.f32 0.0, %v1620
        %1622 = vdwg.mxu0
        %v1624 = vsel %vm1463, %v1621, 0
        %1626 = vmatpush.msra.mxu0 0.0
        %1627 = vmatpush.msra.mxu0 0.0
        %1628 = vmatpush.msra.mxu0 0.0
        %1629 = vmatpush.msra.mxu0 0.0
        %1630 = vmatpush.msra.mxu0 0.0
        %1631 = vmatpush.msra.mxu0 0.0
        %1632 = vmatpush.msra.mxu0 0.0
        %1633 = vmatpush.msra.mxu0 0.0
        %1634 = vmatpush.msra.mxu0 0.0
        %1635 = vmatpush.msra.mxu0 0.0
        %1636 = vmatpush.msra.mxu0 0.0
        %1637 = vmatpush.msra.mxu0 0.0
        %1638 = vmatpush.msra.mxu0 0.0
        %1639 = vmatpush.msra.mxu0 0.0
        %1640 = vmatpush.msra.mxu0 0.0
        %1641 = vmatpush.msra.mxu0 %v1518
        %1642 = vmatmul.f32.gmra.mxu0 %v1624
        %v1643 = vpop.f32.mrf.mxu0
        %v1644 = vadd.f32 0.0, %v1643
        %1645 = vdwg.mxu0
        %v1647 = vsel %vm1434, %v1596, 0
        %1649 = vmatpush.msra.mxu0 0.0
        %1650 = vmatpush.msra.mxu0 0.0
        %1651 = vmatpush.msra.mxu0 0.0
        %1652 = vmatpush.msra.mxu0 0.0
        %1653 = vmatpush.msra.mxu0 0.0
        %1654 = vmatpush.msra.mxu0 0.0
        %1655 = vmatpush.msra.mxu0 0.0
        %1656 = vmatpush.msra.mxu0 0.0
        %1657 = vmatpush.msra.mxu0 0.0
        %1658 = vmatpush.msra.mxu0 0.0
        %1659 = vmatpush.msra.mxu0 0.0
        %1660 = vmatpush.msra.mxu0 0.0
        %1661 = vmatpush.msra.mxu0 0.0
        %1662 = vmatpush.msra.mxu0 0.0
        %1663 = vmatpush.msra.mxu0 %v1517
        %1664 = vmatpush.msra.mxu0 %v1516
        %1665 = vmatmul.f32.gmra.mxu0 %v1647
        %v1666 = vpop.f32.mrf.mxu0
        %v1667 = vadd.f32 %v1644, %v1666
        %1668 = vdwg.mxu0
        %v1669 = vadd.f32 %v1667, %v1567
        %vm1670 = vcmp.ge.f32.partialorder %v1669, 0.0
        %v1671 = vmul.f32 %v1669, 0.01
        %v1672 = vsel %vm1670, %v1669, %v1671
        %s1673 = scalar_lea.vmem %s1378, 16
        %v1674 = vld [vmem:[%s1673] sm:$0xff]
        %v1676 = vsel %vm1463, %v1674, 0
        %1678 = vmatpush.msra.mxu0 0.0
        %1679 = vmatpush.msra.mxu0 0.0
        %1680 = vmatpush.msra.mxu0 0.0
        %1681 = vmatpush.msra.mxu0 0.0
        %1682 = vmatpush.msra.mxu0 0.0
        %1683 = vmatpush.msra.mxu0 0.0
        %1684 = vmatpush.msra.mxu0 0.0
        %1685 = vmatpush.msra.mxu0 0.0
        %1686 = vmatpush.msra.mxu0 0.0
        %1687 = vmatpush.msra.mxu0 0.0
        %1688 = vmatpush.msra.mxu0 0.0
        %1689 = vmatpush.msra.mxu0 0.0
        %1690 = vmatpush.msra.mxu0 0.0
        %1691 = vmatpush.msra.mxu0 0.0
        %1692 = vmatpush.msra.mxu0 0.0
        %1693 = vmatpush.msra.mxu0 %v1425
        %1694 = vmatmul.f32.gmra.mxu0 %v1676
        %v1695 = vpop.f32.mrf.mxu0
        %v1696 = vadd.f32 0.0, %v1695
        %1697 = vdwg.mxu0
        %s1698 = scalar_lea.vmem %s1383, 16
        %v1699 = vld [vmem:[%s1698] sm:$0xff]
        %v1701 = vsel %vm1488, %v1699, 0
        %1703 = vmatpush.msra.mxu0 0.0
        %1704 = vmatpush.msra.mxu0 0.0
        %1705 = vmatpush.msra.mxu0 0.0
        %1706 = vmatpush.msra.mxu0 0.0
        %1707 = vmatpush.msra.mxu0 0.0
        %1708 = vmatpush.msra.mxu0 0.0
        %1709 = vmatpush.msra.mxu0 0.0
        %1710 = vmatpush.msra.mxu0 0.0
        %1711 = vmatpush.msra.mxu0 0.0
        %1712 = vmatpush.msra.mxu0 0.0
        %1713 = vmatpush.msra.mxu0 0.0
        %1714 = vmatpush.msra.mxu0 0.0
        %1715 = vmatpush.msra.mxu0 0.0
        %1716 = vmatpush.msra.mxu0 0.0
        %1717 = vmatpush.msra.mxu0 %v1494
        %1718 = vmatpush.msra.mxu0 %v1426
        %1719 = vmatmul.f32.gmra.mxu0 %v1701
        %v1720 = vpop.f32.mrf.mxu0
        %v1721 = vadd.f32 0.0, %v1720
        %1722 = vdwg.mxu0
        %v1724 = vsel %vm1463, %v1721, 0
        %1726 = vmatpush.msra.mxu0 0.0
        %1727 = vmatpush.msra.mxu0 0.0
        %1728 = vmatpush.msra.mxu0 0.0
        %1729 = vmatpush.msra.mxu0 0.0
        %1730 = vmatpush.msra.mxu0 0.0
        %1731 = vmatpush.msra.mxu0 0.0
        %1732 = vmatpush.msra.mxu0 0.0
        %1733 = vmatpush.msra.mxu0 0.0
        %1734 = vmatpush.msra.mxu0 0.0
        %1735 = vmatpush.msra.mxu0 0.0
        %1736 = vmatpush.msra.mxu0 0.0
        %1737 = vmatpush.msra.mxu0 0.0
        %1738 = vmatpush.msra.mxu0 0.0
        %1739 = vmatpush.msra.mxu0 0.0
        %1740 = vmatpush.msra.mxu0 0.0
        %1741 = vmatpush.msra.mxu0 %v1518
        %1742 = vmatmul.f32.gmra.mxu0 %v1724
        %v1743 = vpop.f32.mrf.mxu0
        %v1744 = vadd.f32 0.0, %v1743
        %1745 = vdwg.mxu0
        %v1747 = vsel %vm1434, %v1696, 0
        %1749 = vmatpush.msra.mxu0 0.0
        %1750 = vmatpush.msra.mxu0 0.0
        %1751 = vmatpush.msra.mxu0 0.0
        %1752 = vmatpush.msra.mxu0 0.0
        %1753 = vmatpush.msra.mxu0 0.0
        %1754 = vmatpush.msra.mxu0 0.0
        %1755 = vmatpush.msra.mxu0 0.0
        %1756 = vmatpush.msra.mxu0 0.0
        %1757 = vmatpush.msra.mxu0 0.0
        %1758 = vmatpush.msra.mxu0 0.0
        %1759 = vmatpush.msra.mxu0 0.0
        %1760 = vmatpush.msra.mxu0 0.0
        %1761 = vmatpush.msra.mxu0 0.0
        %1762 = vmatpush.msra.mxu0 0.0
        %1763 = vmatpush.msra.mxu0 %v1517
        %1764 = vmatpush.msra.mxu0 %v1516
        %1765 = vmatmul.f32.gmra.mxu0 %v1747
        %v1766 = vpop.f32.mrf.mxu0
        %v1767 = vadd.f32 %v1744, %v1766
        %1768 = vdwg.mxu0
        %v1769 = vadd.f32 %v1767, %v1567
        %vm1770 = vcmp.ge.f32.partialorder %v1769, 0.0
        %v1771 = vmul.f32 %v1769, 0.01
        %v1772 = vsel %vm1770, %v1769, %v1771
        %s1773 = scalar_lea.vmem %s1378, 24
        %v1774 = vld [vmem:[%s1773] sm:$0xff]
        %v1776 = vsel %vm1463, %v1774, 0
        %1778 = vmatpush.msra.mxu0 0.0
        %1779 = vmatpush.msra.mxu0 0.0
        %1780 = vmatpush.msra.mxu0 0.0
        %1781 = vmatpush.msra.mxu0 0.0
        %1782 = vmatpush.msra.mxu0 0.0
        %1783 = vmatpush.msra.mxu0 0.0
        %1784 = vmatpush.msra.mxu0 0.0
        %1785 = vmatpush.msra.mxu0 0.0
        %1786 = vmatpush.msra.mxu0 0.0
        %1787 = vmatpush.msra.mxu0 0.0
        %1788 = vmatpush.msra.mxu0 0.0
        %1789 = vmatpush.msra.mxu0 0.0
        %1790 = vmatpush.msra.mxu0 0.0
        %1791 = vmatpush.msra.mxu0 0.0
        %1792 = vmatpush.msra.mxu0 0.0
        %1793 = vmatpush.msra.mxu0 %v1425
        %1794 = vmatmul.f32.gmra.mxu0 %v1776
        %v1795 = vpop.f32.mrf.mxu0
        %v1796 = vadd.f32 0.0, %v1795
        %1797 = vdwg.mxu0
        %s1798 = scalar_lea.vmem %s1383, 24
        %v1799 = vld [vmem:[%s1798] sm:$0xff]
        %v1801 = vsel %vm1488, %v1799, 0
        %1803 = vmatpush.msra.mxu0 0.0
        %1804 = vmatpush.msra.mxu0 0.0
        %1805 = vmatpush.msra.mxu0 0.0
        %1806 = vmatpush.msra.mxu0 0.0
        %1807 = vmatpush.msra.mxu0 0.0
        %1808 = vmatpush.msra.mxu0 0.0
        %1809 = vmatpush.msra.mxu0 0.0
        %1810 = vmatpush.msra.mxu0 0.0
        %1811 = vmatpush.msra.mxu0 0.0
        %1812 = vmatpush.msra.mxu0 0.0
        %1813 = vmatpush.msra.mxu0 0.0
        %1814 = vmatpush.msra.mxu0 0.0
        %1815 = vmatpush.msra.mxu0 0.0
        %1816 = vmatpush.msra.mxu0 0.0
        %1817 = vmatpush.msra.mxu0 %v1494
        %1818 = vmatpush.msra.mxu0 %v1426
        %1819 = vmatmul.f32.gmra.mxu0 %v1801
        %v1820 = vpop.f32.mrf.mxu0
        %v1821 = vadd.f32 0.0, %v1820
        %1822 = vdwg.mxu0
        %v1824 = vsel %vm1463, %v1821, 0
        %1826 = vmatpush.msra.mxu0 0.0
        %1827 = vmatpush.msra.mxu0 0.0
        %1828 = vmatpush.msra.mxu0 0.0
        %1829 = vmatpush.msra.mxu0 0.0
        %1830 = vmatpush.msra.mxu0 0.0
        %1831 = vmatpush.msra.mxu0 0.0
        %1832 = vmatpush.msra.mxu0 0.0
        %1833 = vmatpush.msra.mxu0 0.0
        %1834 = vmatpush.msra.mxu0 0.0
        %1835 = vmatpush.msra.mxu0 0.0
        %1836 = vmatpush.msra.mxu0 0.0
        %1837 = vmatpush.msra.mxu0 0.0
        %1838 = vmatpush.msra.mxu0 0.0
        %1839 = vmatpush.msra.mxu0 0.0
        %1840 = vmatpush.msra.mxu0 0.0
        %1841 = vmatpush.msra.mxu0 %v1518
        %1842 = vmatmul.f32.gmra.mxu0 %v1824
        %v1843 = vpop.f32.mrf.mxu0
        %v1844 = vadd.f32 0.0, %v1843
        %1845 = vdwg.mxu0
        %v1847 = vsel %vm1434, %v1796, 0
        %1849 = vmatpush.msra.mxu0 0.0
        %1850 = vmatpush.msra.mxu0 0.0
        %1851 = vmatpush.msra.mxu0 0.0
        %1852 = vmatpush.msra.mxu0 0.0
        %1853 = vmatpush.msra.mxu0 0.0
        %1854 = vmatpush.msra.mxu0 0.0
        %1855 = vmatpush.msra.mxu0 0.0
        %1856 = vmatpush.msra.mxu0 0.0
        %1857 = vmatpush.msra.mxu0 0.0
        %1858 = vmatpush.msra.mxu0 0.0
        %1859 = vmatpush.msra.mxu0 0.0
        %1860 = vmatpush.msra.mxu0 0.0
        %1861 = vmatpush.msra.mxu0 0.0
        %1862 = vmatpush.msra.mxu0 0.0
        %1863 = vmatpush.msra.mxu0 %v1517
        %1864 = vmatpush.msra.mxu0 %v1516
        %1865 = vmatmul.f32.gmra.mxu0 %v1847
        %v1866 = vpop.f32.mrf.mxu0
        %v1867 = vadd.f32 %v1844, %v1866
        %1868 = vdwg.mxu0
        %v1869 = vadd.f32 %v1867, %v1567
        %vm1870 = vcmp.ge.f32.partialorder %v1869, 0.0
        %v1871 = vmul.f32 %v1869, 0.01
        %v1872 = vsel %vm1870, %v1869, %v1871
        %v1873 = vld [vmem:[%s27] sm:$0x1]
        %v1874 = vld [vmem:[%s29] sm:$0x1]
        %v1875 = vld [vmem:[%s31] sm:$0x1]
        %v1877 = vperm.slane %v1873, 0
        %v1879 = vmul.f32 %v1461, %v1877
        %1880 = vadd.xlane.f32.xlu0 %v1879
        %v1881 = vpop.xlane.xlu0 %1880
        %v1883 = vperm.slane %v1874, 0
        %v1885 = vmul.f32 %v1572, %v1883
        %1886 = vadd.xlane.f32.xlu0 %v1885
        %v1887 = vpop.xlane.xlu0 %1886
        %v1888 = vadd.f32 %v1881, %v1887
        %v1890 = vperm.slane %v1875, 0
        %v1892 = vadd.f32 %v1888, %v1890
        %vm1893 = vcmp.ge.f32.partialorder %v1892, 0.0
        %v1894 = vmul.f32 %v1892, 0.01
        %v1895 = vsel %vm1893, %v1892, %v1894
        %v1896 = vld [vmem:[%s1388] sm:$0xff]
        %v1897 = vadd.f32 %v1895, %v1896
        %v1898 = vmul.f32 %v1672, %v1883
        %1899 = vadd.xlane.f32.xlu0 %v1898
        %v1900 = vpop.xlane.xlu0 %1899
        %v1901 = vadd.f32 %v1881, %v1900
        %v1902 = vadd.f32 %v1901, %v1890
        %vm1903 = vcmp.ge.f32.partialorder %v1902, 0.0
        %v1904 = vmul.f32 %v1902, 0.01
        %v1905 = vsel %vm1903, %v1902, %v1904
        %s1906 = scalar_lea.vmem %s1388, 8
        %v1907 = vld [vmem:[%s1906] sm:$0xff]
        %v1908 = vadd.f32 %v1905, %v1907
        %v1909 = vmul.f32 %v1772, %v1883
        %1910 = vadd.xlane.f32.xlu0 %v1909
        %v1911 = vpop.xlane.xlu0 %1910
        %v1912 = vadd.f32 %v1881, %v1911
        %v1913 = vadd.f32 %v1912, %v1890
        %vm1914 = vcmp.ge.f32.partialorder %v1913, 0.0
        %v1915 = vmul.f32 %v1913, 0.01
        %v1916 = vsel %vm1914, %v1913, %v1915
        %s1917 = scalar_lea.vmem %s1388, 16
        %v1918 = vld [vmem:[%s1917] sm:$0xff]
        %v1919 = vadd.f32 %v1916, %v1918
        %v1920 = vmul.f32 %v1872, %v1883
        %1921 = vadd.xlane.f32.xlu0 %v1920
        %v1922 = vpop.xlane.xlu0 %1921
        %v1923 = vadd.f32 %v1881, %v1922
        %v1924 = vadd.f32 %v1923, %v1890
        %vm1925 = vcmp.ge.f32.partialorder %v1924, 0.0
        %v1926 = vmul.f32 %v1924, 0.01
        %v1927 = vsel %vm1925, %v1924, %v1926
        %s1928 = scalar_lea.vmem %s1388, 24
        %v1929 = vld [vmem:[%s1928] sm:$0xff]
        %v1930 = vadd.f32 %v1927, %v1929
        %v1931 = vmax.f32 %v1897, %v1908
        %v1932 = vmax.f32 %v1931, %v1919
        %v1933 = vmax.f32 %v1932, %v1930
        %v1934 = vsub.f32 %v1897, %v1933
        %v1935 = vmul.f32 %v1934, 1.442695
        %v1936 = vpow.pop %v1935
        %v1937 = vsub.f32 %v1908, %v1933
        %v1938 = vmul.f32 %v1937, 1.442695
        %v1939 = vpow.pop %v1938
        %v1940 = vsub.f32 %v1919, %v1933
        %v1941 = vmul.f32 %v1940, 1.442695
        %v1942 = vpow.pop %v1941
        %v1943 = vsub.f32 %v1930, %v1933
        %v1944 = vmul.f32 %v1943, 1.442695
        %v1945 = vpow.pop %v1944
        %v1946 = vadd.f32 %v1936, %v1939
        %v1947 = vadd.f32 %v1946, %v1942
        %v1948 = vadd.f32 %v1947, %v1945
        %v1949 = vrcp.pop %v1948
        %v1950 = vmul.f32 %v1936, %v1949
        %v1951 = vld [vmem:[%s1393] sm:$0xff]
        %v1952 = vmul.f32 %v1950, %v1951
        %v1953 = vmul.f32 %v1939, %v1949
        %s1954 = scalar_lea.vmem %s1393, 8
        %v1955 = vld [vmem:[%s1954] sm:$0xff]
        %v1956 = vmul.f32 %v1953, %v1955
        %v1957 = vmul.f32 %v1942, %v1949
        %s1958 = scalar_lea.vmem %s1393, 16
        %v1959 = vld [vmem:[%s1958] sm:$0xff]
        %v1960 = vmul.f32 %v1957, %v1959
        %v1961 = vmul.f32 %v1945, %v1949
        %s1962 = scalar_lea.vmem %s1393, 24
        %v1963 = vld [vmem:[%s1962] sm:$0xff]
        %v1964 = vmul.f32 %v1961, %v1963
        %vm1965 = vcmask 7168
        %1966 = vst.msk [vmem:[%s1411] sm:$0xff] %vm1965, %v1952
        %s1967 = scalar_lea.vmem %s1411, 8
        %1968 = vst.msk [vmem:[%s1967] sm:$0xff] %vm1965, %v1956
        %s1969 = scalar_lea.vmem %s1411, 16
        %1970 = vst.msk [vmem:[%s1969] sm:$0xff] %vm1965, %v1960
        %s1971 = scalar_lea.vmem %s1411, 24
        %1972 = vst.msk [vmem:[%s1971] sm:$0xff] %vm1965, %v1964
        %1974 = vset.pattern.permute.xlu0 0
        %1975 = vperm.xlu0 %1974, %v1952
        %v1976 = vpop.permute.xlu0 %1975
        %v1978 = vmul.f32 %v1976, %v1572
        %1980 = vset.pattern.permute.xlu0 0
        %1981 = vperm.xlu0 %1980, %v1956
        %v1982 = vpop.permute.xlu0 %1981
        %v1984 = vmul.f32 %v1982, %v1672
        %v1985 = vadd.f32 %v1978, %v1984
        %v1986 = vadd.f32 %v1952, %v1956
        %1988 = vset.pattern.permute.xlu0 0
        %1989 = vperm.xlu0 %1988, %v1960
        %v1990 = vpop.permute.xlu0 %1989
        %v1992 = vmul.f32 %v1990, %v1772
        %v1993 = vadd.f32 %v1985, %v1992
        %v1994 = vadd.f32 %v1986, %v1960
        %1996 = vset.pattern.permute.xlu0 0
        %1997 = vperm.xlu0 %1996, %v1964
        %v1998 = vpop.permute.xlu0 %1997
        %v2000 = vmul.f32 %v1998, %v1872
        %v2001 = vadd.f32 %v1993, %v2000
        %v2002 = vadd.f32 %v1994, %v1964
        %v2003 = vld [vmem:[#allocation3] sm:$0xff]
        %v2004 = vld [vmem:[#allocation3 + $0x8] sm:$0xff]
        %v2005 = vld [vmem:[#allocation3 + $0x10] sm:$0xff]
        %v2006 = vld [vmem:[#allocation3 + $0x18] sm:$0xff]
        %v2007 = vld [vmem:[#allocation3 + $0x20] sm:$0xff]
        %v2008 = vld [vmem:[#allocation3 + $0x28] sm:$0xff]
        %v2009 = vld [vmem:[#allocation3 + $0x30] sm:$0xff]
        %v2010 = vld [vmem:[#allocation3 + $0x38] sm:$0xff]
        %v2011 = vld [vmem:[#allocation3 + $0x40] sm:$0xff]
        %v2012 = vld [vmem:[#allocation3 + $0x48] sm:$0xff]
        %v2013 = vld [vmem:[#allocation3 + $0x50] sm:$0xff]
        %v2014 = vld [vmem:[#allocation3 + $0x58] sm:$0xff]
        %v2015 = vld [vmem:[#allocation3 + $0x60] sm:$0xff]
        %v2016 = vld [vmem:[#allocation3 + $0x68] sm:$0xff]
        %v2017 = vld [vmem:[#allocation3 + $0x70] sm:$0xff]
        %v2018 = vld [vmem:[#allocation3 + $0x78] sm:$0xff]
        %v2019 = vld [vmem:[%s35] sm:$0x1]
        %2021 = vset.pattern.permute.xlu0 0
        %2022 = vperm.xlu0 %2021, %v2002
        %v2023 = vpop.permute.xlu0 %2022
        %v2026 = vperm.slane %v2019, 0
        %v2028 = vmul.f32 %v2023, %v2026
        %2029 = vmatpush.msra.mxu0 %v2018
        %2030 = vmatpush.msra.mxu0 %v2017
        %2031 = vmatpush.msra.mxu0 %v2016
        %2032 = vmatpush.msra.mxu0 %v2015
        %2033 = vmatpush.msra.mxu0 %v2014
        %2034 = vmatpush.msra.mxu0 %v2013
        %2035 = vmatpush.msra.mxu0 %v2012
        %2036 = vmatpush.msra.mxu0 %v2011
        %2037 = vmatpush.msra.mxu0 %v2010
        %2038 = vmatpush.msra.mxu0 %v2009
        %2039 = vmatpush.msra.mxu0 %v2008
        %2040 = vmatpush.msra.mxu0 %v2007
        %2041 = vmatpush.msra.mxu0 %v2006
        %2042 = vmatpush.msra.mxu0 %v2005
        %2043 = vmatpush.msra.mxu0 %v2004
        %2044 = vmatpush.msra.mxu0 %v2003
        %2045 = vmatmul.f32.gmra.mxu0 %v2001
        %v2046 = vpop.f32.mrf.mxu0
        %v2047 = vadd.f32 %v2028, %v2046
        %2048 = vdwg.mxu0
        %vm2049 = vcmp.gt.f32.partialorder %v2047, 0.0
        %v2050 = vmul.f32 %v2047, 1.442695
        %v2051 = vpow.pop %v2050
        %v2052 = vsub.f32 %v2051, 1.0
        %v2053 = vsel %vm2049, %v2047, %v2052
        %v2054 = vld [vmem:[#allocation6] sm:$0xff]
        %v2055 = vld [vmem:[#allocation6 + $0x8] sm:$0xff]
        %v2056 = vld [vmem:[#allocation6 + $0x10] sm:$0xff]
        %v2057 = vld [vmem:[#allocation6 + $0x18] sm:$0xff]
        %v2058 = vld [vmem:[#allocation6 + $0x20] sm:$0xff]
        %v2059 = vld [vmem:[#allocation6 + $0x28] sm:$0xff]
        %v2060 = vld [vmem:[#allocation6 + $0x30] sm:$0xff]
        %v2061 = vld [vmem:[#allocation6 + $0x38] sm:$0xff]
        %v2062 = vld [vmem:[#allocation6 + $0x40] sm:$0xff]
        %v2063 = vld [vmem:[#allocation6 + $0x48] sm:$0xff]
        %v2064 = vld [vmem:[#allocation6 + $0x50] sm:$0xff]
        %v2065 = vld [vmem:[#allocation6 + $0x58] sm:$0xff]
        %v2066 = vld [vmem:[#allocation6 + $0x60] sm:$0xff]
        %v2067 = vld [vmem:[#allocation6 + $0x68] sm:$0xff]
        %v2068 = vld [vmem:[#allocation6 + $0x70] sm:$0xff]
        %v2069 = vld [vmem:[#allocation6 + $0x78] sm:$0xff]
        %v2070 = vld [vmem:[#allocation6 + $0x80] sm:$0xff]
        %v2071 = vld [vmem:[#allocation6 + $0x88] sm:$0xff]
        %v2072 = vld [vmem:[#allocation6 + $0x90] sm:$0xff]
        %v2073 = vld [vmem:[#allocation6 + $0x98] sm:$0xff]
        %v2074 = vld [vmem:[#allocation6 + $0xa0] sm:$0xff]
        %v2075 = vld [vmem:[#allocation6 + $0xa8] sm:$0xff]
        %v2076 = vld [vmem:[#allocation6 + $0xb0] sm:$0xff]
        %v2077 = vld [vmem:[#allocation6 + $0xb8] sm:$0xff]
        %v2078 = vld [vmem:[#allocation6 + $0xc0] sm:$0xff]
        %v2079 = vld [vmem:[#allocation6 + $0xc8] sm:$0xff]
        %v2080 = vld [vmem:[#allocation6 + $0xd0] sm:$0xff]
        %v2081 = vld [vmem:[#allocation6 + $0xd8] sm:$0xff]
        %v2082 = vld [vmem:[#allocation6 + $0xe0] sm:$0xff]
        %v2083 = vld [vmem:[#allocation6 + $0xe8] sm:$0xff]
        %v2084 = vld [vmem:[#allocation6 + $0xf0] sm:$0xff]
        %v2085 = vld [vmem:[#allocation6 + $0xf8] sm:$0xff]
        %v2086 = vld [vmem:[#allocation6 + $0x100] sm:$0xff]
        %v2087 = vld [vmem:[#allocation6 + $0x108] sm:$0xff]
        %v2088 = vld [vmem:[#allocation6 + $0x110] sm:$0xff]
        %v2089 = vld [vmem:[#allocation6 + $0x118] sm:$0xff]
        %v2090 = vld [vmem:[#allocation6 + $0x120] sm:$0xff]
        %v2091 = vld [vmem:[#allocation6 + $0x128] sm:$0xff]
        %v2092 = vld [vmem:[#allocation6 + $0x130] sm:$0xff]
        %v2093 = vld [vmem:[#allocation6 + $0x138] sm:$0xff]
        %v2094 = vld [vmem:[#allocation6 + $0x140] sm:$0xff]
        %v2095 = vld [vmem:[#allocation6 + $0x148] sm:$0xff]
        %v2096 = vld [vmem:[#allocation6 + $0x150] sm:$0xff]
        %v2097 = vld [vmem:[#allocation6 + $0x158] sm:$0xff]
        %v2098 = vld [vmem:[#allocation6 + $0x160] sm:$0xff]
        %v2099 = vld [vmem:[#allocation6 + $0x168] sm:$0xff]
        %v2100 = vld [vmem:[#allocation6 + $0x170] sm:$0xff]
        %v2101 = vld [vmem:[#allocation6 + $0x178] sm:$0xff]
        %v2102 = vld [vmem:[#allocation8] sm:$0xff]
        %v2103 = vld [vmem:[#allocation8 + $0x8] sm:$0xff]
        %v2104 = vld [vmem:[#allocation8 + $0x10] sm:$0xff]
        %v2105 = vld [vmem:[#allocation8 + $0x18] sm:$0xff]
        %v2106 = vld [vmem:[#allocation8 + $0x20] sm:$0xff]
        %v2107 = vld [vmem:[#allocation8 + $0x28] sm:$0xff]
        %v2108 = vld [vmem:[#allocation8 + $0x30] sm:$0xff]
        %v2109 = vld [vmem:[#allocation8 + $0x38] sm:$0xff]
        %v2110 = vld [vmem:[#allocation8 + $0x40] sm:$0xff]
        %v2111 = vld [vmem:[#allocation8 + $0x48] sm:$0xff]
        %v2112 = vld [vmem:[#allocation8 + $0x50] sm:$0xff]
        %v2113 = vld [vmem:[#allocation8 + $0x58] sm:$0xff]
        %v2114 = vld [vmem:[#allocation8 + $0x60] sm:$0xff]
        %v2115 = vld [vmem:[#allocation8 + $0x68] sm:$0xff]
        %v2116 = vld [vmem:[#allocation8 + $0x70] sm:$0xff]
        %v2117 = vld [vmem:[#allocation8 + $0x78] sm:$0xff]
        %v2118 = vld [vmem:[#allocation8 + $0x80] sm:$0xff]
        %v2119 = vld [vmem:[#allocation8 + $0x88] sm:$0xff]
        %v2120 = vld [vmem:[#allocation8 + $0x90] sm:$0xff]
        %v2121 = vld [vmem:[#allocation8 + $0x98] sm:$0xff]
        %v2122 = vld [vmem:[#allocation8 + $0xa0] sm:$0xff]
        %v2123 = vld [vmem:[#allocation8 + $0xa8] sm:$0xff]
        %v2124 = vld [vmem:[#allocation8 + $0xb0] sm:$0xff]
        %v2125 = vld [vmem:[#allocation8 + $0xb8] sm:$0xff]
        %v2126 = vld [vmem:[#allocation8 + $0xc0] sm:$0xff]
        %v2127 = vld [vmem:[#allocation8 + $0xc8] sm:$0xff]
        %v2128 = vld [vmem:[#allocation8 + $0xd0] sm:$0xff]
        %v2129 = vld [vmem:[#allocation8 + $0xd8] sm:$0xff]
        %v2130 = vld [vmem:[#allocation8 + $0xe0] sm:$0xff]
        %v2131 = vld [vmem:[#allocation8 + $0xe8] sm:$0xff]
        %v2132 = vld [vmem:[#allocation8 + $0xf0] sm:$0xff]
        %v2133 = vld [vmem:[#allocation8 + $0xf8] sm:$0xff]
        %v2134 = vld [vmem:[#allocation8 + $0x100] sm:$0xff]
        %v2135 = vld [vmem:[#allocation8 + $0x108] sm:$0xff]
        %v2136 = vld [vmem:[#allocation8 + $0x110] sm:$0xff]
        %v2137 = vld [vmem:[#allocation8 + $0x118] sm:$0xff]
        %v2138 = vld [vmem:[#allocation8 + $0x120] sm:$0xff]
        %v2139 = vld [vmem:[#allocation8 + $0x128] sm:$0xff]
        %v2140 = vld [vmem:[#allocation8 + $0x130] sm:$0xff]
        %v2141 = vld [vmem:[#allocation8 + $0x138] sm:$0xff]
        %v2142 = vld [vmem:[#allocation8 + $0x140] sm:$0xff]
        %v2143 = vld [vmem:[#allocation8 + $0x148] sm:$0xff]
        %v2144 = vld [vmem:[#allocation8 + $0x150] sm:$0xff]
        %v2145 = vld [vmem:[#allocation8 + $0x158] sm:$0xff]
        %v2146 = vld [vmem:[#allocation8 + $0x160] sm:$0xff]
        %v2147 = vld [vmem:[#allocation8 + $0x168] sm:$0xff]
        %v2148 = vld [vmem:[#allocation8 + $0x170] sm:$0xff]
        %v2149 = vld [vmem:[#allocation8 + $0x178] sm:$0xff]
        %v2150 = vld [vmem:[%s41] sm:$0x7]
        %v2151 = vld [vmem:[%s43] sm:$0x7]
        %v2153 = vperm.slane %v2150, 0
        %v2154 = vperm.slane %v2150, 1
        %v2155 = vperm.slane %v2150, 2
        %2159 = vmatpush.msra.mxu0 %v2099
        %2160 = vmatpush.msra.mxu0 %v2096
        %2161 = vmatpush.msra.mxu0 %v2093
        %2162 = vmatpush.msra.mxu0 %v2090
        %2163 = vmatpush.msra.mxu0 %v2087
        %2164 = vmatpush.msra.mxu0 %v2084
        %2165 = vmatpush.msra.mxu0 %v2081
        %2166 = vmatpush.msra.mxu0 %v2078
        %2167 = vmatpush.msra.mxu0 %v2075
        %2168 = vmatpush.msra.mxu0 %v2072
        %2169 = vmatpush.msra.mxu0 %v2069
        %2170 = vmatpush.msra.mxu0 %v2066
        %2171 = vmatpush.msra.mxu0 %v2063
        %2172 = vmatpush.msra.mxu0 %v2060
        %2173 = vmatpush.msra.mxu0 %v2057
        %2174 = vmatpush.msra.mxu0 %v2054
        %2175 = vmatmul.f32.gmra.mxu0 %v2053
        %v2176 = vpop.f32.mrf.mxu0
        %v2177 = vadd.f32 %v2153, %v2176
        %2178 = vdwg.mxu0
        %2179 = vmatpush.msra.mxu0 %v2100
        %2180 = vmatpush.msra.mxu0 %v2097
        %2181 = vmatpush.msra.mxu0 %v2094
        %2182 = vmatpush.msra.mxu0 %v2091
        %2183 = vmatpush.msra.mxu0 %v2088
        %2184 = vmatpush.msra.mxu0 %v2085
        %2185 = vmatpush.msra.mxu0 %v2082
        %2186 = vmatpush.msra.mxu0 %v2079
        %2187 = vmatpush.msra.mxu0 %v2076
        %2188 = vmatpush.msra.mxu0 %v2073
        %2189 = vmatpush.msra.mxu0 %v2070
        %2190 = vmatpush.msra.mxu0 %v2067
        %2191 = vmatpush.msra.mxu0 %v2064
        %2192 = vmatpush.msra.mxu0 %v2061
        %2193 = vmatpush.msra.mxu0 %v2058
        %2194 = vmatpush.msra.mxu0 %v2055
        %2195 = vmatmul.f32.gmra.mxu0 %v2053
        %v2196 = vpop.f32.mrf.mxu0
        %v2197 = vadd.f32 %v2154, %v2196
        %2198 = vdwg.mxu0
        %2199 = vmatpush.msra.mxu0 %v2101
        %2200 = vmatpush.msra.mxu0 %v2098
        %2201 = vmatpush.msra.mxu0 %v2095
        %2202 = vmatpush.msra.mxu0 %v2092
        %2203 = vmatpush.msra.mxu0 %v2089
        %2204 = vmatpush.msra.mxu0 %v2086
        %2205 = vmatpush.msra.mxu0 %v2083
        %2206 = vmatpush.msra.mxu0 %v2080
        %2207 = vmatpush.msra.mxu0 %v2077
        %2208 = vmatpush.msra.mxu0 %v2074
        %2209 = vmatpush.msra.mxu0 %v2071
        %2210 = vmatpush.msra.mxu0 %v2068
        %2211 = vmatpush.msra.mxu0 %v2065
        %2212 = vmatpush.msra.mxu0 %v2062
        %2213 = vmatpush.msra.mxu0 %v2059
        %2214 = vmatpush.msra.mxu0 %v2056
        %2215 = vmatmul.f32.gmra.mxu0 %v2053
        %v2216 = vpop.f32.mrf.mxu0
        %v2217 = vadd.f32 %v2155, %v2216
        %2218 = vdwg.mxu0
        %v2220 = vperm.slane %v2151, 0
        %v2221 = vperm.slane %v2151, 1
        %v2222 = vperm.slane %v2151, 2
        %2226 = vmatpush.msra.mxu0 %v2147
        %2227 = vmatpush.msra.mxu0 %v2144
        %2228 = vmatpush.msra.mxu0 %v2141
        %2229 = vmatpush.msra.mxu0 %v2138
        %2230 = vmatpush.msra.mxu0 %v2135
        %2231 = vmatpush.msra.mxu0 %v2132
        %2232 = vmatpush.msra.mxu0 %v2129
        %2233 = vmatpush.msra.mxu0 %v2126
        %2234 = vmatpush.msra.mxu0 %v2123
        %2235 = vmatpush.msra.mxu0 %v2120
        %2236 = vmatpush.msra.mxu0 %v2117
        %2237 = vmatpush.msra.mxu0 %v2114
        %2238 = vmatpush.msra.mxu0 %v2111
        %2239 = vmatpush.msra.mxu0 %v2108
        %2240 = vmatpush.msra.mxu0 %v2105
        %2241 = vmatpush.msra.mxu0 %v2102
        %2242 = vmatmul.f32.gmra.mxu0 %v1461
        %v2243 = vpop.f32.mrf.mxu0
        %v2244 = vadd.f32 %v2220, %v2243
        %2245 = vdwg.mxu0
        %2246 = vmatpush.msra.mxu0 %v2148
        %2247 = vmatpush.msra.mxu0 %v2145
        %2248 = vmatpush.msra.mxu0 %v2142
        %2249 = vmatpush.msra.mxu0 %v2139
        %2250 = vmatpush.msra.mxu0 %v2136
        %2251 = vmatpush.msra.mxu0 %v2133
        %2252 = vmatpush.msra.mxu0 %v2130
        %2253 = vmatpush.msra.mxu0 %v2127
        %2254 = vmatpush.msra.mxu0 %v2124
        %2255 = vmatpush.msra.mxu0 %v2121
        %2256 = vmatpush.msra.mxu0 %v2118
        %2257 = vmatpush.msra.mxu0 %v2115
        %2258 = vmatpush.msra.mxu0 %v2112
        %2259 = vmatpush.msra.mxu0 %v2109
        %2260 = vmatpush.msra.mxu0 %v2106
        %2261 = vmatpush.msra.mxu0 %v2103
        %2262 = vmatmul.f32.gmra.mxu0 %v1461
        %v2263 = vpop.f32.mrf.mxu0
        %v2264 = vadd.f32 %v2221, %v2263
        %2265 = vdwg.mxu0
        %2266 = vmatpush.msra.mxu0 %v2149
        %2267 = vmatpush.msra.mxu0 %v2146
        %2268 = vmatpush.msra.mxu0 %v2143
        %2269 = vmatpush.msra.mxu0 %v2140
        %2270 = vmatpush.msra.mxu0 %v2137
        %2271 = vmatpush.msra.mxu0 %v2134
        %2272 = vmatpush.msra.mxu0 %v2131
        %2273 = vmatpush.msra.mxu0 %v2128
        %2274 = vmatpush.msra.mxu0 %v2125
        %2275 = vmatpush.msra.mxu0 %v2122
        %2276 = vmatpush.msra.mxu0 %v2119
        %2277 = vmatpush.msra.mxu0 %v2116
        %2278 = vmatpush.msra.mxu0 %v2113
        %2279 = vmatpush.msra.mxu0 %v2110
        %2280 = vmatpush.msra.mxu0 %v2107
        %2281 = vmatpush.msra.mxu0 %v2104
        %2282 = vmatmul.f32.gmra.mxu0 %v1461
        %v2283 = vpop.f32.mrf.mxu0
        %v2284 = vadd.f32 %v2222, %v2283
        %2285 = vdwg.mxu0
        %v2286 = vadd.f32 %v2177, %v2244
        %v2287 = vsub.f32 0.0, %v2286
        %v2288 = vmul.f32 %v2287, 1.442695
        %v2289 = vpow.pop %v2288
        %v2290 = vadd.f32 %v2289, 1.0
        %v2291 = vrcp.pop %v2290
        %v2292 = vadd.f32 %v2197, %v2264
        %v2293 = vsub.f32 0.0, %v2292
        %v2294 = vmul.f32 %v2293, 1.442695
        %v2295 = vpow.pop %v2294
        %v2296 = vadd.f32 %v2295, 1.0
        %v2297 = vrcp.pop %v2296
        %v2298 = vmul.f32 %v2291, %v2284
        %v2299 = vadd.f32 %v2217, %v2298
        %v2300 = vtanh.pop %v2299
        %v2301 = vsub.f32 1.0, %v2297
        %v2302 = vmul.f32 %v2301, %v2300
        %v2303 = vmul.f32 %v2297, %v1461
        %v2304 = vadd.f32 %v2302, %v2303
        %v2305 = vmax.f32 %v2304, 0.0
        %s2306 = scalar_lea.vmem %s1406, 8
        %2307 = vst [vmem:[%s2306] sm:$0xff] %v2305
        %v2308 = vld [vmem:[%s1378] sm:$0xff]
        %v2310 = vsel %vm1463, %v2308, 0
        %2312 = vmatpush.msra.mxu0 0.0
        %2313 = vmatpush.msra.mxu0 0.0
        %2314 = vmatpush.msra.mxu0 0.0
        %2315 = vmatpush.msra.mxu0 0.0
        %2316 = vmatpush.msra.mxu0 0.0
        %2317 = vmatpush.msra.mxu0 0.0
        %2318 = vmatpush.msra.mxu0 0.0
        %2319 = vmatpush.msra.mxu0 0.0
        %2320 = vmatpush.msra.mxu0 0.0
        %2321 = vmatpush.msra.mxu0 0.0
        %2322 = vmatpush.msra.mxu0 0.0
        %2323 = vmatpush.msra.mxu0 0.0
        %2324 = vmatpush.msra.mxu0 0.0
        %2325 = vmatpush.msra.mxu0 0.0
        %2326 = vmatpush.msra.mxu0 0.0
        %2327 = vmatpush.msra.mxu0 %v2305
        %2328 = vmatmul.f32.gmra.mxu0 %v2310
        %v2329 = vpop.f32.mrf.mxu0
        %v2330 = vadd.f32 0.0, %v2329
        %2331 = vdwg.mxu0
        %v2332 = vld [vmem:[%s1573] sm:$0xff]
        %v2334 = vsel %vm1463, %v2332, 0
        %2336 = vmatpush.msra.mxu0 0.0
        %2337 = vmatpush.msra.mxu0 0.0
        %2338 = vmatpush.msra.mxu0 0.0
        %2339 = vmatpush.msra.mxu0 0.0
        %2340 = vmatpush.msra.mxu0 0.0
        %2341 = vmatpush.msra.mxu0 0.0
        %2342 = vmatpush.msra.mxu0 0.0
        %2343 = vmatpush.msra.mxu0 0.0
        %2344 = vmatpush.msra.mxu0 0.0
        %2345 = vmatpush.msra.mxu0 0.0
        %2346 = vmatpush.msra.mxu0 0.0
        %2347 = vmatpush.msra.mxu0 0.0
        %2348 = vmatpush.msra.mxu0 0.0
        %2349 = vmatpush.msra.mxu0 0.0
        %2350 = vmatpush.msra.mxu0 0.0
        %2351 = vmatpush.msra.mxu0 %v2305
        %2352 = vmatmul.f32.gmra.mxu0 %v2334
        %v2353 = vpop.f32.mrf.mxu0
        %v2354 = vadd.f32 0.0, %v2353
        %2355 = vdwg.mxu0
        %v2356 = vld [vmem:[%s1673] sm:$0xff]
        %v2358 = vsel %vm1463, %v2356, 0
        %2360 = vmatpush.msra.mxu0 0.0
        %2361 = vmatpush.msra.mxu0 0.0
        %2362 = vmatpush.msra.mxu0 0.0
        %2363 = vmatpush.msra.mxu0 0.0
        %2364 = vmatpush.msra.mxu0 0.0
        %2365 = vmatpush.msra.mxu0 0.0
        %2366 = vmatpush.msra.mxu0 0.0
        %2367 = vmatpush.msra.mxu0 0.0
        %2368 = vmatpush.msra.mxu0 0.0
        %2369 = vmatpush.msra.mxu0 0.0
        %2370 = vmatpush.msra.mxu0 0.0
        %2371 = vmatpush.msra.mxu0 0.0
        %2372 = vmatpush.msra.mxu0 0.0
        %2373 = vmatpush.msra.mxu0 0.0
        %2374 = vmatpush.msra.mxu0 0.0
        %2375 = vmatpush.msra.mxu0 %v2305
        %2376 = vmatmul.f32.gmra.mxu0 %v2358
        %v2377 = vpop.f32.mrf.mxu0
        %v2378 = vadd.f32 0.0, %v2377
        %2379 = vdwg.mxu0
        %v2380 = vld [vmem:[%s1773] sm:$0xff]
        %v2382 = vsel %vm1463, %v2380, 0
        %2384 = vmatpush.msra.mxu0 0.0
        %2385 = vmatpush.msra.mxu0 0.0
        %2386 = vmatpush.msra.mxu0 0.0
        %2387 = vmatpush.msra.mxu0 0.0
        %2388 = vmatpush.msra.mxu0 0.0
        %2389 = vmatpush.msra.mxu0 0.0
        %2390 = vmatpush.msra.mxu0 0.0
        %2391 = vmatpush.msra.mxu0 0.0
        %2392 = vmatpush.msra.mxu0 0.0
        %2393 = vmatpush.msra.mxu0 0.0
        %2394 = vmatpush.msra.mxu0 0.0
        %2395 = vmatpush.msra.mxu0 0.0
        %2396 = vmatpush.msra.mxu0 0.0
        %2397 = vmatpush.msra.mxu0 0.0
        %2398 = vmatpush.msra.mxu0 0.0
        %2399 = vmatpush.msra.mxu0 %v2305
        %2400 = vmatmul.f32.gmra.mxu0 %v2382
        %v2401 = vpop.f32.mrf.mxu0
        %v2402 = vadd.f32 0.0, %v2401
        %2403 = vdwg.mxu0
        %s2404 = scalar_lea.vmem %s27, 1
        %v2405 = vld [vmem:[%s2404] sm:$0x1]
        %s2406 = scalar_lea.vmem %s29, 1
        %v2407 = vld [vmem:[%s2406] sm:$0x1]
        %s2408 = scalar_lea.vmem %s31, 1
        %v2409 = vld [vmem:[%s2408] sm:$0x1]
        %v2411 = vperm.slane %v2405, 0
        %v2413 = vmul.f32 %v2305, %v2411
        %2414 = vadd.xlane.f32.xlu0 %v2413
        %v2415 = vpop.xlane.xlu0 %2414
        %v2417 = vperm.slane %v2407, 0
        %v2419 = vmul.f32 %v2330, %v2417
        %2420 = vadd.xlane.f32.xlu0 %v2419
        %v2421 = vpop.xlane.xlu0 %2420
        %v2422 = vadd.f32 %v2415, %v2421
        %v2424 = vperm.slane %v2409, 0
        %v2426 = vadd.f32 %v2422, %v2424
        %vm2427 = vcmp.ge.f32.partialorder %v2426, 0.0
        %v2428 = vmul.f32 %v2426, 0.01
        %v2429 = vsel %vm2427, %v2426, %v2428
        %v2430 = vld [vmem:[%s1388] sm:$0xff]
        %v2431 = vadd.f32 %v2429, %v2430
        %v2432 = vmul.f32 %v2354, %v2417
        %2433 = vadd.xlane.f32.xlu0 %v2432
        %v2434 = vpop.xlane.xlu0 %2433
        %v2435 = vadd.f32 %v2415, %v2434
        %v2436 = vadd.f32 %v2435, %v2424
        %vm2437 = vcmp.ge.f32.partialorder %v2436, 0.0
        %v2438 = vmul.f32 %v2436, 0.01
        %v2439 = vsel %vm2437, %v2436, %v2438
        %v2440 = vld [vmem:[%s1906] sm:$0xff]
        %v2441 = vadd.f32 %v2439, %v2440
        %v2442 = vmul.f32 %v2378, %v2417
        %2443 = vadd.xlane.f32.xlu0 %v2442
        %v2444 = vpop.xlane.xlu0 %2443
        %v2445 = vadd.f32 %v2415, %v2444
        %v2446 = vadd.f32 %v2445, %v2424
        %vm2447 = vcmp.ge.f32.partialorder %v2446, 0.0
        %v2448 = vmul.f32 %v2446, 0.01
        %v2449 = vsel %vm2447, %v2446, %v2448
        %v2450 = vld [vmem:[%s1917] sm:$0xff]
        %v2451 = vadd.f32 %v2449, %v2450
        %v2452 = vmul.f32 %v2402, %v2417
        %2453 = vadd.xlane.f32.xlu0 %v2452
        %v2454 = vpop.xlane.xlu0 %2453
        %v2455 = vadd.f32 %v2415, %v2454
        %v2456 = vadd.f32 %v2455, %v2424
        %vm2457 = vcmp.ge.f32.partialorder %v2456, 0.0
        %v2458 = vmul.f32 %v2456, 0.01
        %v2459 = vsel %vm2457, %v2456, %v2458
        %v2460 = vld [vmem:[%s1928] sm:$0xff]
        %v2461 = vadd.f32 %v2459, %v2460
        %v2462 = vmax.f32 %v2431, %v2441
        %v2463 = vmax.f32 %v2462, %v2451
        %v2464 = vmax.f32 %v2463, %v2461
        %v2465 = vsub.f32 %v2431, %v2464
        %v2466 = vmul.f32 %v2465, 1.442695
        %v2467 = vpow.pop %v2466
        %v2468 = vsub.f32 %v2441, %v2464
        %v2469 = vmul.f32 %v2468, 1.442695
        %v2470 = vpow.pop %v2469
        %v2471 = vsub.f32 %v2451, %v2464
        %v2472 = vmul.f32 %v2471, 1.442695
        %v2473 = vpow.pop %v2472
        %v2474 = vsub.f32 %v2461, %v2464
        %v2475 = vmul.f32 %v2474, 1.442695
        %v2476 = vpow.pop %v2475
        %v2477 = vadd.f32 %v2467, %v2470
        %v2478 = vadd.f32 %v2477, %v2473
        %v2479 = vadd.f32 %v2478, %v2476
        %v2480 = vrcp.pop %v2479
        %v2481 = vmul.f32 %v2467, %v2480
        %v2482 = vld [vmem:[%s1393] sm:$0xff]
        %v2483 = vmul.f32 %v2481, %v2482
        %v2484 = vmul.f32 %v2470, %v2480
        %v2485 = vld [vmem:[%s1954] sm:$0xff]
        %v2486 = vmul.f32 %v2484, %v2485
        %v2487 = vmul.f32 %v2473, %v2480
        %v2488 = vld [vmem:[%s1958] sm:$0xff]
        %v2489 = vmul.f32 %v2487, %v2488
        %v2490 = vmul.f32 %v2476, %v2480
        %v2491 = vld [vmem:[%s1962] sm:$0xff]
        %v2492 = vmul.f32 %v2490, %v2491
        %s2493 = scalar_lea.vmem %s1411, 32
        %2494 = vst.msk [vmem:[%s2493] sm:$0xff] %vm1965, %v2483
        %s2495 = scalar_lea.vmem %s1411, 40
        %2496 = vst.msk [vmem:[%s2495] sm:$0xff] %vm1965, %v2486
        %s2497 = scalar_lea.vmem %s1411, 48
        %2498 = vst.msk [vmem:[%s2497] sm:$0xff] %vm1965, %v2489
        %s2499 = scalar_lea.vmem %s1411, 56
        %2500 = vst.msk [vmem:[%s2499] sm:$0xff] %vm1965, %v2492
        %2502 = vset.pattern.permute.xlu0 0
        %2503 = vperm.xlu0 %2502, %v2483
        %v2504 = vpop.permute.xlu0 %2503
        %v2506 = vmul.f32 %v2504, %v2330
        %2508 = vset.pattern.permute.xlu0 0
        %2509 = vperm.xlu0 %2508, %v2486
        %v2510 = vpop.permute.xlu0 %2509
        %v2512 = vmul.f32 %v2510, %v2354
        %v2513 = vadd.f32 %v2506, %v2512
        %v2514 = vadd.f32 %v2483, %v2486
        %2516 = vset.pattern.permute.xlu0 0
        %2517 = vperm.xlu0 %2516, %v2489
        %v2518 = vpop.permute.xlu0 %2517
        %v2520 = vmul.f32 %v2518, %v2378
        %v2521 = vadd.f32 %v2513, %v2520
        %v2522 = vadd.f32 %v2514, %v2489
        %2524 = vset.pattern.permute.xlu0 0
        %2525 = vperm.xlu0 %2524, %v2492
        %v2526 = vpop.permute.xlu0 %2525
        %v2528 = vmul.f32 %v2526, %v2402
        %v2529 = vadd.f32 %v2521, %v2528
        %v2530 = vadd.f32 %v2522, %v2492
        %s2531 = scalar_lea.vmem [#allocation3], 128
        %v2532 = vld [vmem:[%s2531] sm:$0xff]
        %v2533 = vld [vmem:[%s2531 + $0x8] sm:$0xff]
        %v2534 = vld [vmem:[%s2531 + $0x10] sm:$0xff]
        %v2535 = vld [vmem:[%s2531 + $0x18] sm:$0xff]
        %v2536 = vld [vmem:[%s2531 + $0x20] sm:$0xff]
        %v2537 = vld [vmem:[%s2531 + $0x28] sm:$0xff]
        %v2538 = vld [vmem:[%s2531 + $0x30] sm:$0xff]
        %v2539 = vld [vmem:[%s2531 + $0x38] sm:$0xff]
        %v2540 = vld [vmem:[%s2531 + $0x40] sm:$0xff]
        %v2541 = vld [vmem:[%s2531 + $0x48] sm:$0xff]
        %v2542 = vld [vmem:[%s2531 + $0x50] sm:$0xff]
        %v2543 = vld [vmem:[%s2531 + $0x58] sm:$0xff]
        %v2544 = vld [vmem:[%s2531 + $0x60] sm:$0xff]
        %v2545 = vld [vmem:[%s2531 + $0x68] sm:$0xff]
        %v2546 = vld [vmem:[%s2531 + $0x70] sm:$0xff]
        %v2547 = vld [vmem:[%s2531 + $0x78] sm:$0xff]
        %s2548 = scalar_lea.vmem %s35, 1
        %v2549 = vld [vmem:[%s2548] sm:$0x1]
        %2551 = vset.pattern.permute.xlu0 0
        %2552 = vperm.xlu0 %2551, %v2530
        %v2553 = vpop.permute.xlu0 %2552
        %v2556 = vperm.slane %v2549, 0
        %v2558 = vmul.f32 %v2553, %v2556
        %2559 = vmatpush.msra.mxu0 %v2547
        %2560 = vmatpush.msra.mxu0 %v2546
        %2561 = vmatpush.msra.mxu0 %v2545
        %2562 = vmatpush.msra.mxu0 %v2544
        %2563 = vmatpush.msra.mxu0 %v2543
        %2564 = vmatpush.msra.mxu0 %v2542
        %2565 = vmatpush.msra.mxu0 %v2541
        %2566 = vmatpush.msra.mxu0 %v2540
        %2567 = vmatpush.msra.mxu0 %v2539
        %2568 = vmatpush.msra.mxu0 %v2538
        %2569 = vmatpush.msra.mxu0 %v2537
        %2570 = vmatpush.msra.mxu0 %v2536
        %2571 = vmatpush.msra.mxu0 %v2535
        %2572 = vmatpush.msra.mxu0 %v2534
        %2573 = vmatpush.msra.mxu0 %v2533
        %2574 = vmatpush.msra.mxu0 %v2532
        %2575 = vmatmul.f32.gmra.mxu0 %v2529
        %v2576 = vpop.f32.mrf.mxu0
        %v2577 = vadd.f32 %v2558, %v2576
        %2578 = vdwg.mxu0
        %vm2579 = vcmp.gt.f32.partialorder %v2577, 0.0
        %v2580 = vmul.f32 %v2577, 1.442695
        %v2581 = vpow.pop %v2580
        %v2582 = vsub.f32 %v2581, 1.0
        %v2583 = vsel %vm2579, %v2577, %v2582
        %s2584 = scalar_lea.vmem [#allocation6], 384
        %v2585 = vld [vmem:[%s2584] sm:$0xff]
        %v2586 = vld [vmem:[%s2584 + $0x8] sm:$0xff]
        %v2587 = vld [vmem:[%s2584 + $0x10] sm:$0xff]
        %v2588 = vld [vmem:[%s2584 + $0x18] sm:$0xff]
        %v2589 = vld [vmem:[%s2584 + $0x20] sm:$0xff]
        %v2590 = vld [vmem:[%s2584 + $0x28] sm:$0xff]
        %v2591 = vld [vmem:[%s2584 + $0x30] sm:$0xff]
        %v2592 = vld [vmem:[%s2584 + $0x38] sm:$0xff]
        %v2593 = vld [vmem:[%s2584 + $0x40] sm:$0xff]
        %v2594 = vld [vmem:[%s2584 + $0x48] sm:$0xff]
        %v2595 = vld [vmem:[%s2584 + $0x50] sm:$0xff]
        %v2596 = vld [vmem:[%s2584 + $0x58] sm:$0xff]
        %v2597 = vld [vmem:[%s2584 + $0x60] sm:$0xff]
        %v2598 = vld [vmem:[%s2584 + $0x68] sm:$0xff]
        %v2599 = vld [vmem:[%s2584 + $0x70] sm:$0xff]
        %v2600 = vld [vmem:[%s2584 + $0x78] sm:$0xff]
        %v2601 = vld [vmem:[%s2584 + $0x80] sm:$0xff]
        %v2602 = vld [vmem:[%s2584 + $0x88] sm:$0xff]
        %v2603 = vld [vmem:[%s2584 + $0x90] sm:$0xff]
        %v2604 = vld [vmem:[%s2584 + $0x98] sm:$0xff]
        %v2605 = vld [vmem:[%s2584 + $0xa0] sm:$0xff]
        %v2606 = vld [vmem:[%s2584 + $0xa8] sm:$0xff]
        %v2607 = vld [vmem:[%s2584 + $0xb0] sm:$0xff]
        %v2608 = vld [vmem:[%s2584 + $0xb8] sm:$0xff]
        %v2609 = vld [vmem:[%s2584 + $0xc0] sm:$0xff]
        %v2610 = vld [vmem:[%s2584 + $0xc8] sm:$0xff]
        %v2611 = vld [vmem:[%s2584 + $0xd0] sm:$0xff]
        %v2612 = vld [vmem:[%s2584 + $0xd8] sm:$0xff]
        %v2613 = vld [vmem:[%s2584 + $0xe0] sm:$0xff]
        %v2614 = vld [vmem:[%s2584 + $0xe8] sm:$0xff]
        %v2615 = vld [vmem:[%s2584 + $0xf0] sm:$0xff]
        %v2616 = vld [vmem:[%s2584 + $0xf8] sm:$0xff]
        %v2617 = vld [vmem:[%s2584 + $0x100] sm:$0xff]
        %v2618 = vld [vmem:[%s2584 + $0x108] sm:$0xff]
        %v2619 = vld [vmem:[%s2584 + $0x110] sm:$0xff]
        %v2620 = vld [vmem:[%s2584 + $0x118] sm:$0xff]
        %v2621 = vld [vmem:[%s2584 + $0x120] sm:$0xff]
        %v2622 = vld [vmem:[%s2584 + $0x128] sm:$0xff]
        %v2623 = vld [vmem:[%s2584 + $0x130] sm:$0xff]
        %v2624 = vld [vmem:[%s2584 + $0x138] sm:$0xff]
        %v2625 = vld [vmem:[%s2584 + $0x140] sm:$0xff]
        %v2626 = vld [vmem:[%s2584 + $0x148] sm:$0xff]
        %v2627 = vld [vmem:[%s2584 + $0x150] sm:$0xff]
        %v2628 = vld [vmem:[%s2584 + $0x158] sm:$0xff]
        %v2629 = vld [vmem:[%s2584 + $0x160] sm:$0xff]
        %v2630 = vld [vmem:[%s2584 + $0x168] sm:$0xff]
        %v2631 = vld [vmem:[%s2584 + $0x170] sm:$0xff]
        %v2632 = vld [vmem:[%s2584 + $0x178] sm:$0xff]
        %s2633 = scalar_lea.vmem [#allocation8], 384
        %v2634 = vld [vmem:[%s2633] sm:$0xff]
        %v2635 = vld [vmem:[%s2633 + $0x8] sm:$0xff]
        %v2636 = vld [vmem:[%s2633 + $0x10] sm:$0xff]
        %v2637 = vld [vmem:[%s2633 + $0x18] sm:$0xff]
        %v2638 = vld [vmem:[%s2633 + $0x20] sm:$0xff]
        %v2639 = vld [vmem:[%s2633 + $0x28] sm:$0xff]
        %v2640 = vld [vmem:[%s2633 + $0x30] sm:$0xff]
        %v2641 = vld [vmem:[%s2633 + $0x38] sm:$0xff]
        %v2642 = vld [vmem:[%s2633 + $0x40] sm:$0xff]
        %v2643 = vld [vmem:[%s2633 + $0x48] sm:$0xff]
        %v2644 = vld [vmem:[%s2633 + $0x50] sm:$0xff]
        %v2645 = vld [vmem:[%s2633 + $0x58] sm:$0xff]
        %v2646 = vld [vmem:[%s2633 + $0x60] sm:$0xff]
        %v2647 = vld [vmem:[%s2633 + $0x68] sm:$0xff]
        %v2648 = vld [vmem:[%s2633 + $0x70] sm:$0xff]
        %v2649 = vld [vmem:[%s2633 + $0x78] sm:$0xff]
        %v2650 = vld [vmem:[%s2633 + $0x80] sm:$0xff]
        %v2651 = vld [vmem:[%s2633 + $0x88] sm:$0xff]
        %v2652 = vld [vmem:[%s2633 + $0x90] sm:$0xff]
        %v2653 = vld [vmem:[%s2633 + $0x98] sm:$0xff]
        %v2654 = vld [vmem:[%s2633 + $0xa0] sm:$0xff]
        %v2655 = vld [vmem:[%s2633 + $0xa8] sm:$0xff]
        %v2656 = vld [vmem:[%s2633 + $0xb0] sm:$0xff]
        %v2657 = vld [vmem:[%s2633 + $0xb8] sm:$0xff]
        %v2658 = vld [vmem:[%s2633 + $0xc0] sm:$0xff]
        %v2659 = vld [vmem:[%s2633 + $0xc8] sm:$0xff]
        %v2660 = vld [vmem:[%s2633 + $0xd0] sm:$0xff]
        %v2661 = vld [vmem:[%s2633 + $0xd8] sm:$0xff]
        %v2662 = vld [vmem:[%s2633 + $0xe0] sm:$0xff]
        %v2663 = vld [vmem:[%s2633 + $0xe8] sm:$0xff]
        %v2664 = vld [vmem:[%s2633 + $0xf0] sm:$0xff]
        %v2665 = vld [vmem:[%s2633 + $0xf8] sm:$0xff]
        %v2666 = vld [vmem:[%s2633 + $0x100] sm:$0xff]
        %v2667 = vld [vmem:[%s2633 + $0x108] sm:$0xff]
        %v2668 = vld [vmem:[%s2633 + $0x110] sm:$0xff]
        %v2669 = vld [vmem:[%s2633 + $0x118] sm:$0xff]
        %v2670 = vld [vmem:[%s2633 + $0x120] sm:$0xff]
        %v2671 = vld [vmem:[%s2633 + $0x128] sm:$0xff]
        %v2672 = vld [vmem:[%s2633 + $0x130] sm:$0xff]
        %v2673 = vld [vmem:[%s2633 + $0x138] sm:$0xff]
        %v2674 = vld [vmem:[%s2633 + $0x140] sm:$0xff]
        %v2675 = vld [vmem:[%s2633 + $0x148] sm:$0xff]
        %v2676 = vld [vmem:[%s2633 + $0x150] sm:$0xff]
        %v2677 = vld [vmem:[%s2633 + $0x158] sm:$0xff]
        %v2678 = vld [vmem:[%s2633 + $0x160] sm:$0xff]
        %v2679 = vld [vmem:[%s2633 + $0x168] sm:$0xff]
        %v2680 = vld [vmem:[%s2633 + $0x170] sm:$0xff]
        %v2681 = vld [vmem:[%s2633 + $0x178] sm:$0xff]
        %s2682 = scalar_lea.vmem %s41, 3
        %v2683 = vld [vmem:[%s2682] sm:$0x7]
        %s2684 = scalar_lea.vmem %s43, 3
        %v2685 = vld [vmem:[%s2684] sm:$0x7]
        %v2687 = vperm.slane %v2683, 0
        %v2688 = vperm.slane %v2683, 1
        %v2689 = vperm.slane %v2683, 2
        %2693 = vmatpush.msra.mxu0 %v2630
        %2694 = vmatpush.msra.mxu0 %v2627
        %2695 = vmatpush.msra.mxu0 %v2624
        %2696 = vmatpush.msra.mxu0 %v2621
        %2697 = vmatpush.msra.mxu0 %v2618
        %2698 = vmatpush.msra.mxu0 %v2615
        %2699 = vmatpush.msra.mxu0 %v2612
        %2700 = vmatpush.msra.mxu0 %v2609
        %2701 = vmatpush.msra.mxu0 %v2606
        %2702 = vmatpush.msra.mxu0 %v2603
        %2703 = vmatpush.msra.mxu0 %v2600
        %2704 = vmatpush.msra.mxu0 %v2597
        %2705 = vmatpush.msra.mxu0 %v2594
        %2706 = vmatpush.msra.mxu0 %v2591
        %2707 = vmatpush.msra.mxu0 %v2588
        %2708 = vmatpush.msra.mxu0 %v2585
        %2709 = vmatmul.f32.gmra.mxu0 %v2583
        %v2710 = vpop.f32.mrf.mxu0
        %v2711 = vadd.f32 %v2687, %v2710
        %2712 = vdwg.mxu0
        %2713 = vmatpush.msra.mxu0 %v2631
        %2714 = vmatpush.msra.mxu0 %v2628
        %2715 = vmatpush.msra.mxu0 %v2625
        %2716 = vmatpush.msra.mxu0 %v2622
        %2717 = vmatpush.msra.mxu0 %v2619
        %2718 = vmatpush.msra.mxu0 %v2616
        %2719 = vmatpush.msra.mxu0 %v2613
        %2720 = vmatpush.msra.mxu0 %v2610
        %2721 = vmatpush.msra.mxu0 %v2607
        %2722 = vmatpush.msra.mxu0 %v2604
        %2723 = vmatpush.msra.mxu0 %v2601
        %2724 = vmatpush.msra.mxu0 %v2598
        %2725 = vmatpush.msra.mxu0 %v2595
        %2726 = vmatpush.msra.mxu0 %v2592
        %2727 = vmatpush.msra.mxu0 %v2589
        %2728 = vmatpush.msra.mxu0 %v2586
        %2729 = vmatmul.f32.gmra.mxu0 %v2583
        %v2730 = vpop.f32.mrf.mxu0
        %v2731 = vadd.f32 %v2688, %v2730
        %2732 = vdwg.mxu0
        %2733 = vmatpush.msra.mxu0 %v2632
        %2734 = vmatpush.msra.mxu0 %v2629
        %2735 = vmatpush.msra.mxu0 %v2626
        %2736 = vmatpush.msra.mxu0 %v2623
        %2737 = vmatpush.msra.mxu0 %v2620
        %2738 = vmatpush.msra.mxu0 %v2617
        %2739 = vmatpush.msra.mxu0 %v2614
        %2740 = vmatpush.msra.mxu0 %v2611
        %2741 = vmatpush.msra.mxu0 %v2608
        %2742 = vmatpush.msra.mxu0 %v2605
        %2743 = vmatpush.msra.mxu0 %v2602
        %2744 = vmatpush.msra.mxu0 %v2599
        %2745 = vmatpush.msra.mxu0 %v2596
        %2746 = vmatpush.msra.mxu0 %v2593
        %2747 = vmatpush.msra.mxu0 %v2590
        %2748 = vmatpush.msra.mxu0 %v2587
        %2749 = vmatmul.f32.gmra.mxu0 %v2583
        %v2750 = vpop.f32.mrf.mxu0
        %v2751 = vadd.f32 %v2689, %v2750
        %2752 = vdwg.mxu0
        %v2754 = vperm.slane %v2685, 0
        %v2755 = vperm.slane %v2685, 1
        %v2756 = vperm.slane %v2685, 2
        %2760 = vmatpush.msra.mxu0 %v2679
        %2761 = vmatpush.msra.mxu0 %v2676
        %2762 = vmatpush.msra.mxu0 %v2673
        %2763 = vmatpush.msra.mxu0 %v2670
        %2764 = vmatpush.msra.mxu0 %v2667
        %2765 = vmatpush.msra.mxu0 %v2664
        %2766 = vmatpush.msra.mxu0 %v2661
        %2767 = vmatpush.msra.mxu0 %v2658
        %2768 = vmatpush.msra.mxu0 %v2655
        %2769 = vmatpush.msra.mxu0 %v2652
        %2770 = vmatpush.msra.mxu0 %v2649
        %2771 = vmatpush.msra.mxu0 %v2646
        %2772 = vmatpush.msra.mxu0 %v2643
        %2773 = vmatpush.msra.mxu0 %v2640
        %2774 = vmatpush.msra.mxu0 %v2637
        %2775 = vmatpush.msra.mxu0 %v2634
        %2776 = vmatmul.f32.gmra.mxu0 %v2304
        %v2777 = vpop.f32.mrf.mxu0
        %v2778 = vadd.f32 %v2754, %v2777
        %2779 = vdwg.mxu0
        %2780 = vmatpush.msra.mxu0 %v2680
        %2781 = vmatpush.msra.mxu0 %v2677
        %2782 = vmatpush.msra.mxu0 %v2674
        %2783 = vmatpush.msra.mxu0 %v2671
        %2784 = vmatpush.msra.mxu0 %v2668
        %2785 = vmatpush.msra.mxu0 %v2665
        %2786 = vmatpush.msra.mxu0 %v2662
        %2787 = vmatpush.msra.mxu0 %v2659
        %2788 = vmatpush.msra.mxu0 %v2656
        %2789 = vmatpush.msra.mxu0 %v2653
        %2790 = vmatpush.msra.mxu0 %v2650
        %2791 = vmatpush.msra.mxu0 %v2647
        %2792 = vmatpush.msra.mxu0 %v2644
        %2793 = vmatpush.msra.mxu0 %v2641
        %2794 = vmatpush.msra.mxu0 %v2638
        %2795 = vmatpush.msra.mxu0 %v2635
        %2796 = vmatmul.f32.gmra.mxu0 %v2304
        %v2797 = vpop.f32.mrf.mxu0
        %v2798 = vadd.f32 %v2755, %v2797
        %2799 = vdwg.mxu0
        %2800 = vmatpush.msra.mxu0 %v2681
        %2801 = vmatpush.msra.mxu0 %v2678
        %2802 = vmatpush.msra.mxu0 %v2675
        %2803 = vmatpush.msra.mxu0 %v2672
        %2804 = vmatpush.msra.mxu0 %v2669
        %2805 = vmatpush.msra.mxu0 %v2666
        %2806 = vmatpush.msra.mxu0 %v2663
        %2807 = vmatpush.msra.mxu0 %v2660
        %2808 = vmatpush.msra.mxu0 %v2657
        %2809 = vmatpush.msra.mxu0 %v2654
        %2810 = vmatpush.msra.mxu0 %v2651
        %2811 = vmatpush.msra.mxu0 %v2648
        %2812 = vmatpush.msra.mxu0 %v2645
        %2813 = vmatpush.msra.mxu0 %v2642
        %2814 = vmatpush.msra.mxu0 %v2639
        %2815 = vmatpush.msra.mxu0 %v2636
        %2816 = vmatmul.f32.gmra.mxu0 %v2304
        %v2817 = vpop.f32.mrf.mxu0
        %v2818 = vadd.f32 %v2756, %v2817
        %2819 = vdwg.mxu0
        %v2820 = vadd.f32 %v2711, %v2778
        %v2821 = vsub.f32 0.0, %v2820
        %v2822 = vmul.f32 %v2821, 1.442695
        %v2823 = vpow.pop %v2822
        %v2824 = vadd.f32 %v2823, 1.0
        %v2825 = vrcp.pop %v2824
        %v2826 = vadd.f32 %v2731, %v2798
        %v2827 = vsub.f32 0.0, %v2826
        %v2828 = vmul.f32 %v2827, 1.442695
        %v2829 = vpow.pop %v2828
        %v2830 = vadd.f32 %v2829, 1.0
        %v2831 = vrcp.pop %v2830
        %v2832 = vmul.f32 %v2825, %v2818
        %v2833 = vadd.f32 %v2751, %v2832
        %v2834 = vtanh.pop %v2833
        %v2835 = vsub.f32 1.0, %v2831
        %v2836 = vmul.f32 %v2835, %v2834
        %v2837 = vmul.f32 %v2831, %v2304
        %v2838 = vadd.f32 %v2836, %v2837
        %v2839 = vmax.f32 %v2838, 0.0
        %s2840 = scalar_lea.vmem %s1406, 16
        %2841 = vst [vmem:[%s2840] sm:$0xff] %v2839
        %v2842 = vld [vmem:[%s1397] sm:$0xff]
        %v2843 = vld [vmem:[%s1401] sm:$0xff]
        %2845 = vset.pattern.permute.xlu0 0
        %2846 = vperm.xlu0 %2845, %v2842
        %v2847 = vpop.permute.xlu0 %2846
        %v2849 = vmul.f32 %v2838, %v2847
        %v2850 = vrot.slane %v2849, 4
        %v2851 = vadd.f32 %v2849, %v2850
        %v2852 = vrot.slane %v2851, 2
        %v2853 = vadd.f32 %v2851, %v2852
        %v2854 = vrot.slane %v2853, 1
        %v2855 = vadd.f32 %v2853, %v2854
        %2856 = vst [vmem:[%s1419] sm:$0x1] %v2855
        %v2857 = vmul.f32 %v2839, %v2847
        %v2858 = vrot.slane %v2857, 4
        %v2859 = vadd.f32 %v2857, %v2858
        %v2860 = vrot.slane %v2859, 2
        %v2861 = vadd.f32 %v2859, %v2860
        %v2862 = vrot.slane %v2861, 1
        %v2863 = vadd.f32 %v2861, %v2862
        %2864 = vst [vmem:[%s1415] sm:$0x1] %v2863
        %v2865 = vmax.f32 %v2863, 0.0
        %v2866 = vld [vmem:[%s45] sm:$0x1]
        %v2867 = vld [vmem:[%s47] sm:$0x1]
        %v2868 = vld [vmem:[#allocation2] sm:$0x1]
        %v2869 = vmul.f32 %v2865, %v2866
        %vm2870 = vcmask 1040384
        %v2871 = vsel %vm2870, %v2869, 0.0
        %2872 = vadd.xlane.f32.xlu0 %v2871
        %v2873 = vpop.xlane.xlu0 %2872
        %v2875 = vperm.slane %v2867, 0
        %v2877 = vmul.f32 %v2839, %v2875
        %2878 = vadd.xlane.f32.xlu0 %v2877
        %v2879 = vpop.xlane.xlu0 %2878
        %v2880 = vperm.slane %v2873, 0
        %v2881 = vadd.f32 %v2880, %v2879
        %v2883 = vperm.slane %v2868, 0
        %v2885 = vadd.f32 %v2881, %v2883
        %vm2886 = vcmp.ge.f32.partialorder %v2885, 0.0
        %v2887 = vmul.f32 %v2885, 0.01
        %v2888 = vsel %vm2886, %v2885, %v2887
        %v2889 = vadd.f32 %v2888, %v2843
        %v2890 = vsel %vm1965, %v2889, -inf
        %v2891 = vrot.slane %v2890, 4
        %v2892 = vmax.f32 %v2890, %v2891
        %v2893 = vrot.slane %v2892, 2
        %v2894 = vmax.f32 %v2892, %v2893
        %v2895 = vrot.slane %v2894, 1
        %v2896 = vmax.f32 %v2894, %v2895
        %v2897 = vsub.f32 %v2889, %v2896
        %v2898 = vmul.f32 %v2897, 1.442695
        %v2899 = vpow.pop %v2898
        %v2900 = vsel %vm1965, %v2899, 0.0
        %v2901 = vrot.slane %v2900, 4
        %v2902 = vadd.f32 %v2900, %v2901
        %v2903 = vrot.slane %v2902, 2
        %v2904 = vadd.f32 %v2902, %v2903
        %v2905 = vrot.slane %v2904, 1
        %v2906 = vadd.f32 %v2904, %v2905
        %v2907 = vrcp.pop %v2906
        %v2908 = vmul.f32 %v2899, %v2907
        %v2909 = vmul.f32 %v2908, %v2842
        %2910 = vst.msk [vmem:[%s1424] sm:$0xff] %vm1965, %v2909
        %2912 = vset.pattern.permute.xlu0 0
        %2913 = vperm.xlu0 %2912, %v2909
        %v2914 = vpop.permute.xlu0 %2913
        %v2916 = vmul.f32 %v2914, %v2839
        %v2917 = vrot.slane %v2916, 4
        %v2918 = vadd.f32 %v2916, %v2917
        %v2919 = vrot.slane %v2918, 2
        %v2920 = vadd.f32 %v2918, %v2919
        %v2921 = vrot.slane %v2920, 1
        %v2922 = vadd.f32 %v2920, %v2921
        %v2923 = vsel %vm1965, %v2909, 0.0
        %v2924 = vrot.slane %v2923, 4
        %v2925 = vadd.f32 %v2923, %v2924
        %v2926 = vrot.slane %v2925, 2
        %v2927 = vadd.f32 %v2925, %v2926
        %v2928 = vrot.slane %v2927, 1
        %v2929 = vadd.f32 %v2927, %v2928
        %v2930 = vld [vmem:[%s51] sm:$0xff]
        %v2931 = vld [vmem:[%s51 + $0x8] sm:$0xff]
        %v2932 = vld [vmem:[%s51 + $0x10] sm:$0xff]
        %v2933 = vld [vmem:[%s51 + $0x18] sm:$0xff]
        %v2934 = vld [vmem:[%s51 + $0x20] sm:$0xff]
        %v2935 = vld [vmem:[%s51 + $0x28] sm:$0xff]
        %v2936 = vld [vmem:[%s51 + $0x30] sm:$0xff]
        %v2937 = vld [vmem:[%s51 + $0x38] sm:$0xff]
        %v2938 = vld [vmem:[%s51 + $0x40] sm:$0xff]
        %v2939 = vld [vmem:[%s51 + $0x48] sm:$0xff]
        %v2940 = vld [vmem:[%s51 + $0x50] sm:$0xff]
        %v2941 = vld [vmem:[%s51 + $0x58] sm:$0xff]
        %v2942 = vld [vmem:[%s51 + $0x60] sm:$0xff]
        %v2943 = vld [vmem:[%s51 + $0x68] sm:$0xff]
        %v2944 = vld [vmem:[%s51 + $0x70] sm:$0xff]
        %v2945 = vld [vmem:[%s51 + $0x78] sm:$0xff]
        %v2946 = vld [vmem:[%s53] sm:$0x1]
        %2948 = vset.pattern.permute.xlu0 0
        %2949 = vperm.xlu0 %2948, %v2929
        %v2950 = vpop.permute.xlu0 %2949
        %v2952 = vmul.f32 %v2950, %v2946
        %2953 = vmatpush.msra.mxu0 %v2945
        %2954 = vmatpush.msra.mxu0 %v2944
        %2955 = vmatpush.msra.mxu0 %v2943
        %2956 = vmatpush.msra.mxu0 %v2942
        %2957 = vmatpush.msra.mxu0 %v2941
        %2958 = vmatpush.msra.mxu0 %v2940
        %2959 = vmatpush.msra.mxu0 %v2939
        %2960 = vmatpush.msra.mxu0 %v2938
        %2961 = vmatpush.msra.mxu0 %v2937
        %2962 = vmatpush.msra.mxu0 %v2936
        %2963 = vmatpush.msra.mxu0 %v2935
        %2964 = vmatpush.msra.mxu0 %v2934
        %2965 = vmatpush.msra.mxu0 %v2933
        %2966 = vmatpush.msra.mxu0 %v2932
        %2967 = vmatpush.msra.mxu0 %v2931
        %2968 = vmatpush.msra.mxu0 %v2930
        %2969 = vmatmul.f32.gmra.mxu0 %v2922
        %v2970 = vpop.f32.mrf.mxu0
        %v2971 = vadd.f32 %v2952, %v2970
        %2972 = vdwg.mxu0
        %vm2973 = vcmp.gt.f32.partialorder %v2971, 0.0
        %v2974 = vmul.f32 %v2971, 1.442695
        %v2975 = vpow.pop %v2974
        %v2976 = vsub.f32 %v2975, 1.0
        %v2977 = vsel %vm2973, %v2971, %v2976
        %v2978 = vld [vmem:[#allocation9] sm:$0xff]
        %v2979 = vld [vmem:[#allocation9 + $0x8] sm:$0xff]
        %v2980 = vld [vmem:[#allocation9 + $0x10] sm:$0xff]
        %v2981 = vld [vmem:[#allocation9 + $0x18] sm:$0xff]
        %v2982 = vld [vmem:[#allocation9 + $0x20] sm:$0xff]
        %v2983 = vld [vmem:[#allocation9 + $0x28] sm:$0xff]
        %v2984 = vld [vmem:[#allocation9 + $0x30] sm:$0xff]
        %v2985 = vld [vmem:[#allocation9 + $0x38] sm:$0xff]
        %v2986 = vld [vmem:[#allocation9 + $0x40] sm:$0xff]
        %v2987 = vld [vmem:[#allocation9 + $0x48] sm:$0xff]
        %v2988 = vld [vmem:[#allocation9 + $0x50] sm:$0xff]
        %v2989 = vld [vmem:[#allocation9 + $0x58] sm:$0xff]
        %v2990 = vld [vmem:[#allocation9 + $0x60] sm:$0xff]
        %v2991 = vld [vmem:[#allocation9 + $0x68] sm:$0xff]
        %v2992 = vld [vmem:[#allocation9 + $0x70] sm:$0xff]
        %v2993 = vld [vmem:[#allocation9 + $0x78] sm:$0xff]
        %v2994 = vld [vmem:[#allocation9 + $0x80] sm:$0xff]
        %v2995 = vld [vmem:[#allocation9 + $0x88] sm:$0xff]
        %v2996 = vld [vmem:[#allocation9 + $0x90] sm:$0xff]
        %v2997 = vld [vmem:[#allocation9 + $0x98] sm:$0xff]
        %v2998 = vld [vmem:[#allocation9 + $0xa0] sm:$0xff]
        %v2999 = vld [vmem:[#allocation9 + $0xa8] sm:$0xff]
        %v3000 = vld [vmem:[#allocation9 + $0xb0] sm:$0xff]
        %v3001 = vld [vmem:[#allocation9 + $0xb8] sm:$0xff]
        %v3002 = vld [vmem:[#allocation9 + $0xc0] sm:$0xff]
        %v3003 = vld [vmem:[#allocation9 + $0xc8] sm:$0xff]
        %v3004 = vld [vmem:[#allocation9 + $0xd0] sm:$0xff]
        %v3005 = vld [vmem:[#allocation9 + $0xd8] sm:$0xff]
        %v3006 = vld [vmem:[#allocation9 + $0xe0] sm:$0xff]
        %v3007 = vld [vmem:[#allocation9 + $0xe8] sm:$0xff]
        %v3008 = vld [vmem:[#allocation9 + $0xf0] sm:$0xff]
        %v3009 = vld [vmem:[#allocation9 + $0xf8] sm:$0xff]
        %v3010 = vld [vmem:[#allocation9 + $0x100] sm:$0xff]
        %v3011 = vld [vmem:[#allocation9 + $0x108] sm:$0xff]
        %v3012 = vld [vmem:[#allocation9 + $0x110] sm:$0xff]
        %v3013 = vld [vmem:[#allocation9 + $0x118] sm:$0xff]
        %v3014 = vld [vmem:[#allocation9 + $0x120] sm:$0xff]
        %v3015 = vld [vmem:[#allocation9 + $0x128] sm:$0xff]
        %v3016 = vld [vmem:[#allocation9 + $0x130] sm:$0xff]
        %v3017 = vld [vmem:[#allocation9 + $0x138] sm:$0xff]
        %v3018 = vld [vmem:[#allocation9 + $0x140] sm:$0xff]
        %v3019 = vld [vmem:[#allocation9 + $0x148] sm:$0xff]
        %v3020 = vld [vmem:[#allocation9 + $0x150] sm:$0xff]
        %v3021 = vld [vmem:[#allocation9 + $0x158] sm:$0xff]
        %v3022 = vld [vmem:[#allocation9 + $0x160] sm:$0xff]
        %v3023 = vld [vmem:[#allocation9 + $0x168] sm:$0xff]
        %v3024 = vld [vmem:[#allocation9 + $0x170] sm:$0xff]
        %v3025 = vld [vmem:[#allocation9 + $0x178] sm:$0xff]
        %v3026 = vld [vmem:[#allocation11] sm:$0xff]
        %v3027 = vld [vmem:[#allocation11 + $0x8] sm:$0xff]
        %v3028 = vld [vmem:[#allocation11 + $0x10] sm:$0xff]
        %v3029 = vld [vmem:[#allocation11 + $0x18] sm:$0xff]
        %v3030 = vld [vmem:[#allocation11 + $0x20] sm:$0xff]
        %v3031 = vld [vmem:[#allocation11 + $0x28] sm:$0xff]
        %v3032 = vld [vmem:[#allocation11 + $0x30] sm:$0xff]
        %v3033 = vld [vmem:[#allocation11 + $0x38] sm:$0xff]
        %v3034 = vld [vmem:[#allocation11 + $0x40] sm:$0xff]
        %v3035 = vld [vmem:[#allocation11 + $0x48] sm:$0xff]
        %v3036 = vld [vmem:[#allocation11 + $0x50] sm:$0xff]
        %v3037 = vld [vmem:[#allocation11 + $0x58] sm:$0xff]
        %v3038 = vld [vmem:[#allocation11 + $0x60] sm:$0xff]
        %v3039 = vld [vmem:[#allocation11 + $0x68] sm:$0xff]
        %v3040 = vld [vmem:[#allocation11 + $0x70] sm:$0xff]
        %v3041 = vld [vmem:[#allocation11 + $0x78] sm:$0xff]
        %v3042 = vld [vmem:[#allocation11 + $0x80] sm:$0xff]
        %v3043 = vld [vmem:[#allocation11 + $0x88] sm:$0xff]
        %v3044 = vld [vmem:[#allocation11 + $0x90] sm:$0xff]
        %v3045 = vld [vmem:[#allocation11 + $0x98] sm:$0xff]
        %v3046 = vld [vmem:[#allocation11 + $0xa0] sm:$0xff]
        %v3047 = vld [vmem:[#allocation11 + $0xa8] sm:$0xff]
        %v3048 = vld [vmem:[#allocation11 + $0xb0] sm:$0xff]
        %v3049 = vld [vmem:[#allocation11 + $0xb8] sm:$0xff]
        %v3050 = vld [vmem:[#allocation11 + $0xc0] sm:$0xff]
        %v3051 = vld [vmem:[#allocation11 + $0xc8] sm:$0xff]
        %v3052 = vld [vmem:[#allocation11 + $0xd0] sm:$0xff]
        %v3053 = vld [vmem:[#allocation11 + $0xd8] sm:$0xff]
        %v3054 = vld [vmem:[#allocation11 + $0xe0] sm:$0xff]
        %v3055 = vld [vmem:[#allocation11 + $0xe8] sm:$0xff]
        %v3056 = vld [vmem:[#allocation11 + $0xf0] sm:$0xff]
        %v3057 = vld [vmem:[#allocation11 + $0xf8] sm:$0xff]
        %v3058 = vld [vmem:[#allocation11 + $0x100] sm:$0xff]
        %v3059 = vld [vmem:[#allocation11 + $0x108] sm:$0xff]
        %v3060 = vld [vmem:[#allocation11 + $0x110] sm:$0xff]
        %v3061 = vld [vmem:[#allocation11 + $0x118] sm:$0xff]
        %v3062 = vld [vmem:[#allocation11 + $0x120] sm:$0xff]
        %v3063 = vld [vmem:[#allocation11 + $0x128] sm:$0xff]
        %v3064 = vld [vmem:[#allocation11 + $0x130] sm:$0xff]
        %v3065 = vld [vmem:[#allocation11 + $0x138] sm:$0xff]
        %v3066 = vld [vmem:[#allocation11 + $0x140] sm:$0xff]
        %v3067 = vld [vmem:[#allocation11 + $0x148] sm:$0xff]
        %v3068 = vld [vmem:[#allocation11 + $0x150] sm:$0xff]
        %v3069 = vld [vmem:[#allocation11 + $0x158] sm:$0xff]
        %v3070 = vld [vmem:[#allocation11 + $0x160] sm:$0xff]
        %v3071 = vld [vmem:[#allocation11 + $0x168] sm:$0xff]
        %v3072 = vld [vmem:[#allocation11 + $0x170] sm:$0xff]
        %v3073 = vld [vmem:[#allocation11 + $0x178] sm:$0xff]
        %v3074 = vld [vmem:[%s59] sm:$0x7]
        %v3075 = vld [vmem:[%s61] sm:$0x7]
        %v3077 = vperm.slane %v3074, 0
        %v3078 = vperm.slane %v3074, 1
        %v3079 = vperm.slane %v3074, 2
        %3083 = vmatpush.msra.mxu0 %v3023
        %3084 = vmatpush.msra.mxu0 %v3020
        %3085 = vmatpush.msra.mxu0 %v3017
        %3086 = vmatpush.msra.mxu0 %v3014
        %3087 = vmatpush.msra.mxu0 %v3011
        %3088 = vmatpush.msra.mxu0 %v3008
        %3089 = vmatpush.msra.mxu0 %v3005
        %3090 = vmatpush.msra.mxu0 %v3002
        %3091 = vmatpush.msra.mxu0 %v2999
        %3092 = vmatpush.msra.mxu0 %v2996
        %3093 = vmatpush.msra.mxu0 %v2993
        %3094 = vmatpush.msra.mxu0 %v2990
        %3095 = vmatpush.msra.mxu0 %v2987
        %3096 = vmatpush.msra.mxu0 %v2984
        %3097 = vmatpush.msra.mxu0 %v2981
        %3098 = vmatpush.msra.mxu0 %v2978
        %3099 = vmatmul.f32.gmra.mxu0 %v2977
        %v3100 = vpop.f32.mrf.mxu0
        %v3101 = vadd.f32 %v3077, %v3100
        %3102 = vdwg.mxu0
        %3103 = vmatpush.msra.mxu0 %v3024
        %3104 = vmatpush.msra.mxu0 %v3021
        %3105 = vmatpush.msra.mxu0 %v3018
        %3106 = vmatpush.msra.mxu0 %v3015
        %3107 = vmatpush.msra.mxu0 %v3012
        %3108 = vmatpush.msra.mxu0 %v3009
        %3109 = vmatpush.msra.mxu0 %v3006
        %3110 = vmatpush.msra.mxu0 %v3003
        %3111 = vmatpush.msra.mxu0 %v3000
        %3112 = vmatpush.msra.mxu0 %v2997
        %3113 = vmatpush.msra.mxu0 %v2994
        %3114 = vmatpush.msra.mxu0 %v2991
        %3115 = vmatpush.msra.mxu0 %v2988
        %3116 = vmatpush.msra.mxu0 %v2985
        %3117 = vmatpush.msra.mxu0 %v2982
        %3118 = vmatpush.msra.mxu0 %v2979
        %3119 = vmatmul.f32.gmra.mxu0 %v2977
        %v3120 = vpop.f32.mrf.mxu0
        %v3121 = vadd.f32 %v3078, %v3120
        %3122 = vdwg.mxu0
        %3123 = vmatpush.msra.mxu0 %v3025
        %3124 = vmatpush.msra.mxu0 %v3022
        %3125 = vmatpush.msra.mxu0 %v3019
        %3126 = vmatpush.msra.mxu0 %v3016
        %3127 = vmatpush.msra.mxu0 %v3013
        %3128 = vmatpush.msra.mxu0 %v3010
        %3129 = vmatpush.msra.mxu0 %v3007
        %3130 = vmatpush.msra.mxu0 %v3004
        %3131 = vmatpush.msra.mxu0 %v3001
        %3132 = vmatpush.msra.mxu0 %v2998
        %3133 = vmatpush.msra.mxu0 %v2995
        %3134 = vmatpush.msra.mxu0 %v2992
        %3135 = vmatpush.msra.mxu0 %v2989
        %3136 = vmatpush.msra.mxu0 %v2986
        %3137 = vmatpush.msra.mxu0 %v2983
        %3138 = vmatpush.msra.mxu0 %v2980
        %3139 = vmatmul.f32.gmra.mxu0 %v2977
        %v3140 = vpop.f32.mrf.mxu0
        %v3141 = vadd.f32 %v3079, %v3140
        %3142 = vdwg.mxu0
        %v3144 = vperm.slane %v3075, 0
        %v3145 = vperm.slane %v3075, 1
        %v3146 = vperm.slane %v3075, 2
        %3150 = vmatpush.msra.mxu0 %v3071
        %3151 = vmatpush.msra.mxu0 %v3068
        %3152 = vmatpush.msra.mxu0 %v3065
        %3153 = vmatpush.msra.mxu0 %v3062
        %3154 = vmatpush.msra.mxu0 %v3059
        %3155 = vmatpush.msra.mxu0 %v3056
        %3156 = vmatpush.msra.mxu0 %v3053
        %3157 = vmatpush.msra.mxu0 %v3050
        %3158 = vmatpush.msra.mxu0 %v3047
        %3159 = vmatpush.msra.mxu0 %v3044
        %3160 = vmatpush.msra.mxu0 %v3041
        %3161 = vmatpush.msra.mxu0 %v3038
        %3162 = vmatpush.msra.mxu0 %v3035
        %3163 = vmatpush.msra.mxu0 %v3032
        %3164 = vmatpush.msra.mxu0 %v3029
        %3165 = vmatpush.msra.mxu0 %v3026
        %3166 = vmatmul.f32.gmra.mxu0 %v2863
        %v3167 = vpop.f32.mrf.mxu0
        %v3168 = vadd.f32 %v3144, %v3167
        %3169 = vdwg.mxu0
        %3170 = vmatpush.msra.mxu0 %v3072
        %3171 = vmatpush.msra.mxu0 %v3069
        %3172 = vmatpush.msra.mxu0 %v3066
        %3173 = vmatpush.msra.mxu0 %v3063
        %3174 = vmatpush.msra.mxu0 %v3060
        %3175 = vmatpush.msra.mxu0 %v3057
        %3176 = vmatpush.msra.mxu0 %v3054
        %3177 = vmatpush.msra.mxu0 %v3051
        %3178 = vmatpush.msra.mxu0 %v3048
        %3179 = vmatpush.msra.mxu0 %v3045
        %3180 = vmatpush.msra.mxu0 %v3042
        %3181 = vmatpush.msra.mxu0 %v3039
        %3182 = vmatpush.msra.mxu0 %v3036
        %3183 = vmatpush.msra.mxu0 %v3033
        %3184 = vmatpush.msra.mxu0 %v3030
        %3185 = vmatpush.msra.mxu0 %v3027
        %3186 = vmatmul.f32.gmra.mxu0 %v2863
        %v3187 = vpop.f32.mrf.mxu0
        %v3188 = vadd.f32 %v3145, %v3187
        %3189 = vdwg.mxu0
        %3190 = vmatpush.msra.mxu0 %v3073
        %3191 = vmatpush.msra.mxu0 %v3070
        %3192 = vmatpush.msra.mxu0 %v3067
        %3193 = vmatpush.msra.mxu0 %v3064
        %3194 = vmatpush.msra.mxu0 %v3061
        %3195 = vmatpush.msra.mxu0 %v3058
        %3196 = vmatpush.msra.mxu0 %v3055
        %3197 = vmatpush.msra.mxu0 %v3052
        %3198 = vmatpush.msra.mxu0 %v3049
        %3199 = vmatpush.msra.mxu0 %v3046
        %3200 = vmatpush.msra.mxu0 %v3043
        %3201 = vmatpush.msra.mxu0 %v3040
        %3202 = vmatpush.msra.mxu0 %v3037
        %3203 = vmatpush.msra.mxu0 %v3034
        %3204 = vmatpush.msra.mxu0 %v3031
        %3205 = vmatpush.msra.mxu0 %v3028
        %3206 = vmatmul.f32.gmra.mxu0 %v2863
        %v3207 = vpop.f32.mrf.mxu0
        %v3208 = vadd.f32 %v3146, %v3207
        %3209 = vdwg.mxu0
        %v3210 = vadd.f32 %v3101, %v3168
        %v3211 = vsub.f32 0.0, %v3210
        %v3212 = vmul.f32 %v3211, 1.442695
        %v3213 = vpow.pop %v3212
        %v3214 = vadd.f32 %v3213, 1.0
        %v3215 = vrcp.pop %v3214
        %v3216 = vadd.f32 %v3121, %v3188
        %v3217 = vsub.f32 0.0, %v3216
        %v3218 = vmul.f32 %v3217, 1.442695
        %v3219 = vpow.pop %v3218
        %v3220 = vadd.f32 %v3219, 1.0
        %v3221 = vrcp.pop %v3220
        %v3222 = vmul.f32 %v3215, %v3208
        %v3223 = vadd.f32 %v3141, %v3222
        %v3224 = vtanh.pop %v3223
        %v3225 = vsub.f32 1.0, %v3221
        %v3226 = vmul.f32 %v3225, %v3224
        %v3227 = vmul.f32 %v3221, %v2863
        %v3228 = vadd.f32 %v3226, %v3227
        %s3229 = scalar_lea.vmem %s1419, 1
        %3230 = vst [vmem:[%s3229] sm:$0x1] %v3228
        %v3231 = vmax.f32 %v3228, 0.0
        %s3232 = scalar_lea.vmem %s1415, 1
        %3233 = vst [vmem:[%s3232] sm:$0x1] %v3231
        %v3234 = vmul.f32 %v3231, %v2866
        %v3235 = vsel %vm2870, %v3234, 0.0
        %3236 = vadd.xlane.f32.xlu0 %v3235
        %v3237 = vpop.xlane.xlu0 %3236
        %v3238 = vperm.slane %v3237, 0
        %v3239 = vadd.f32 %v3238, %v2879
        %v3240 = vadd.f32 %v3239, %v2883
        %vm3241 = vcmp.ge.f32.partialorder %v3240, 0.0
        %v3242 = vmul.f32 %v3240, 0.01
        %v3243 = vsel %vm3241, %v3240, %v3242
        %v3244 = vadd.f32 %v3243, %v2843
        %v3245 = vsel %vm1965, %v3244, -inf
        %v3246 = vrot.slane %v3245, 4
        %v3247 = vmax.f32 %v3245, %v3246
        %v3248 = vrot.slane %v3247, 2
        %v3249 = vmax.f32 %v3247, %v3248
        %v3250 = vrot.slane %v3249, 1
        %v3251 = vmax.f32 %v3249, %v3250
        %v3252 = vsub.f32 %v3244, %v3251
        %v3253 = vmul.f32 %v3252, 1.442695
        %v3254 = vpow.pop %v3253
        %v3255 = vsel %vm1965, %v3254, 0.0
        %v3256 = vrot.slane %v3255, 4
        %v3257 = vadd.f32 %v3255, %v3256
        %v3258 = vrot.slane %v3257, 2
        %v3259 = vadd.f32 %v3257, %v3258
        %v3260 = vrot.slane %v3259, 1
        %v3261 = vadd.f32 %v3259, %v3260
        %v3262 = vrcp.pop %v3261
        %v3263 = vmul.f32 %v3254, %v3262
        %v3264 = vmul.f32 %v3263, %v2842
        %s3265 = scalar_lea.vmem %s1424, 8
        %3266 = vst.msk [vmem:[%s3265] sm:$0xff] %vm1965, %v3264
        %3268 = vset.pattern.permute.xlu0 0
        %3269 = vperm.xlu0 %3268, %v3264
        %v3270 = vpop.permute.xlu0 %3269
        %v3272 = vmul.f32 %v3270, %v2839
        %v3273 = vrot.slane %v3272, 4
        %v3274 = vadd.f32 %v3272, %v3273
        %v3275 = vrot.slane %v3274, 2
        %v3276 = vadd.f32 %v3274, %v3275
        %v3277 = vrot.slane %v3276, 1
        %v3278 = vadd.f32 %v3276, %v3277
        %v3279 = vsel %vm1965, %v3264, 0.0
        %v3280 = vrot.slane %v3279, 4
        %v3281 = vadd.f32 %v3279, %v3280
        %v3282 = vrot.slane %v3281, 2
        %v3283 = vadd.f32 %v3281, %v3282
        %v3284 = vrot.slane %v3283, 1
        %v3285 = vadd.f32 %v3283, %v3284
        %v3286 = vld [vmem:[%s51] sm:$0xff]
        %v3287 = vld [vmem:[%s51 + $0x8] sm:$0xff]
        %v3288 = vld [vmem:[%s51 + $0x10] sm:$0xff]
        %v3289 = vld [vmem:[%s51 + $0x18] sm:$0xff]
        %v3290 = vld [vmem:[%s51 + $0x20] sm:$0xff]
        %v3291 = vld [vmem:[%s51 + $0x28] sm:$0xff]
        %v3292 = vld [vmem:[%s51 + $0x30] sm:$0xff]
        %v3293 = vld [vmem:[%s51 + $0x38] sm:$0xff]
        %v3294 = vld [vmem:[%s51 + $0x40] sm:$0xff]
        %v3295 = vld [vmem:[%s51 + $0x48] sm:$0xff]
        %v3296 = vld [vmem:[%s51 + $0x50] sm:$0xff]
        %v3297 = vld [vmem:[%s51 + $0x58] sm:$0xff]
        %v3298 = vld [vmem:[%s51 + $0x60] sm:$0xff]
        %v3299 = vld [vmem:[%s51 + $0x68] sm:$0xff]
        %v3300 = vld [vmem:[%s51 + $0x70] sm:$0xff]
        %v3301 = vld [vmem:[%s51 + $0x78] sm:$0xff]
        %v3302 = vld [vmem:[%s53] sm:$0x1]
        %3304 = vset.pattern.permute.xlu0 0
        %3305 = vperm.xlu0 %3304, %v3285
        %v3306 = vpop.permute.xlu0 %3305
        %v3308 = vmul.f32 %v3306, %v3302
        %3309 = vmatpush.msra.mxu0 %v3301
        %3310 = vmatpush.msra.mxu0 %v3300
        %3311 = vmatpush.msra.mxu0 %v3299
        %3312 = vmatpush.msra.mxu0 %v3298
        %3313 = vmatpush.msra.mxu0 %v3297
        %3314 = vmatpush.msra.mxu0 %v3296
        %3315 = vmatpush.msra.mxu0 %v3295
        %3316 = vmatpush.msra.mxu0 %v3294
        %3317 = vmatpush.msra.mxu0 %v3293
        %3318 = vmatpush.msra.mxu0 %v3292
        %3319 = vmatpush.msra.mxu0 %v3291
        %3320 = vmatpush.msra.mxu0 %v3290
        %3321 = vmatpush.msra.mxu0 %v3289
        %3322 = vmatpush.msra.mxu0 %v3288
        %3323 = vmatpush.msra.mxu0 %v3287
        %3324 = vmatpush.msra.mxu0 %v3286
        %3325 = vmatmul.f32.gmra.mxu0 %v3278
        %v3326 = vpop.f32.mrf.mxu0
        %v3327 = vadd.f32 %v3308, %v3326
        %3328 = vdwg.mxu0
        %vm3329 = vcmp.gt.f32.partialorder %v3327, 0.0
        %v3330 = vmul.f32 %v3327, 1.442695
        %v3331 = vpow.pop %v3330
        %v3332 = vsub.f32 %v3331, 1.0
        %v3333 = vsel %vm3329, %v3327, %v3332
        %v3334 = vld [vmem:[#allocation9] sm:$0xff]
        %v3335 = vld [vmem:[#allocation9 + $0x8] sm:$0xff]
        %v3336 = vld [vmem:[#allocation9 + $0x10] sm:$0xff]
        %v3337 = vld [vmem:[#allocation9 + $0x18] sm:$0xff]
        %v3338 = vld [vmem:[#allocation9 + $0x20] sm:$0xff]
        %v3339 = vld [vmem:[#allocation9 + $0x28] sm:$0xff]
        %v3340 = vld [vmem:[#allocation9 + $0x30] sm:$0xff]
        %v3341 = vld [vmem:[#allocation9 + $0x38] sm:$0xff]
        %v3342 = vld [vmem:[#allocation9 + $0x40] sm:$0xff]
        %v3343 = vld [vmem:[#allocation9 + $0x48] sm:$0xff]
        %v3344 = vld [vmem:[#allocation9 + $0x50] sm:$0xff]
        %v3345 = vld [vmem:[#allocation9 + $0x58] sm:$0xff]
        %v3346 = vld [vmem:[#allocation9 + $0x60] sm:$0xff]
        %v3347 = vld [vmem:[#allocation9 + $0x68] sm:$0xff]
        %v3348 = vld [vmem:[#allocation9 + $0x70] sm:$0xff]
        %v3349 = vld [vmem:[#allocation9 + $0x78] sm:$0xff]
        %v3350 = vld [vmem:[#allocation9 + $0x80] sm:$0xff]
        %v3351 = vld [vmem:[#allocation9 + $0x88] sm:$0xff]
        %v3352 = vld [vmem:[#allocation9 + $0x90] sm:$0xff]
        %v3353 = vld [vmem:[#allocation9 + $0x98] sm:$0xff]
        %v3354 = vld [vmem:[#allocation9 + $0xa0] sm:$0xff]
        %v3355 = vld [vmem:[#allocation9 + $0xa8] sm:$0xff]
        %v3356 = vld [vmem:[#allocation9 + $0xb0] sm:$0xff]
        %v3357 = vld [vmem:[#allocation9 + $0xb8] sm:$0xff]
        %v3358 = vld [vmem:[#allocation9 + $0xc0] sm:$0xff]
        %v3359 = vld [vmem:[#allocation9 + $0xc8] sm:$0xff]
        %v3360 = vld [vmem:[#allocation9 + $0xd0] sm:$0xff]
        %v3361 = vld [vmem:[#allocation9 + $0xd8] sm:$0xff]
        %v3362 = vld [vmem:[#allocation9 + $0xe0] sm:$0xff]
        %v3363 = vld [vmem:[#allocation9 + $0xe8] sm:$0xff]
        %v3364 = vld [vmem:[#allocation9 + $0xf0] sm:$0xff]
        %v3365 = vld [vmem:[#allocation9 + $0xf8] sm:$0xff]
        %v3366 = vld [vmem:[#allocation9 + $0x100] sm:$0xff]
        %v3367 = vld [vmem:[#allocation9 + $0x108] sm:$0xff]
        %v3368 = vld [vmem:[#allocation9 + $0x110] sm:$0xff]
        %v3369 = vld [vmem:[#allocation9 + $0x118] sm:$0xff]
        %v3370 = vld [vmem:[#allocation9 + $0x120] sm:$0xff]
        %v3371 = vld [vmem:[#allocation9 + $0x128] sm:$0xff]
        %v3372 = vld [vmem:[#allocation9 + $0x130] sm:$0xff]
        %v3373 = vld [vmem:[#allocation9 + $0x138] sm:$0xff]
        %v3374 = vld [vmem:[#allocation9 + $0x140] sm:$0xff]
        %v3375 = vld [vmem:[#allocation9 + $0x148] sm:$0xff]
        %v3376 = vld [vmem:[#allocation9 + $0x150] sm:$0xff]
        %v3377 = vld [vmem:[#allocation9 + $0x158] sm:$0xff]
        %v3378 = vld [vmem:[#allocation9 + $0x160] sm:$0xff]
        %v3379 = vld [vmem:[#allocation9 + $0x168] sm:$0xff]
        %v3380 = vld [vmem:[#allocation9 + $0x170] sm:$0xff]
        %v3381 = vld [vmem:[#allocation9 + $0x178] sm:$0xff]
        %v3382 = vld [vmem:[#allocation11] sm:$0xff]
        %v3383 = vld [vmem:[#allocation11 + $0x8] sm:$0xff]
        %v3384 = vld [vmem:[#allocation11 + $0x10] sm:$0xff]
        %v3385 = vld [vmem:[#allocation11 + $0x18] sm:$0xff]
        %v3386 = vld [vmem:[#allocation11 + $0x20] sm:$0xff]
        %v3387 = vld [vmem:[#allocation11 + $0x28] sm:$0xff]
        %v3388 = vld [vmem:[#allocation11 + $0x30] sm:$0xff]
        %v3389 = vld [vmem:[#allocation11 + $0x38] sm:$0xff]
        %v3390 = vld [vmem:[#allocation11 + $0x40] sm:$0xff]
        %v3391 = vld [vmem:[#allocation11 + $0x48] sm:$0xff]
        %v3392 = vld [vmem:[#allocation11 + $0x50] sm:$0xff]
        %v3393 = vld [vmem:[#allocation11 + $0x58] sm:$0xff]
        %v3394 = vld [vmem:[#allocation11 + $0x60] sm:$0xff]
        %v3395 = vld [vmem:[#allocation11 + $0x68] sm:$0xff]
        %v3396 = vld [vmem:[#allocation11 + $0x70] sm:$0xff]
        %v3397 = vld [vmem:[#allocation11 + $0x78] sm:$0xff]
        %v3398 = vld [vmem:[#allocation11 + $0x80] sm:$0xff]
        %v3399 = vld [vmem:[#allocation11 + $0x88] sm:$0xff]
        %v3400 = vld [vmem:[#allocation11 + $0x90] sm:$0xff]
        %v3401 = vld [vmem:[#allocation11 + $0x98] sm:$0xff]
        %v3402 = vld [vmem:[#allocation11 + $0xa0] sm:$0xff]
        %v3403 = vld [vmem:[#allocation11 + $0xa8] sm:$0xff]
        %v3404 = vld [vmem:[#allocation11 + $0xb0] sm:$0xff]
        %v3405 = vld [vmem:[#allocation11 + $0xb8] sm:$0xff]
        %v3406 = vld [vmem:[#allocation11 + $0xc0] sm:$0xff]
        %v3407 = vld [vmem:[#allocation11 + $0xc8] sm:$0xff]
        %v3408 = vld [vmem:[#allocation11 + $0xd0] sm:$0xff]
        %v3409 = vld [vmem:[#allocation11 + $0xd8] sm:$0xff]
        %v3410 = vld [vmem:[#allocation11 + $0xe0] sm:$0xff]
        %v3411 = vld [vmem:[#allocation11 + $0xe8] sm:$0xff]
        %v3412 = vld [vmem:[#allocation11 + $0xf0] sm:$0xff]
        %v3413 = vld [vmem:[#allocation11 + $0xf8] sm:$0xff]
        %v3414 = vld [vmem:[#allocation11 + $0x100] sm:$0xff]
        %v3415 = vld [vmem:[#allocation11 + $0x108] sm:$0xff]
        %v3416 = vld [vmem:[#allocation11 + $0x110] sm:$0xff]
        %v3417 = vld [vmem:[#allocation11 + $0x118] sm:$0xff]
        %v3418 = vld [vmem:[#allocation11 + $0x120] sm:$0xff]
        %v3419 = vld [vmem:[#allocation11 + $0x128] sm:$0xff]
        %v3420 = vld [vmem:[#allocation11 + $0x130] sm:$0xff]
        %v3421 = vld [vmem:[#allocation11 + $0x138] sm:$0xff]
        %v3422 = vld [vmem:[#allocation11 + $0x140] sm:$0xff]
        %v3423 = vld [vmem:[#allocation11 + $0x148] sm:$0xff]
        %v3424 = vld [vmem:[#allocation11 + $0x150] sm:$0xff]
        %v3425 = vld [vmem:[#allocation11 + $0x158] sm:$0xff]
        %v3426 = vld [vmem:[#allocation11 + $0x160] sm:$0xff]
        %v3427 = vld [vmem:[#allocation11 + $0x168] sm:$0xff]
        %v3428 = vld [vmem:[#allocation11 + $0x170] sm:$0xff]
        %v3429 = vld [vmem:[#allocation11 + $0x178] sm:$0xff]
        %v3430 = vld [vmem:[%s59] sm:$0x7]
        %v3431 = vld [vmem:[%s61] sm:$0x7]
        %v3433 = vperm.slane %v3430, 0
        %v3434 = vperm.slane %v3430, 1
        %v3435 = vperm.slane %v3430, 2
        %3439 = vmatpush.msra.mxu0 %v3379
        %3440 = vmatpush.msra.mxu0 %v3376
        %3441 = vmatpush.msra.mxu0 %v3373
        %3442 = vmatpush.msra.mxu0 %v3370
        %3443 = vmatpush.msra.mxu0 %v3367
        %3444 = vmatpush.msra.mxu0 %v3364
        %3445 = vmatpush.msra.mxu0 %v3361
        %3446 = vmatpush.msra.mxu0 %v3358
        %3447 = vmatpush.msra.mxu0 %v3355
        %3448 = vmatpush.msra.mxu0 %v3352
        %3449 = vmatpush.msra.mxu0 %v3349
        %3450 = vmatpush.msra.mxu0 %v3346
        %3451 = vmatpush.msra.mxu0 %v3343
        %3452 = vmatpush.msra.mxu0 %v3340
        %3453 = vmatpush.msra.mxu0 %v3337
        %3454 = vmatpush.msra.mxu0 %v3334
        %3455 = vmatmul.f32.gmra.mxu0 %v3333
        %v3456 = vpop.f32.mrf.mxu0
        %v3457 = vadd.f32 %v3433, %v3456
        %3458 = vdwg.mxu0
        %3459 = vmatpush.msra.mxu0 %v3380
        %3460 = vmatpush.msra.mxu0 %v3377
        %3461 = vmatpush.msra.mxu0 %v3374
        %3462 = vmatpush.msra.mxu0 %v3371
        %3463 = vmatpush.msra.mxu0 %v3368
        %3464 = vmatpush.msra.mxu0 %v3365
        %3465 = vmatpush.msra.mxu0 %v3362
        %3466 = vmatpush.msra.mxu0 %v3359
        %3467 = vmatpush.msra.mxu0 %v3356
        %3468 = vmatpush.msra.mxu0 %v3353
        %3469 = vmatpush.msra.mxu0 %v3350
        %3470 = vmatpush.msra.mxu0 %v3347
        %3471 = vmatpush.msra.mxu0 %v3344
        %3472 = vmatpush.msra.mxu0 %v3341
        %3473 = vmatpush.msra.mxu0 %v3338
        %3474 = vmatpush.msra.mxu0 %v3335
        %3475 = vmatmul.f32.gmra.mxu0 %v3333
        %v3476 = vpop.f32.mrf.mxu0
        %v3477 = vadd.f32 %v3434, %v3476
        %3478 = vdwg.mxu0
        %3479 = vmatpush.msra.mxu0 %v3381
        %3480 = vmatpush.msra.mxu0 %v3378
        %3481 = vmatpush.msra.mxu0 %v3375
        %3482 = vmatpush.msra.mxu0 %v3372
        %3483 = vmatpush.msra.mxu0 %v3369
        %3484 = vmatpush.msra.mxu0 %v3366
        %3485 = vmatpush.msra.mxu0 %v3363
        %3486 = vmatpush.msra.mxu0 %v3360
        %3487 = vmatpush.msra.mxu0 %v3357
        %3488 = vmatpush.msra.mxu0 %v3354
        %3489 = vmatpush.msra.mxu0 %v3351
        %3490 = vmatpush.msra.mxu0 %v3348
        %3491 = vmatpush.msra.mxu0 %v3345
        %3492 = vmatpush.msra.mxu0 %v3342
        %3493 = vmatpush.msra.mxu0 %v3339
        %3494 = vmatpush.msra.mxu0 %v3336
        %3495 = vmatmul.f32.gmra.mxu0 %v3333
        %v3496 = vpop.f32.mrf.mxu0
        %v3497 = vadd.f32 %v3435, %v3496
        %3498 = vdwg.mxu0
        %v3500 = vperm.slane %v3431, 0
        %v3501 = vperm.slane %v3431, 1
        %v3502 = vperm.slane %v3431, 2
        %3506 = vmatpush.msra.mxu0 %v3427
        %3507 = vmatpush.msra.mxu0 %v3424
        %3508 = vmatpush.msra.mxu0 %v3421
        %3509 = vmatpush.msra.mxu0 %v3418
        %3510 = vmatpush.msra.mxu0 %v3415
        %3511 = vmatpush.msra.mxu0 %v3412
        %3512 = vmatpush.msra.mxu0 %v3409
        %3513 = vmatpush.msra.mxu0 %v3406
        %3514 = vmatpush.msra.mxu0 %v3403
        %3515 = vmatpush.msra.mxu0 %v3400
        %3516 = vmatpush.msra.mxu0 %v3397
        %3517 = vmatpush.msra.mxu0 %v3394
        %3518 = vmatpush.msra.mxu0 %v3391
        %3519 = vmatpush.msra.mxu0 %v3388
        %3520 = vmatpush.msra.mxu0 %v3385
        %3521 = vmatpush.msra.mxu0 %v3382
        %3522 = vmatmul.f32.gmra.mxu0 %v3228
        %v3523 = vpop.f32.mrf.mxu0
        %v3524 = vadd.f32 %v3500, %v3523
        %3525 = vdwg.mxu0
        %3526 = vmatpush.msra.mxu0 %v3428
        %3527 = vmatpush.msra.mxu0 %v3425
        %3528 = vmatpush.msra.mxu0 %v3422
        %3529 = vmatpush.msra.mxu0 %v3419
        %3530 = vmatpush.msra.mxu0 %v3416
        %3531 = vmatpush.msra.mxu0 %v3413
        %3532 = vmatpush.msra.mxu0 %v3410
        %3533 = vmatpush.msra.mxu0 %v3407
        %3534 = vmatpush.msra.mxu0 %v3404
        %3535 = vmatpush.msra.mxu0 %v3401
        %3536 = vmatpush.msra.mxu0 %v3398
        %3537 = vmatpush.msra.mxu0 %v3395
        %3538 = vmatpush.msra.mxu0 %v3392
        %3539 = vmatpush.msra.mxu0 %v3389
        %3540 = vmatpush.msra.mxu0 %v3386
        %3541 = vmatpush.msra.mxu0 %v3383
        %3542 = vmatmul.f32.gmra.mxu0 %v3228
        %v3543 = vpop.f32.mrf.mxu0
        %v3544 = vadd.f32 %v3501, %v3543
        %3545 = vdwg.mxu0
        %3546 = vmatpush.msra.mxu0 %v3429
        %3547 = vmatpush.msra.mxu0 %v3426
        %3548 = vmatpush.msra.mxu0 %v3423
        %3549 = vmatpush.msra.mxu0 %v3420
        %3550 = vmatpush.msra.mxu0 %v3417
        %3551 = vmatpush.msra.mxu0 %v3414
        %3552 = vmatpush.msra.mxu0 %v3411
        %3553 = vmatpush.msra.mxu0 %v3408
        %3554 = vmatpush.msra.mxu0 %v3405
        %3555 = vmatpush.msra.mxu0 %v3402
        %3556 = vmatpush.msra.mxu0 %v3399
        %3557 = vmatpush.msra.mxu0 %v3396
        %3558 = vmatpush.msra.mxu0 %v3393
        %3559 = vmatpush.msra.mxu0 %v3390
        %3560 = vmatpush.msra.mxu0 %v3387
        %3561 = vmatpush.msra.mxu0 %v3384
        %3562 = vmatmul.f32.gmra.mxu0 %v3228
        %v3563 = vpop.f32.mrf.mxu0
        %v3564 = vadd.f32 %v3502, %v3563
        %3565 = vdwg.mxu0
        %v3566 = vadd.f32 %v3457, %v3524
        %v3567 = vsub.f32 0.0, %v3566
        %v3568 = vmul.f32 %v3567, 1.442695
        %v3569 = vpow.pop %v3568
        %v3570 = vadd.f32 %v3569, 1.0
        %v3571 = vrcp.pop %v3570
        %v3572 = vadd.f32 %v3477, %v3544
        %v3573 = vsub.f32 0.0, %v3572
        %v3574 = vmul.f32 %v3573, 1.442695
        %v3575 = vpow.pop %v3574
        %v3576 = vadd.f32 %v3575, 1.0
        %v3577 = vrcp.pop %v3576
        %v3578 = vmul.f32 %v3571, %v3564
        %v3579 = vadd.f32 %v3497, %v3578
        %v3580 = vtanh.pop %v3579
        %v3581 = vsub.f32 1.0, %v3577
        %v3582 = vmul.f32 %v3581, %v3580
        %v3583 = vmul.f32 %v3577, %v3228
        %v3584 = vadd.f32 %v3582, %v3583
        %s3585 = scalar_lea.vmem %s1419, 2
        %3586 = vst [vmem:[%s3585] sm:$0x1] %v3584
        %v3587 = vmax.f32 %v3584, 0.0
        %s3588 = scalar_lea.vmem %s1415, 2
        %3589 = vst [vmem:[%s3588] sm:$0x1] %v3587
        %v3590 = vld [vmem:[%s63] sm:$0xff]
        %v3591 = vld [vmem:[%s63 + $0x8] sm:$0xff]
        %v3592 = vld [vmem:[%s63 + $0x10] sm:$0xff]
        %v3593 = vld [vmem:[%s63 + $0x18] sm:$0xff]
        %v3594 = vld [vmem:[%s63 + $0x20] sm:$0xff]
        %v3595 = vld [vmem:[%s63 + $0x28] sm:$0xff]
        %v3596 = vld [vmem:[%s63 + $0x30] sm:$0xff]
        %v3597 = vld [vmem:[%s63 + $0x38] sm:$0xff]
        %v3598 = vld [vmem:[%s63 + $0x40] sm:$0xff]
        %v3599 = vld [vmem:[%s63 + $0x48] sm:$0xff]
        %v3600 = vld [vmem:[%s63 + $0x50] sm:$0xff]
        %v3601 = vld [vmem:[%s63 + $0x58] sm:$0xff]
        %v3602 = vld [vmem:[%s63 + $0x60] sm:$0xff]
        %v3603 = vld [vmem:[%s63 + $0x68] sm:$0xff]
        %v3604 = vld [vmem:[%s63 + $0x70] sm:$0xff]
        %v3605 = vld [vmem:[%s63 + $0x78] sm:$0xff]
        %v3606 = vld [vmem:[%s65] sm:$0x1]
        %3607 = vmatpush.msra.mxu0 %v3605
        %3608 = vmatpush.msra.mxu0 %v3604
        %3609 = vmatpush.msra.mxu0 %v3603
        %3610 = vmatpush.msra.mxu0 %v3602
        %3611 = vmatpush.msra.mxu0 %v3601
        %3612 = vmatpush.msra.mxu0 %v3600
        %3613 = vmatpush.msra.mxu0 %v3599
        %3614 = vmatpush.msra.mxu0 %v3598
        %3615 = vmatpush.msra.mxu0 %v3597
        %3616 = vmatpush.msra.mxu0 %v3596
        %3617 = vmatpush.msra.mxu0 %v3595
        %3618 = vmatpush.msra.mxu0 %v3594
        %3619 = vmatpush.msra.mxu0 %v3593
        %3620 = vmatpush.msra.mxu0 %v3592
        %3621 = vmatpush.msra.mxu0 %v3591
        %3622 = vmatpush.msra.mxu0 %v3590
        %3623 = vmatmul.f32.gmra.mxu0 %v3584
        %v3624 = vpop.f32.mrf.mxu0
        %v3625 = vadd.f32 %v3606, %v3624
        %3626 = vdwg.mxu0
        %3627 = vst [vmem:[%s1364] sm:$0x1] %v3625
        %p3628 = scmp.lt.s32.totalorder %s97, 1
        %s3629 = scalar_select %p3628, %s97, 1
        %s3630 = smul.addr %s3629, 3
        %s3631 = smul.addr %s3630, 8
        %s3632 = scalar_lea.vmem %s67, %s3631
        %p3633 = scmp.lt.s32.totalorder %s97, 1
        %s3634 = scalar_select %p3633, %s97, 1
        %s3635 = smul.addr %s3634, 8
        %s3636 = smul.addr %s3635, 8
        %s3637 = scalar_lea.vmem %s69, %s3636
        %p3638 = scmp.lt.s32.totalorder %s97, 1
        %s3639 = scalar_select %p3638, %s97, 1
        %s3640 = smul.addr %s3639, 3
        %s3641 = scalar_lea.vmem %s71, %s3640
        %p3642 = scmp.lt.s32.totalorder %s97, 1
        %s3643 = scalar_select %p3642, %s97, 1
        %s3644 = smul.addr %s3643, 3
        %s3645 = scalar_lea.vmem %s73, %s3644
        %p3646 = scmp.lt.s32.totalorder %s97, 1
        %s3647 = scalar_select %p3646, %s97, 1
        %s3648 = smul.addr %s3647, 2
        %s3649 = smul.addr %s3648, 8
        %s3650 = scalar_lea.vmem %s75, %s3649
        %s3651 = sand.u32 %s968, 1
        %s3652 = scalar_lea.sflag [#allocation5], %s3651
        %s3653 = sand.u32 %s968, 1
        %s3654 = scalar_lea.vmem [#allocation12], %s3653
        // Predicated region
        $region173: #{fingerprint_forward.1} parent=151 // pred_check
          %p3655 = pneg %p848
        $region174: #{fingerprint_forward.1} parent=151 // pred_check_branch
          %3657 = sbr.rel (%p3655) target = $region176
        $region175: #{fingerprint_forward.1} parent=151 // pred_region
          _
        $region176: #{fingerprint_forward.1} parent=151 // pred_fallthru
          _
        // Predicated region
        $region177: #{fingerprint_forward.1} parent=151 // pred_check
          %p3658 = pneg %p874
        $region178: #{fingerprint_forward.1} parent=151 // pred_check_branch
          %3660 = sbr.rel (%p3658) target = $region180
        $region179: #{fingerprint_forward.1} parent=151 // pred_region
          _
        $region180: #{fingerprint_forward.1} parent=151 // pred_fallthru
          _
        // Predicated region
        $region181: #{fingerprint_forward.1} parent=151 // pred_check
          %p3661 = pneg %p900
        $region182: #{fingerprint_forward.1} parent=151 // pred_check_branch
          %3663 = sbr.rel (%p3661) target = $region184
        $region183: #{fingerprint_forward.1} parent=151 // pred_region
          _
        $region184: #{fingerprint_forward.1} parent=151 // pred_fallthru
          _
        // Predicated region
        $region185: #{fingerprint_forward.1} parent=151 // pred_check
          %p3664 = pneg %p926
        $region186: #{fingerprint_forward.1} parent=151 // pred_check_branch
          %3666 = sbr.rel (%p3664) target = $region188
        $region187: #{fingerprint_forward.1} parent=151 // pred_region
          _
        $region188: #{fingerprint_forward.1} parent=151 // pred_fallthru
          _
        // Predicated region
        $region189: #{fingerprint_forward.1} parent=151 // pred_check
          %p3667 = pneg %p952
        $region190: #{fingerprint_forward.1} parent=151 // pred_check_branch
          %3669 = sbr.rel (%p3667) target = $region192
        $region191: #{fingerprint_forward.1} parent=151 // pred_region
          _
        $region192: #{fingerprint_forward.1} parent=151 // pred_fallthru
          _
        // Predicated region
        $region193: #{fingerprint_forward.1} parent=151 // pred_check
          %p3670 = pneg %p978
        $region194: #{fingerprint_forward.1} parent=151 // pred_check_branch
          %3672 = sbr.rel (%p3670) target = $region196
        $region195: #{fingerprint_forward.1} parent=151 // pred_region
          %3674 = vsyncadd %s3652, 0
          %s3675 = scalar_lea.hbm %s77, %s97
          %s3677 = sshll.u32 %s3654, 4
          %s3678 = int_to_ptr.vmem [resolvable:$true] %s3677
          %s3679 = sshll.u32 %s3675, 4
          %s3680 = int_to_ptr.hbm [resolvable:$true] %s3679
          %3682 = dma.vmem_to_hbm [thread:$0]  %s3678, 16, %s3680, %s3652
        $region196: #{fingerprint_forward.1} parent=151 // pred_fallthru
          _
      $region152: #{fingerprint_forward.1} parent=5 // pred_fallthru
        _
      %p3683 = scmp.le.s32.totalorder 2, %s92
      // Predicated region
      $region197: #{fingerprint_forward.1} parent=5 // pred_check
        %p3684 = pneg %p3683
      $region198: #{fingerprint_forward.1} parent=5 // pred_check_branch
        %3686 = sbr.rel (%p3684) target = $region200
      $region199: #{fingerprint_forward.1} parent=5 // pred_region
        %s3687 = ssub.s32 %s92, 2
        // Predicated region
        $region201: #{fingerprint_forward.1} parent=199 // pred_check
          %p3688 = pneg %p854
        $region202: #{fingerprint_forward.1} parent=199 // pred_check_branch
          %3690 = sbr.rel (%p3688) target = $region204
        $region203: #{fingerprint_forward.1} parent=199 // pred_region
          %p3691 = scmp.lt.s32.totalorder %s98, 1
          %s3692 = scalar_select %p3691, %s98, 1
          %s3693 = smul.addr %s3692, 3
          %s3694 = smul.addr %s3693, 8
          %s3695 = scalar_lea.vmem %s67, %s3694
        $region204: #{fingerprint_forward.1} parent=199 // pred_fallthru
          _
        // Predicated region
        $region205: #{fingerprint_forward.1} parent=199 // pred_check
          %p3696 = pneg %p880
        $region206: #{fingerprint_forward.1} parent=199 // pred_check_branch
          %3698 = sbr.rel (%p3696) target = $region208
        $region207: #{fingerprint_forward.1} parent=199 // pred_region
          %p3699 = scmp.lt.s32.totalorder %s98, 1
          %s3700 = scalar_select %p3699, %s98, 1
          %s3701 = smul.addr %s3700, 8
          %s3702 = smul.addr %s3701, 8
          %s3703 = scalar_lea.vmem %s69, %s3702
        $region208: #{fingerprint_forward.1} parent=199 // pred_fallthru
          _
        // Predicated region
        $region209: #{fingerprint_forward.1} parent=199 // pred_check
          %p3704 = pneg %p906
        $region210: #{fingerprint_forward.1} parent=199 // pred_check_branch
          %3706 = sbr.rel (%p3704) target = $region212
        $region211: #{fingerprint_forward.1} parent=199 // pred_region
          %p3707 = scmp.lt.s32.totalorder %s98, 1
          %s3708 = scalar_select %p3707, %s98, 1
          %s3709 = smul.addr %s3708, 3
          %s3710 = scalar_lea.vmem %s71, %s3709
        $region212: #{fingerprint_forward.1} parent=199 // pred_fallthru
          _
        // Predicated region
        $region213: #{fingerprint_forward.1} parent=199 // pred_check
          %p3711 = pneg %p932
        $region214: #{fingerprint_forward.1} parent=199 // pred_check_branch
          %3713 = sbr.rel (%p3711) target = $region216
        $region215: #{fingerprint_forward.1} parent=199 // pred_region
          %p3714 = scmp.lt.s32.totalorder %s98, 1
          %s3715 = scalar_select %p3714, %s98, 1
          %s3716 = smul.addr %s3715, 3
          %s3717 = scalar_lea.vmem %s73, %s3716
        $region216: #{fingerprint_forward.1} parent=199 // pred_fallthru
          _
        // Predicated region
        $region217: #{fingerprint_forward.1} parent=199 // pred_check
          %p3718 = pneg %p958
        $region218: #{fingerprint_forward.1} parent=199 // pred_check_branch
          %3720 = sbr.rel (%p3718) target = $region220
        $region219: #{fingerprint_forward.1} parent=199 // pred_region
          %p3721 = scmp.lt.s32.totalorder %s98, 1
          %s3722 = scalar_select %p3721, %s98, 1
          %s3723 = smul.addr %s3722, 2
          %s3724 = smul.addr %s3723, 8
          %s3725 = scalar_lea.vmem %s75, %s3724
        $region220: #{fingerprint_forward.1} parent=199 // pred_fallthru
          _
        // Predicated region
        $region221: #{fingerprint_forward.1} parent=199 // pred_check
          %p3726 = pneg %p984
        $region222: #{fingerprint_forward.1} parent=199 // pred_check_branch
          %3728 = sbr.rel (%p3726) target = $region224
        $region223: #{fingerprint_forward.1} parent=199 // pred_region
          %s3729 = sand.u32 %s969, 1
          %s3730 = scalar_lea.sflag [#allocation5], %s3729
          %s3731 = sand.u32 %s969, 1
          %s3732 = scalar_lea.vmem [#allocation12], %s3731
          %3734 = dma.done %s3730, 16
        $region224: #{fingerprint_forward.1} parent=199 // pred_fallthru
          _
      $region200: #{fingerprint_forward.1} parent=5 // pred_fallthru
        _
    $region6: #{fingerprint_forward.1} parent=1 // loop_footer
      %s96 = sadd.s32 1, %s92
    $region7: #{fingerprint_forward.1} parent=1 // loop_footer_branch
      %91 = sbr.rel target = $region3
    $region8: #{fingerprint_forward.1} parent=1 // loop_exit
      _
    %3735 = vsyncpa [#allocation4], 1
    %s3736 = scalar_lea.sflag [#allocation4], 1
    %3737 = vsyncpa %s3736, 1
    %3738 = vsyncpa [#allocation7], 1
    %3739 = vsyncpa [#allocation10], 1
    %3740 = vsyncpa [#allocation5], 1
    %s3741 = scalar_lea.sflag [#allocation5], 1
    %3742 = vsyncpa %s3741, 1

</llo_original>
